<compile_context>
chip_gen: v6e
topology: v6e:2x2x1
jax: 0.10.0
libtpu: 0.0.40
codegen_flags: <defaults>
</compile_context>

<pallas_src>
import functools
import math

import jax
import jax.numpy as jnp
from jax.experimental import pallas as pl
from jax.experimental.pallas import tpu as pltpu


# ----------------------------------------------------------------------------
# tiling helpers
# ----------------------------------------------------------------------------
def _pick_tile(m, cap, mult=8, min_grid=1):
    """Row tile t: t | m, t % mult == 0, t <= cap, and (best effort) m//t >= min_grid.

    Falls back to the full extent m (exempt from the (8,128) rule) when m is not
    a multiple of the sublane packing.
    """
    if m % mult != 0:
        if mult > 8 and m % 8 == 0:
            mult = 8
        else:
            return m
    cap = max(mult, min(cap, m))
    cands = [t for t in range(mult, cap + 1, mult) if m % t == 0]
    if not cands:
        return m
    good = [t for t in cands if m // t >= min_grid]
    return max(good) if good else max(cands)


def _pick_lane_tile(n, cap=512):
    """Lane (last-dim) tile: multiple of 128 that divides n, or n itself."""
    if n <= cap:
        return n
    t = (cap // 128) * 128
    while t >= 128:
        if n % t == 0:
            return t
        t -= 128
    return n


def _pick_fold(m, c):
    """Row-fold factor k (k | m) so the folded lane width k*c is a multiple of 128.

    Graceful fallback: largest divisor of m (<= 4*k) keeping k*c a multiple of 8,
    rather than collapsing straight to k=1 (masked lane stores).
    """
    k = 128 // math.gcd(c, 128)
    if m % k == 0:
        return k
    for kk in range(min(m, 4 * k), 0, -1):
        if m % kk == 0 and (kk * c) % 8 == 0:
            return kk
    return 1


def _elem_row_cap(cf, in_itemsize, out_itemsize, mult, target_bytes=1 << 20):
    """Rows per block so the larger of the in/out block is ~1 MiB.

    ~1-2 MiB blocks reach ~85% of HBM streaming roofline; with double-buffered
    in+out blocks this stays well inside v5e's 16 MiB default scoped VMEM.
    """
    per_row = cf * max(in_itemsize, out_itemsize)
    return max(mult, (target_bytes // per_row) // mult * mult)


# ----------------------------------------------------------------------------
# Pallas kernel 1: matmul (optionally fused bias + activation), bf16 in,
# f32 MXU accumulation, configurable output dtype (bf16 for all intermediates).
# ----------------------------------------------------------------------------
def _matmul_kernel(x_ref, w_ref, o_ref):
    acc = jnp.dot(x_ref[...], w_ref[...], preferred_element_type=jnp.float32)
    o_ref[...] = acc.astype(o_ref.dtype)


def _matmul_bias_act_kernel(x_ref, w_ref, b_ref, o_ref, *, activation):
    acc = jnp.dot(x_ref[...], w_ref[...], preferred_element_type=jnp.float32)
    acc = acc + b_ref[...]                      # (1, tn) broadcasts over rows
    if activation == "relu":
        acc = jnp.maximum(acc, 0.0)
    elif activation == "sigmoid":
        acc = jax.nn.sigmoid(acc)
    o_ref[...] = acc.astype(o_ref.dtype)


def matmul_pallas(x, w, bias=None, activation="none", out_dtype=jnp.float32,
                  tm_cap=512, tn_cap=512):
    """out = act(x @ w (+ bias)); x:(M,K), w:(K,N) bf16; out in out_dtype."""
    M, K = x.shape
    K2, N = w.shape
    assert K == K2
    mult = 16 if (jnp.dtype(x.dtype).itemsize < 4
                  or jnp.dtype(out_dtype).itemsize < 4) else 8
    # min_grid=2: keep >=2 steps on a parallel axis so both v7x TCs get work.
    tm = _pick_tile(M, tm_cap, mult=mult, min_grid=2)
    tn = _pick_lane_tile(N, tn_cap)
    grid = (M // tm, N // tn)

    if bias is None:
        kernel = _matmul_kernel
        in_specs = [
            pl.BlockSpec((tm, K), lambda i, j: (i, 0)),
            pl.BlockSpec((K, tn), lambda i, j: (0, j)),
        ]
        args = (x, w)
    else:
        kernel = functools.partial(_matmul_bias_act_kernel, activation=activation)
        bias = bias.reshape(1, N).astype(jnp.float32)   # no-op if pre-hoisted
        in_specs = [
            pl.BlockSpec((tm, K), lambda i, j: (i, 0)),
            pl.BlockSpec((K, tn), lambda i, j: (0, j)),
            pl.BlockSpec((1, tn), lambda i, j: (0, j)),
        ]
        args = (x, w, bias)

    return pl.pallas_call(
        kernel,
        out_shape=jax.ShapeDtypeStruct((M, N), out_dtype),
        grid_spec=pltpu.PrefetchScalarGridSpec(
            num_scalar_prefetch=0,
            grid=grid,
            in_specs=in_specs,
            out_specs=pl.BlockSpec((tm, tn), lambda i, j: (i, j)),
        ),
        compiler_params=pltpu.CompilerParams(
            dimension_semantics=("parallel", "parallel")
        ),
    )(*args)


# ----------------------------------------------------------------------------
# Pallas kernels 2/3: fused conv-bias + activation (+ BatchNorm) over (M', k*C)
# ----------------------------------------------------------------------------
def _bias_relu_stats_kernel(x_ref, cb_ref, o_ref):
    # per-tile centered partials of relu(x + conv_bias): sum and sum of squared
    # deviations from the tile mean (combined outside via the Chan formula).
    y = jnp.maximum(x_ref[...].astype(jnp.float32) + cb_ref[...], 0.0)
    s = jnp.sum(y, axis=0, keepdims=True)                 # (1, cf)
    mu = s * (1.0 / y.shape[0])
    d = y - mu
    m2 = jnp.sum(d * d, axis=0, keepdims=True)            # (1, cf)
    o_ref[...] = jnp.concatenate([s, m2], axis=0).reshape(o_ref.shape)


def _bias_act_affine_kernel(x_ref, cb_ref, scale_ref, shift_ref, o_ref, *, activation):
    y = x_ref[...].astype(jnp.float32) + cb_ref[...]
    if activation == "relu":
        y = jnp.maximum(y, 0.0)
    elif activation == "sigmoid":
        y = jax.nn.sigmoid(y)
    o_ref[...] = (y * scale_ref[...] + shift_ref[...]).astype(o_ref.dtype)


def bias_act_bn(x_nhwc, conv_bias, conv_bias_tiled, gamma, beta, *,
                activation, apply_bn, out_dtype=jnp.float32, eps=1e-5):
    """Fused conv-bias + activation (+ training-mode BatchNorm) on NHWC."""
    B, H, W, C = x_nhwc.shape
    M = B * H * W
    k = _pick_fold(M, C)                          # lane-dense folding
    mf, cf = M // k, k * C
    xf = x_nhwc.reshape(mf, cf)

    if conv_bias_tiled is not None and conv_bias_tiled.shape[1] == cf:
        cb = conv_bias_tiled                      # hoisted into prepare_params
    else:
        cb = jnp.tile(conv_bias.astype(jnp.float32), k).reshape(1, cf)

    in_sz = jnp.dtype(x_nhwc.dtype).itemsize
    out_sz = jnp.dtype(out_dtype).itemsize
    mult = 16 if min(in_sz, out_sz) < 4 else 8
    cap = _elem_row_cap(cf, in_sz, out_sz, mult)  # ~1 MiB blocks, v5e-safe
    tm = _pick_tile(mf, cap, mult=mult, min_grid=2)
    grid = (mf // tm,)
    cparams = pltpu.CompilerParams(dimension_semantics=("parallel",))

    if apply_bn:
        nt = mf // tm
        partials = pl.pallas_call(
            _bias_relu_stats_kernel,
            out_shape=jax.ShapeDtypeStruct((nt, 2, cf), jnp.float32),
            grid_spec=pltpu.PrefetchScalarGridSpec(
                num_scalar_prefetch=0,
                grid=grid,
                in_specs=[
                    pl.BlockSpec((tm, cf), lambda i: (i, 0)),
                    pl.BlockSpec((1, cf), lambda i: (0, 0)),
                ],
                out_specs=pl.BlockSpec((1, 2, cf), lambda i: (i, 0, 0)),
            ),
            compiler_params=cparams,
        )(xf, cb)
        part = partials.reshape(nt, 2, k, C)
        sums = part[:, 0]                         # (nt, k, C) per-group sums
        m2s = part[:, 1]                          # (nt, k, C) per-group centered SS
        mean_g = sums / tm
        mean = sums.sum(axis=(0, 1)) / M
        var = (m2s.sum(axis=(0, 1))
               + (tm * (mean_g - mean) ** 2).sum(axis=(0, 1))) / M
        var = jnp.maximum(var, 0.0)               # guard tiny negative round-off
        scale_c = gamma * jax.lax.rsqrt(var + eps)
        shift_c = beta - mean * scale_c
        # TODO(synk): BatchNorm running_mean/running_var buffer updates (training
        # side effect that does not change the forward output) are not materialized.
    else:
        scale_c = jnp.ones((C,), jnp.float32)
        shift_c = jnp.zeros((C,), jnp.float32)

    scale = jnp.tile(scale_c, k).reshape(1, cf)
    shift = jnp.tile(shift_c, k).reshape(1, cf)
    # NOTE: if xprof shows exposed DMA here, add pipeline_mode=pl.Buffered(3) on xf.
    out = pl.pallas_call(
        functools.partial(_bias_act_affine_kernel, activation=activation),
        out_shape=jax.ShapeDtypeStruct((mf, cf), out_dtype),
        grid_spec=pltpu.PrefetchScalarGridSpec(
            num_scalar_prefetch=0,
            grid=grid,
            in_specs=[
                pl.BlockSpec((tm, cf), lambda i: (i, 0)),
                pl.BlockSpec((1, cf), lambda i: (0, 0)),
                pl.BlockSpec((1, cf), lambda i: (0, 0)),
                pl.BlockSpec((1, cf), lambda i: (0, 0)),
            ],
            out_specs=pl.BlockSpec((tm, cf), lambda i: (i, 0)),
        ),
        compiler_params=cparams,
    )(xf, cb, scale, shift)
    return out.reshape(B, H, W, C)


# ----------------------------------------------------------------------------
# ConvTranspose2d(k=4, s=2, p=1): GEMM-first + JAX col2im overlap-add
# ----------------------------------------------------------------------------
def _col2im_2x(c, out_dtype=jnp.bfloat16):
    """c: (B, H, W, ky, kx, C) per-input-pixel contributions; contribution
    c[iy, ix, ky, kx] lands at output (2*iy + ky - 1, 2*ix + kx - 1).
    Adds in f32; result stored in out_dtype (bf16 halves HBM traffic)."""
    B, H, W, _, _, C = c.shape
    c = c.astype(jnp.float32)
    zc = jnp.zeros((B, H, 1, 4, C), c.dtype)
    ce = c[:, :, :, :, 1, :] + jnp.concatenate([zc, c[:, :, :-1, :, 3, :]], axis=2)
    co = c[:, :, :, :, 2, :] + jnp.concatenate([c[:, :, 1:, :, 0, :], zc], axis=2)
    cx = jnp.stack([ce, co], axis=3).reshape(B, H, 2 * W, 4, C)
    zr = jnp.zeros((B, 1, 2 * W, C), c.dtype)
    re = cx[:, :, :, 1, :] + jnp.concatenate([zr, cx[:, :-1, :, 3, :]], axis=1)
    ro = cx[:, :, :, 2, :] + jnp.concatenate([cx[:, 1:, :, 0, :], zr], axis=1)
    out = jnp.stack([re, ro], axis=2).reshape(B, 2 * H, 2 * W, C)
    return out.astype(out_dtype)


def conv_transpose_4x4_s2_p1(x_nhwc, w_mat, cout):
    """x_nhwc: (B, H, W, Cin) (bf16); w_mat: (Cin, 16*cout_pad) bf16 GEMM weight."""
    B, H, W, Cin = x_nhwc.shape
    cout_pad = w_mat.shape[1] // 16
    x_flat = x_nhwc.reshape(B * H * W, Cin).astype(jnp.bfloat16)
    cols = matmul_pallas(x_flat, w_mat, out_dtype=jnp.bfloat16)  # (B*H*W, 16*cp)
    c = cols.reshape(B, H, W, 4, 4, cout_pad)
    if cout_pad != cout:
        c = c[..., :cout]
    return _col2im_2x(c, jnp.bfloat16)           # (B, 2H, 2W, cout) bf16


# ----------------------------------------------------------------------------
# Parameters
# ----------------------------------------------------------------------------
def init_generator_params(key, img_size, latent_dim, dim):
    """PyTorch-layout float32 master parameters."""
    f0, f1 = img_size[0] // 16, img_size[1] // 16
    c_img = img_size[2]
    lin_out = 8 * dim * f0 * f1
    ks = jax.random.split(key, 10)

    def unif(k, shape, fan_in):
        bound = 1.0 / math.sqrt(float(fan_in))
        return jax.random.uniform(k, shape, jnp.float32, -bound, bound)

    p = {
        "lin_w": unif(ks[0], (latent_dim, lin_out), latent_dim),
        "lin_b": unif(ks[1], (lin_out,), latent_dim),
    }
    chans = [8 * dim, 4 * dim, 2 * dim, dim, c_img]
    for i in range(4):
        cin, cout = chans[i], chans[i + 1]
        fan_in = cout * 16   # PyTorch fan_in convention for ConvTranspose2d weight
        p[f"ct{i}_w"] = unif(ks[2 + 2 * i], (cin, cout, 4, 4), fan_in)
        p[f"ct{i}_b"] = unif(ks[3 + 2 * i], (cout,), fan_in)
    for i, c in enumerate([4 * dim, 2 * dim, dim]):
        p[f"bn{i}_g"] = jnp.ones((c,), jnp.float32)
        p[f"bn{i}_b"] = jnp.zeros((c,), jnp.float32)
    return p


def prepare_params(p, img_size, dim):
    """One-time conversion to kernel layouts (done once, outside the jitted fwd)."""
    f0, f1 = img_size[0] // 16, img_size[1] // 16
    c_img = img_size[2]
    latent_dim, lin_out = p["lin_w"].shape

    # Permute linear output columns (8*dim, f0, f1) -> (f0, f1, 8*dim) so the
    # post-linear view is already NHWC (removes an XLA transpose per forward).
    lw = p["lin_w"].reshape(latent_dim, 8 * dim, f0, f1)
    lw = jnp.transpose(lw, (0, 2, 3, 1)).reshape(latent_dim, lin_out)
    lb = p["lin_b"].reshape(8 * dim, f0, f1)
    lb = jnp.transpose(lb, (1, 2, 0)).reshape(1, lin_out)
    q = {"lin_w": lw.astype(jnp.bfloat16), "lin_b": lb.astype(jnp.float32)}

    chans = [8 * dim, 4 * dim, 2 * dim, dim, c_img]
    for i in range(4):
        cout = chans[i + 1]
        cout_pad = ((cout + 7) // 8) * 8          # keeps 16*cout_pad a multiple of 128
        w = jnp.transpose(p[f"ct{i}_w"], (0, 2, 3, 1))       # (Cin, ky, kx, Cout)
        if cout_pad != cout:
            w = jnp.pad(w, ((0, 0), (0, 0), (0, 0), (0, cout_pad - cout)))
        q[f"ct{i}_w"] = w.reshape(w.shape[0], 16 * cout_pad).astype(jnp.bfloat16)
        q[f"ct{i}_b"] = p[f"ct{i}_b"].astype(jnp.float32)
        # Pre-tile the conv bias for the canonical lane fold (k0*C % 128 == 0).
        k0 = 128 // math.gcd(cout, 128)
        q[f"ct{i}_bt"] = jnp.tile(q[f"ct{i}_b"], k0).reshape(1, k0 * cout)
    for i in range(3):
        q[f"bn{i}_g"] = p[f"bn{i}_g"].astype(jnp.float32)
        q[f"bn{i}_b"] = p[f"bn{i}_b"].astype(jnp.float32)
    return q


# ----------------------------------------------------------------------------
# Forward pass
# ----------------------------------------------------------------------------
def generator_forward(params, x, img_size, latent_dim, dim, *, nchw_output=True):
    B = x.shape[0]
    f0, f1 = img_size[0] // 16, img_size[1] // 16
    c_img = img_size[2]

    # latent_to_features: Linear + ReLU (bias+act fused in the matmul epilogue);
    # weight columns pre-permuted -> output is already NHWC-ordered, emitted bf16.
    h = matmul_pallas(x.astype(jnp.bfloat16), params["lin_w"], params["lin_b"],
                      activation="relu", out_dtype=jnp.bfloat16)
    h = h.reshape(B, f0, f1, 8 * dim)

    chans = [8 * dim, 4 * dim, 2 * dim, dim, c_img]
    # three (ConvTranspose -> ReLU -> BatchNorm) blocks, bf16 intermediates
    for i in range(3):
        h = conv_transpose_4x4_s2_p1(h, params[f"ct{i}_w"], chans[i + 1])
        h = bias_act_bn(h, params[f"ct{i}_b"], params[f"ct{i}_bt"],
                        params[f"bn{i}_g"], params[f"bn{i}_b"],
                        activation="relu", apply_bn=True, out_dtype=jnp.bfloat16)
    # final ConvTranspose -> Sigmoid (image written f32)
    h = conv_transpose_4x4_s2_p1(h, params["ct3_w"], c_img)
    h = bias_act_bn(h, params["ct3_b"], params["ct3_bt"], None, None,
                    activation="sigmoid", apply_bn=False, out_dtype=jnp.float32)

    if nchw_output:
        # NCHW to match PyTorch; pass nchw_output=False if the consumer accepts
        # NHWC (C=3 makes this a lane-hostile shuffle).
        h = h.transpose(0, 3, 1, 2)
    return h


# ----------------------------------------------------------------------------
# Pure-JAX reference (f32) for correctness checking
# ----------------------------------------------------------------------------
def reference_forward(p, x, img_size, latent_dim, dim):
    B = x.shape[0]
    f0, f1 = img_size[0] // 16, img_size[1] // 16
    h = jnp.maximum(x @ p["lin_w"] + p["lin_b"], 0.0)
    h = h.reshape(B, 8 * dim, f0, f1).transpose(0, 2, 3, 1)

    def convt(y, w_t, b):
        w_hwio = jnp.transpose(w_t[:, :, ::-1, ::-1], (2, 3, 0, 1))
        y = jax.lax.conv_general_dilated(
            y, w_hwio, window_strides=(1, 1), padding=((2, 2), (2, 2)),
            lhs_dilation=(2, 2), dimension_numbers=("NHWC", "HWIO", "NHWC"))
        return y + b

    for i in range(3):
        h = jnp.maximum(convt(h, p[f"ct{i}_w"], p[f"ct{i}_b"]), 0.0)
        mean = h.mean(axis=(0, 1, 2))
        var = h.var(axis=(0, 1, 2))
        h = (h - mean) * jax.lax.rsqrt(var + 1e-5) * p[f"bn{i}_g"] + p[f"bn{i}_b"]
    h = jax.nn.sigmoid(convt(h, p["ct3_w"], p["ct3_b"]))
    return h.transpose(0, 3, 1, 2)


if __name__ == "__main__":
    # small config consistent with the module (img dims must be multiples of 16)
    img_size = (32, 32, 3)
    latent_dim = 16
    dim = 8
    batch = 2

    key = jax.random.PRNGKey(0)
    k_param, k_x = jax.random.split(key)
    raw_params = init_generator_params(k_param, img_size, latent_dim, dim)
    params = prepare_params(raw_params, img_size, dim)
    x = jax.random.normal(k_x, (batch, latent_dim), jnp.float32)

    fwd = jax.jit(
        functools.partial(
            generator_forward, img_size=img_size, latent_dim=latent_dim, dim=dim
        )
    )
    out = jax.block_until_ready(fwd(params, x))

    assert out.shape == (batch, img_size[2], img_size[0], img_size[1]), out.shape
    assert bool(jnp.all(jnp.isfinite(out)))
    assert bool(jnp.all((out >= 0.0) & (out <= 1.0)))   # sigmoid output range

    # numerical check vs pure-JAX f32 reference; tolerance absorbs the intentional
    # end-to-end bf16 matmuls and bf16 activation storage.
    ref = reference_forward(raw_params, x, img_size, latent_dim, dim)
    max_diff = float(jnp.max(jnp.abs(out - ref)))
    mean_diff = float(jnp.mean(jnp.abs(out - ref)))
    assert max_diff < 1e-1, f"max diff vs reference: {max_diff}"
    assert mean_diff < 1e-2, f"mean diff vs reference: {mean_diff}"

    print("KERNEL_OK")
</pallas_src>

<mosaic_0001>
module attributes {stable_mosaic.version = 11 : i64} {
  func.func @_matmul_bias_act_kernel(%arg0: i32, %arg1: i32, %arg2: memref<2x16xbf16, #tpu.memory_space<vmem>>, %arg3: memref<16x256xbf16, #tpu.memory_space<vmem>>, %arg4: memref<1x256xf32, #tpu.memory_space<vmem>>, %arg5: memref<2x256xbf16, #tpu.memory_space<vmem>>) attributes {dimension_semantics = [#tpu.dimension_semantics<parallel>, #tpu.dimension_semantics<parallel>], iteration_bounds = array<i64: 1, 1>, scalar_prefetch = 0 : i64, scratch_operands = 0 : i64, tpu.core_type = #tpu.core_type<tc>, window_params = [{transform_indices = @transform_0, window_bounds = array<i64: 2, 16>}, {transform_indices = @transform_1, window_bounds = array<i64: 16, 256>}, {transform_indices = @transform_2, window_bounds = array<i64: 1, 256>}, {transform_indices = @transform_3, window_bounds = array<i64: 2, 256>}]} {
    %c0 = arith.constant 0 : index
    %c0_0 = arith.constant 0 : index
    %0 = vector.load %arg2[%c0, %c0_0] : memref<2x16xbf16, #tpu.memory_space<vmem>>, vector<2x16xbf16>
    %c0_1 = arith.constant 0 : index
    %c0_2 = arith.constant 0 : index
    %1 = vector.load %arg3[%c0_1, %c0_2] : memref<16x256xbf16, #tpu.memory_space<vmem>>, vector<16x256xbf16>
    %cst = arith.constant dense<0.000000e+00> : vector<2x256xf32>
    %2 = tpu.matmul %0, %1, %cst {dimension_numbers = #tpu.dot_dimension_numbers<[1], [0], [0], [1], [0, 0, 1, 1], [], []>} : vector<2x16xbf16>, vector<16x256xbf16>, vector<2x256xf32> -> vector<2x256xf32>
    %c0_3 = arith.constant 0 : index
    %c0_4 = arith.constant 0 : index
    %3 = vector.load %arg4[%c0_3, %c0_4] : memref<1x256xf32, #tpu.memory_space<vmem>>, vector<1x256xf32>
    %4 = vector.broadcast %3 : vector<1x256xf32> to vector<2x256xf32>
    %5 = arith.addf %2, %4 : vector<2x256xf32>
    %cst_5 = arith.constant 0.000000e+00 : f32
    %6 = vector.broadcast %cst_5 : f32 to vector<2x256xf32>
    %7 = arith.maximumf %5, %6 : vector<2x256xf32>
    %8 = arith.truncf %7 : vector<2x256xf32> to vector<2x256xbf16>
    %c0_6 = arith.constant 0 : index
    %c0_7 = arith.constant 0 : index
    %9 = vector.load %arg5[%c0_6, %c0_7] : memref<2x256xbf16, #tpu.memory_space<vmem>>, vector<2x256xbf16>
    tpu.vector_store %arg5[%c0_6, %c0_7], %8 {strides = array<i32>} : memref<2x256xbf16, #tpu.memory_space<vmem>>, vector<2x256xbf16>,
    return
  }
  func.func @transform_0(%arg0: i32, %arg1: i32) -> (i32, i32) {
    %c0_i32 = arith.constant 0 : i32
    %c0_i32_0 = arith.constant 0 : i32
    return %arg0, %c0_i32 : i32, i32
  }
  func.func @transform_1(%arg0: i32, %arg1: i32) -> (i32, i32) {
    %c0_i32 = arith.constant 0 : i32
    %c0_i32_0 = arith.constant 0 : i32
    return %c0_i32, %arg1 : i32, i32
  }
  func.func @transform_2(%arg0: i32, %arg1: i32) -> (i32, i32) {
    %c0_i32 = arith.constant 0 : i32
    %c0_i32_0 = arith.constant 0 : i32
    return %c0_i32, %arg1 : i32, i32
  }
  func.func @transform_3(%arg0: i32, %arg1: i32) -> (i32, i32) {
    %c0_i32 = arith.constant 0 : i32
    return %arg0, %arg1 : i32, i32
  }
}

module attributes {stable_mosaic.version = 11 : i64} {
  func.func @_matmul_kernel(%arg0: i32, %arg1: i32, %arg2: memref<8x64xbf16, #tpu.memory_space<vmem>>, %arg3: memref<64x512xbf16, #tpu.memory_space<vmem>>, %arg4: memref<8x512xbf16, #tpu.memory_space<vmem>>) attributes {dimension_semantics = [#tpu.dimension_semantics<parallel>, #tpu.dimension_semantics<parallel>], iteration_bounds = array<i64: 1, 1>, scalar_prefetch = 0 : i64, scratch_operands = 0 : i64, tpu.core_type = #tpu.core_type<tc>, window_params = [{transform_indices = @transform_0, window_bounds = array<i64: 8, 64>}, {transform_indices = @transform_1, window_bounds = array<i64: 64, 512>}, {transform_indices = @transform_2, window_bounds = array<i64: 8, 512>}]} {
    %c0 = arith.constant 0 : index
    %c0_0 = arith.constant 0 : index
    %0 = vector.load %arg2[%c0, %c0_0] : memref<8x64xbf16, #tpu.memory_space<vmem>>, vector<8x64xbf16>
    %c0_1 = arith.constant 0 : index
    %c0_2 = arith.constant 0 : index
    %1 = vector.load %arg3[%c0_1, %c0_2] : memref<64x512xbf16, #tpu.memory_space<vmem>>, vector<64x512xbf16>
    %cst = arith.constant dense<0.000000e+00> : vector<8x512xf32>
    %2 = tpu.matmul %0, %1, %cst {dimension_numbers = #tpu.dot_dimension_numbers<[1], [0], [0], [1], [0, 0, 1, 1], [], []>} : vector<8x64xbf16>, vector<64x512xbf16>, vector<8x512xf32> -> vector<8x512xf32>
    %3 = arith.truncf %2 : vector<8x512xf32> to vector<8x512xbf16>
    %c0_3 = arith.constant 0 : index
    %c0_4 = arith.constant 0 : index
    %4 = vector.load %arg4[%c0_3, %c0_4] : memref<8x512xbf16, #tpu.memory_space<vmem>>, vector<8x512xbf16>
    tpu.vector_store %arg4[%c0_3, %c0_4], %3 {strides = array<i32>} : memref<8x512xbf16, #tpu.memory_space<vmem>>, vector<8x512xbf16>,
    return
  }
  func.func @transform_0(%arg0: i32, %arg1: i32) -> (i32, i32) {
    %c0_i32 = arith.constant 0 : i32
    %c0_i32_0 = arith.constant 0 : i32
    return %arg0, %c0_i32 : i32, i32
  }
  func.func @transform_1(%arg0: i32, %arg1: i32) -> (i32, i32) {
    %c0_i32 = arith.constant 0 : i32
    %c0_i32_0 = arith.constant 0 : i32
    return %c0_i32, %arg1 : i32, i32
  }
  func.func @transform_2(%arg0: i32, %arg1: i32) -> (i32, i32) {
    %c0_i32 = arith.constant 0 : i32
    return %arg0, %arg1 : i32, i32
  }
}

module attributes {stable_mosaic.version = 11 : i64} {
  func.func @_bias_relu_stats_kernel(%arg0: i32, %arg1: memref<8x128xbf16, #tpu.memory_space<vmem>>, %arg2: memref<1x128xf32, #tpu.memory_space<vmem>>, %arg3: memref<1x2x128xf32, #tpu.memory_space<vmem>>) attributes {dimension_semantics = [#tpu.dimension_semantics<parallel>], iteration_bounds = array<i64: 1>, scalar_prefetch = 0 : i64, scratch_operands = 0 : i64, tpu.core_type = #tpu.core_type<tc>, window_params = [{transform_indices = @transform_0, window_bounds = array<i64: 8, 128>}, {pipeline_mode = #tpu.pipeline_mode<synchronous>, transform_indices = @transform_1, window_bounds = array<i64: 1, 128>}, {transform_indices = @transform_2, window_bounds = array<i64: 1, 2, 128>}]} {
    %c0 = arith.constant 0 : index
    %c0_0 = arith.constant 0 : index
    %0 = vector.load %arg1[%c0, %c0_0] : memref<8x128xbf16, #tpu.memory_space<vmem>>, vector<8x128xbf16>
    %1 = arith.extf %0 : vector<8x128xbf16> to vector<8x128xf32>
    %c0_1 = arith.constant 0 : index
    %c0_2 = arith.constant 0 : index
    %2 = vector.load %arg2[%c0_1, %c0_2] : memref<1x128xf32, #tpu.memory_space<vmem>>, vector<1x128xf32>
    %3 = vector.broadcast %2 : vector<1x128xf32> to vector<8x128xf32>
    %4 = arith.addf %1, %3 : vector<8x128xf32>
    %cst = arith.constant 0.000000e+00 : f32
    %5 = vector.broadcast %cst : f32 to vector<8x128xf32>
    %6 = arith.maximumf %4, %5 : vector<8x128xf32>
    %cst_3 = arith.constant dense<0.000000e+00> : vector<128xf32>
    %7 = vector.multi_reduction <add>, %6, %cst_3 [0] : vector<8x128xf32> to vector<128xf32>
    %8 = vector.shape_cast %7 : vector<128xf32> to vector<1x128xf32>
    %cst_4 = arith.constant 1.250000e-01 : f32
    %9 = vector.broadcast %cst_4 : f32 to vector<1x128xf32>
    %10 = arith.mulf %8, %9 : vector<1x128xf32>
    %11 = vector.broadcast %10 : vector<1x128xf32> to vector<8x128xf32>
    %12 = arith.subf %6, %11 : vector<8x128xf32>
    %13 = arith.mulf %12, %12 : vector<8x128xf32>
    %cst_5 = arith.constant dense<0.000000e+00> : vector<128xf32>
    %14 = vector.multi_reduction <add>, %13, %cst_5 [0] : vector<8x128xf32> to vector<128xf32>
    %15 = vector.shape_cast %14 : vector<128xf32> to vector<1x128xf32>
    %16 = tpu.concatenate %8, %15 in 0 : vector<1x128xf32>, vector<1x128xf32> -> vector<2x128xf32>
    %17 = vector.shape_cast %16 : vector<2x128xf32> to vector<1x2x128xf32>
    %c0_6 = arith.constant 0 : index
    %c0_7 = arith.constant 0 : index
    %c0_8 = arith.constant 0 : index
    %18 = vector.load %arg3[%c0_6, %c0_7, %c0_8] : memref<1x2x128xf32, #tpu.memory_space<vmem>>, vector<1x2x128xf32>
    tpu.vector_store %arg3[%c0_6, %c0_7, %c0_8], %17 {strides = array<i32>} : memref<1x2x128xf32, #tpu.memory_space<vmem>>, vector<1x2x128xf32>,
    return
  }
  func.func @transform_0(%arg0: i32) -> (i32, i32) {
    %c0_i32 = arith.constant 0 : i32
    %c0_i32_0 = arith.constant 0 : i32
    return %arg0, %c0_i32 : i32, i32
  }
  func.func @transform_1(%arg0: i32) -> (i32, i32) {
    %c0_i32 = arith.constant 0 : i32
    %c0_i32_0 = arith.constant 0 : i32
    %c0_i32_1 = arith.constant 0 : i32
    return %c0_i32, %c0_i32_0 : i32, i32
  }
  func.func @transform_2(%arg0: i32) -> (i32, i32, i32) {
    %c0_i32 = arith.constant 0 : i32
    %c0_i32_0 = arith.constant 0 : i32
    %c0_i32_1 = arith.constant 0 : i32
    return %arg0, %c0_i32, %c0_i32_0 : i32, i32, i32
  }
}

module attributes {stable_mosaic.version = 11 : i64} {
  func.func @_bias_act_affine_kernel(%arg0: i32, %arg1: memref<8x128xbf16, #tpu.memory_space<vmem>>, %arg2: memref<1x128xf32, #tpu.memory_space<vmem>>, %arg3: memref<1x128xf32, #tpu.memory_space<vmem>>, %arg4: memref<1x128xf32, #tpu.memory_space<vmem>>, %arg5: memref<8x128xbf16, #tpu.memory_space<vmem>>) attributes {dimension_semantics = [#tpu.dimension_semantics<parallel>], iteration_bounds = array<i64: 1>, scalar_prefetch = 0 : i64, scratch_operands = 0 : i64, tpu.core_type = #tpu.core_type<tc>, window_params = [{transform_indices = @transform_0, window_bounds = array<i64: 8, 128>}, {pipeline_mode = #tpu.pipeline_mode<synchronous>, transform_indices = @transform_1, window_bounds = array<i64: 1, 128>}, {pipeline_mode = #tpu.pipeline_mode<synchronous>, transform_indices = @transform_2, window_bounds = array<i64: 1, 128>}, {pipeline_mode = #tpu.pipeline_mode<synchronous>, transform_indices = @transform_3, window_bounds = array<i64: 1, 128>}, {transform_indices = @transform_4, window_bounds = array<i64: 8, 128>}]} {
    %c0 = arith.constant 0 : index
    %c0_0 = arith.constant 0 : index
    %0 = vector.load %arg1[%c0, %c0_0] : memref<8x128xbf16, #tpu.memory_space<vmem>>, vector<8x128xbf16>
    %1 = arith.extf %0 : vector<8x128xbf16> to vector<8x128xf32>
    %c0_1 = arith.constant 0 : index
    %c0_2 = arith.constant 0 : index
    %2 = vector.load %arg2[%c0_1, %c0_2] : memref<1x128xf32, #tpu.memory_space<vmem>>, vector<1x128xf32>
    %3 = vector.broadcast %2 : vector<1x128xf32> to vector<8x128xf32>
    %4 = arith.addf %1, %3 : vector<8x128xf32>
    %cst = arith.constant 0.000000e+00 : f32
    %5 = vector.broadcast %cst : f32 to vector<8x128xf32>
    %6 = arith.maximumf %4, %5 : vector<8x128xf32>
    %c0_3 = arith.constant 0 : index
    %c0_4 = arith.constant 0 : index
    %7 = vector.load %arg3[%c0_3, %c0_4] : memref<1x128xf32, #tpu.memory_space<vmem>>, vector<1x128xf32>
    %8 = vector.broadcast %7 : vector<1x128xf32> to vector<8x128xf32>
    %9 = arith.mulf %6, %8 : vector<8x128xf32>
    %c0_5 = arith.constant 0 : index
    %c0_6 = arith.constant 0 : index
    %10 = vector.load %arg4[%c0_5, %c0_6] : memref<1x128xf32, #tpu.memory_space<vmem>>, vector<1x128xf32>
    %11 = vector.broadcast %10 : vector<1x128xf32> to vector<8x128xf32>
    %12 = arith.addf %9, %11 : vector<8x128xf32>
    %13 = arith.truncf %12 : vector<8x128xf32> to vector<8x128xbf16>
    %c0_7 = arith.constant 0 : index
    %c0_8 = arith.constant 0 : index
    %14 = vector.load %arg5[%c0_7, %c0_8] : memref<8x128xbf16, #tpu.memory_space<vmem>>, vector<8x128xbf16>
    tpu.vector_store %arg5[%c0_7, %c0_8], %13 {strides = array<i32>} : memref<8x128xbf16, #tpu.memory_space<vmem>>, vector<8x128xbf16>,
    return
  }
  func.func @transform_0(%arg0: i32) -> (i32, i32) {
    %c0_i32 = arith.constant 0 : i32
    %c0_i32_0 = arith.constant 0 : i32
    return %arg0, %c0_i32 : i32, i32
  }
  func.func @transform_1(%arg0: i32) -> (i32, i32) {
    %c0_i32 = arith.constant 0 : i32
    %c0_i32_0 = arith.constant 0 : i32
    %c0_i32_1 = arith.constant 0 : i32
    return %c0_i32, %c0_i32_0 : i32, i32
  }
  func.func @transform_2(%arg0: i32) -> (i32, i32) {
    %c0_i32 = arith.constant 0 : i32
    %c0_i32_0 = arith.constant 0 : i32
    %c0_i32_1 = arith.constant 0 : i32
    return %c0_i32, %c0_i32_0 : i32, i32
  }
  func.func @transform_3(%arg0: i32) -> (i32, i32) {
    %c0_i32 = arith.constant 0 : i32
    %c0_i32_0 = arith.constant 0 : i32
    %c0_i32_1 = arith.constant 0 : i32
    return %c0_i32, %c0_i32_0 : i32, i32
  }
  func.func @transform_4(%arg0: i32) -> (i32, i32) {
    %c0_i32 = arith.constant 0 : i32
    %c0_i32_0 = arith.constant 0 : i32
    return %arg0, %c0_i32 : i32, i32
  }
}

module attributes {stable_mosaic.version = 11 : i64} {
  func.func @_matmul_kernel(%arg0: i32, %arg1: i32, %arg2: memref<16x32xbf16, #tpu.memory_space<vmem>>, %arg3: memref<32x256xbf16, #tpu.memory_space<vmem>>, %arg4: memref<16x256xbf16, #tpu.memory_space<vmem>>) attributes {dimension_semantics = [#tpu.dimension_semantics<parallel>, #tpu.dimension_semantics<parallel>], iteration_bounds = array<i64: 2, 1>, scalar_prefetch = 0 : i64, scratch_operands = 0 : i64, tpu.core_type = #tpu.core_type<tc>, window_params = [{transform_indices = @transform_0, window_bounds = array<i64: 16, 32>}, {transform_indices = @transform_1, window_bounds = array<i64: 32, 256>}, {transform_indices = @transform_2, window_bounds = array<i64: 16, 256>}]} {
    %c0 = arith.constant 0 : index
    %c0_0 = arith.constant 0 : index
    %0 = vector.load %arg2[%c0, %c0_0] : memref<16x32xbf16, #tpu.memory_space<vmem>>, vector<16x32xbf16>
    %c0_1 = arith.constant 0 : index
    %c0_2 = arith.constant 0 : index
    %1 = vector.load %arg3[%c0_1, %c0_2] : memref<32x256xbf16, #tpu.memory_space<vmem>>, vector<32x256xbf16>
    %cst = arith.constant dense<0.000000e+00> : vector<16x256xf32>
    %2 = tpu.matmul %0, %1, %cst {dimension_numbers = #tpu.dot_dimension_numbers<[1], [0], [0], [1], [0, 0, 1, 1], [], []>} : vector<16x32xbf16>, vector<32x256xbf16>, vector<16x256xf32> -> vector<16x256xf32>
    %3 = arith.truncf %2 : vector<16x256xf32> to vector<16x256xbf16>
    %c0_3 = arith.constant 0 : index
    %c0_4 = arith.constant 0 : index
    %4 = vector.load %arg4[%c0_3, %c0_4] : memref<16x256xbf16, #tpu.memory_space<vmem>>, vector<16x256xbf16>
    tpu.vector_store %arg4[%c0_3, %c0_4], %3 {strides = array<i32>} : memref<16x256xbf16, #tpu.memory_space<vmem>>, vector<16x256xbf16>,
    return
  }
  func.func @transform_0(%arg0: i32, %arg1: i32) -> (i32, i32) {
    %c0_i32 = arith.constant 0 : i32
    %c0_i32_0 = arith.constant 0 : i32
    return %arg0, %c0_i32 : i32, i32
  }
  func.func @transform_1(%arg0: i32, %arg1: i32) -> (i32, i32) {
    %c0_i32 = arith.constant 0 : i32
    %c0_i32_0 = arith.constant 0 : i32
    return %c0_i32, %arg1 : i32, i32
  }
  func.func @transform_2(%arg0: i32, %arg1: i32) -> (i32, i32) {
    %c0_i32 = arith.constant 0 : i32
    return %arg0, %arg1 : i32, i32
  }
}

module attributes {stable_mosaic.version = 11 : i64} {
  func.func @_bias_relu_stats_kernel(%arg0: i32, %arg1: memref<16x128xbf16, #tpu.memory_space<vmem>>, %arg2: memref<1x128xf32, #tpu.memory_space<vmem>>, %arg3: memref<1x2x128xf32, #tpu.memory_space<vmem>>) attributes {dimension_semantics = [#tpu.dimension_semantics<parallel>], iteration_bounds = array<i64: 1>, scalar_prefetch = 0 : i64, scratch_operands = 0 : i64, tpu.core_type = #tpu.core_type<tc>, window_params = [{transform_indices = @transform_0, window_bounds = array<i64: 16, 128>}, {pipeline_mode = #tpu.pipeline_mode<synchronous>, transform_indices = @transform_1, window_bounds = array<i64: 1, 128>}, {transform_indices = @transform_2, window_bounds = array<i64: 1, 2, 128>}]} {
    %c0 = arith.constant 0 : index
    %c0_0 = arith.constant 0 : index
    %0 = vector.load %arg1[%c0, %c0_0] : memref<16x128xbf16, #tpu.memory_space<vmem>>, vector<16x128xbf16>
    %1 = arith.extf %0 : vector<16x128xbf16> to vector<16x128xf32>
    %c0_1 = arith.constant 0 : index
    %c0_2 = arith.constant 0 : index
    %2 = vector.load %arg2[%c0_1, %c0_2] : memref<1x128xf32, #tpu.memory_space<vmem>>, vector<1x128xf32>
    %3 = vector.broadcast %2 : vector<1x128xf32> to vector<16x128xf32>
    %4 = arith.addf %1, %3 : vector<16x128xf32>
    %cst = arith.constant 0.000000e+00 : f32
    %5 = vector.broadcast %cst : f32 to vector<16x128xf32>
    %6 = arith.maximumf %4, %5 : vector<16x128xf32>
    %cst_3 = arith.constant dense<0.000000e+00> : vector<128xf32>
    %7 = vector.multi_reduction <add>, %6, %cst_3 [0] : vector<16x128xf32> to vector<128xf32>
    %8 = vector.shape_cast %7 : vector<128xf32> to vector<1x128xf32>
    %cst_4 = arith.constant 6.250000e-02 : f32
    %9 = vector.broadcast %cst_4 : f32 to vector<1x128xf32>
    %10 = arith.mulf %8, %9 : vector<1x128xf32>
    %11 = vector.broadcast %10 : vector<1x128xf32> to vector<16x128xf32>
    %12 = arith.subf %6, %11 : vector<16x128xf32>
    %13 = arith.mulf %12, %12 : vector<16x128xf32>
    %cst_5 = arith.constant dense<0.000000e+00> : vector<128xf32>
    %14 = vector.multi_reduction <add>, %13, %cst_5 [0] : vector<16x128xf32> to vector<128xf32>
    %15 = vector.shape_cast %14 : vector<128xf32> to vector<1x128xf32>
    %16 = tpu.concatenate %8, %15 in 0 : vector<1x128xf32>, vector<1x128xf32> -> vector<2x128xf32>
    %17 = vector.shape_cast %16 : vector<2x128xf32> to vector<1x2x128xf32>
    %c0_6 = arith.constant 0 : index
    %c0_7 = arith.constant 0 : index
    %c0_8 = arith.constant 0 : index
    %18 = vector.load %arg3[%c0_6, %c0_7, %c0_8] : memref<1x2x128xf32, #tpu.memory_space<vmem>>, vector<1x2x128xf32>
    tpu.vector_store %arg3[%c0_6, %c0_7, %c0_8], %17 {strides = array<i32>} : memref<1x2x128xf32, #tpu.memory_space<vmem>>, vector<1x2x128xf32>,
    return
  }
  func.func @transform_0(%arg0: i32) -> (i32, i32) {
    %c0_i32 = arith.constant 0 : i32
    %c0_i32_0 = arith.constant 0 : i32
    return %arg0, %c0_i32 : i32, i32
  }
  func.func @transform_1(%arg0: i32) -> (i32, i32) {
    %c0_i32 = arith.constant 0 : i32
    %c0_i32_0 = arith.constant 0 : i32
    %c0_i32_1 = arith.constant 0 : i32
    return %c0_i32, %c0_i32_0 : i32, i32
  }
  func.func @transform_2(%arg0: i32) -> (i32, i32, i32) {
    %c0_i32 = arith.constant 0 : i32
    %c0_i32_0 = arith.constant 0 : i32
    %c0_i32_1 = arith.constant 0 : i32
    return %arg0, %c0_i32, %c0_i32_0 : i32, i32, i32
  }
}

module attributes {stable_mosaic.version = 11 : i64} {
  func.func @_bias_act_affine_kernel(%arg0: i32, %arg1: memref<16x128xbf16, #tpu.memory_space<vmem>>, %arg2: memref<1x128xf32, #tpu.memory_space<vmem>>, %arg3: memref<1x128xf32, #tpu.memory_space<vmem>>, %arg4: memref<1x128xf32, #tpu.memory_space<vmem>>, %arg5: memref<16x128xbf16, #tpu.memory_space<vmem>>) attributes {dimension_semantics = [#tpu.dimension_semantics<parallel>], iteration_bounds = array<i64: 1>, scalar_prefetch = 0 : i64, scratch_operands = 0 : i64, tpu.core_type = #tpu.core_type<tc>, window_params = [{transform_indices = @transform_0, window_bounds = array<i64: 16, 128>}, {pipeline_mode = #tpu.pipeline_mode<synchronous>, transform_indices = @transform_1, window_bounds = array<i64: 1, 128>}, {pipeline_mode = #tpu.pipeline_mode<synchronous>, transform_indices = @transform_2, window_bounds = array<i64: 1, 128>}, {pipeline_mode = #tpu.pipeline_mode<synchronous>, transform_indices = @transform_3, window_bounds = array<i64: 1, 128>}, {transform_indices = @transform_4, window_bounds = array<i64: 16, 128>}]} {
    %c0 = arith.constant 0 : index
    %c0_0 = arith.constant 0 : index
    %0 = vector.load %arg1[%c0, %c0_0] : memref<16x128xbf16, #tpu.memory_space<vmem>>, vector<16x128xbf16>
    %1 = arith.extf %0 : vector<16x128xbf16> to vector<16x128xf32>
    %c0_1 = arith.constant 0 : index
    %c0_2 = arith.constant 0 : index
    %2 = vector.load %arg2[%c0_1, %c0_2] : memref<1x128xf32, #tpu.memory_space<vmem>>, vector<1x128xf32>
    %3 = vector.broadcast %2 : vector<1x128xf32> to vector<16x128xf32>
    %4 = arith.addf %1, %3 : vector<16x128xf32>
    %cst = arith.constant 0.000000e+00 : f32
    %5 = vector.broadcast %cst : f32 to vector<16x128xf32>
    %6 = arith.maximumf %4, %5 : vector<16x128xf32>
    %c0_3 = arith.constant 0 : index
    %c0_4 = arith.constant 0 : index
    %7 = vector.load %arg3[%c0_3, %c0_4] : memref<1x128xf32, #tpu.memory_space<vmem>>, vector<1x128xf32>
    %8 = vector.broadcast %7 : vector<1x128xf32> to vector<16x128xf32>
    %9 = arith.mulf %6, %8 : vector<16x128xf32>
    %c0_5 = arith.constant 0 : index
    %c0_6 = arith.constant 0 : index
    %10 = vector.load %arg4[%c0_5, %c0_6] : memref<1x128xf32, #tpu.memory_space<vmem>>, vector<1x128xf32>
    %11 = vector.broadcast %10 : vector<1x128xf32> to vector<16x128xf32>
    %12 = arith.addf %9, %11 : vector<16x128xf32>
    %13 = arith.truncf %12 : vector<16x128xf32> to vector<16x128xbf16>
    %c0_7 = arith.constant 0 : index
    %c0_8 = arith.constant 0 : index
    %14 = vector.load %arg5[%c0_7, %c0_8] : memref<16x128xbf16, #tpu.memory_space<vmem>>, vector<16x128xbf16>
    tpu.vector_store %arg5[%c0_7, %c0_8], %13 {strides = array<i32>} : memref<16x128xbf16, #tpu.memory_space<vmem>>, vector<16x128xbf16>,
    return
  }
  func.func @transform_0(%arg0: i32) -> (i32, i32) {
    %c0_i32 = arith.constant 0 : i32
    %c0_i32_0 = arith.constant 0 : i32
    return %arg0, %c0_i32 : i32, i32
  }
  func.func @transform_1(%arg0: i32) -> (i32, i32) {
    %c0_i32 = arith.constant 0 : i32
    %c0_i32_0 = arith.constant 0 : i32
    %c0_i32_1 = arith.constant 0 : i32
    return %c0_i32, %c0_i32_0 : i32, i32
  }
  func.func @transform_2(%arg0: i32) -> (i32, i32) {
    %c0_i32 = arith.constant 0 : i32
    %c0_i32_0 = arith.constant 0 : i32
    %c0_i32_1 = arith.constant 0 : i32
    return %c0_i32, %c0_i32_0 : i32, i32
  }
  func.func @transform_3(%arg0: i32) -> (i32, i32) {
    %c0_i32 = arith.constant 0 : i32
    %c0_i32_0 = arith.constant 0 : i32
    %c0_i32_1 = arith.constant 0 : i32
    return %c0_i32, %c0_i32_0 : i32, i32
  }
  func.func @transform_4(%arg0: i32) -> (i32, i32) {
    %c0_i32 = arith.constant 0 : i32
    %c0_i32_0 = arith.constant 0 : i32
    return %arg0, %c0_i32 : i32, i32
  }
}

module attributes {stable_mosaic.version = 11 : i64} {
  func.func @_matmul_kernel(%arg0: i32, %arg1: i32, %arg2: memref<64x16xbf16, #tpu.memory_space<vmem>>, %arg3: memref<16x128xbf16, #tpu.memory_space<vmem>>, %arg4: memref<64x128xbf16, #tpu.memory_space<vmem>>) attributes {dimension_semantics = [#tpu.dimension_semantics<parallel>, #tpu.dimension_semantics<parallel>], iteration_bounds = array<i64: 2, 1>, scalar_prefetch = 0 : i64, scratch_operands = 0 : i64, tpu.core_type = #tpu.core_type<tc>, window_params = [{transform_indices = @transform_0, window_bounds = array<i64: 64, 16>}, {transform_indices = @transform_1, window_bounds = array<i64: 16, 128>}, {transform_indices = @transform_2, window_bounds = array<i64: 64, 128>}]} {
    %c0 = arith.constant 0 : index
    %c0_0 = arith.constant 0 : index
    %0 = vector.load %arg2[%c0, %c0_0] : memref<64x16xbf16, #tpu.memory_space<vmem>>, vector<64x16xbf16>
    %c0_1 = arith.constant 0 : index
    %c0_2 = arith.constant 0 : index
    %1 = vector.load %arg3[%c0_1, %c0_2] : memref<16x128xbf16, #tpu.memory_space<vmem>>, vector<16x128xbf16>
    %cst = arith.constant dense<0.000000e+00> : vector<64x128xf32>
    %2 = tpu.matmul %0, %1, %cst {dimension_numbers = #tpu.dot_dimension_numbers<[1], [0], [0], [1], [0, 0, 1, 1], [], []>} : vector<64x16xbf16>, vector<16x128xbf16>, vector<64x128xf32> -> vector<64x128xf32>
    %3 = arith.truncf %2 : vector<64x128xf32> to vector<64x128xbf16>
    %c0_3 = arith.constant 0 : index
    %c0_4 = arith.constant 0 : index
    %4 = vector.load %arg4[%c0_3, %c0_4] : memref<64x128xbf16, #tpu.memory_space<vmem>>, vector<64x128xbf16>
    tpu.vector_store %arg4[%c0_3, %c0_4], %3 {strides = array<i32>} : memref<64x128xbf16, #tpu.memory_space<vmem>>, vector<64x128xbf16>,
    return
  }
  func.func @transform_0(%arg0: i32, %arg1: i32) -> (i32, i32) {
    %c0_i32 = arith.constant 0 : i32
    %c0_i32_0 = arith.constant 0 : i32
    return %arg0, %c0_i32 : i32, i32
  }
  func.func @transform_1(%arg0: i32, %arg1: i32) -> (i32, i32) {
    %c0_i32 = arith.constant 0 : i32
    %c0_i32_0 = arith.constant 0 : i32
    return %c0_i32, %arg1 : i32, i32
  }
  func.func @transform_2(%arg0: i32, %arg1: i32) -> (i32, i32) {
    %c0_i32 = arith.constant 0 : i32
    return %arg0, %arg1 : i32, i32
  }
}

module attributes {stable_mosaic.version = 11 : i64} {
  func.func @_bias_relu_stats_kernel(%arg0: i32, %arg1: memref<16x128xbf16, #tpu.memory_space<vmem>>, %arg2: memref<1x128xf32, #tpu.memory_space<vmem>>, %arg3: memref<1x2x128xf32, #tpu.memory_space<vmem>>) attributes {dimension_semantics = [#tpu.dimension_semantics<parallel>], iteration_bounds = array<i64: 2>, scalar_prefetch = 0 : i64, scratch_operands = 0 : i64, tpu.core_type = #tpu.core_type<tc>, window_params = [{transform_indices = @transform_0, window_bounds = array<i64: 16, 128>}, {pipeline_mode = #tpu.pipeline_mode<synchronous>, transform_indices = @transform_1, window_bounds = array<i64: 1, 128>}, {transform_indices = @transform_2, window_bounds = array<i64: 1, 2, 128>}]} {
    %c0 = arith.constant 0 : index
    %c0_0 = arith.constant 0 : index
    %0 = vector.load %arg1[%c0, %c0_0] : memref<16x128xbf16, #tpu.memory_space<vmem>>, vector<16x128xbf16>
    %1 = arith.extf %0 : vector<16x128xbf16> to vector<16x128xf32>
    %c0_1 = arith.constant 0 : index
    %c0_2 = arith.constant 0 : index
    %2 = vector.load %arg2[%c0_1, %c0_2] : memref<1x128xf32, #tpu.memory_space<vmem>>, vector<1x128xf32>
    %3 = vector.broadcast %2 : vector<1x128xf32> to vector<16x128xf32>
    %4 = arith.addf %1, %3 : vector<16x128xf32>
    %cst = arith.constant 0.000000e+00 : f32
    %5 = vector.broadcast %cst : f32 to vector<16x128xf32>
    %6 = arith.maximumf %4, %5 : vector<16x128xf32>
    %cst_3 = arith.constant dense<0.000000e+00> : vector<128xf32>
    %7 = vector.multi_reduction <add>, %6, %cst_3 [0] : vector<16x128xf32> to vector<128xf32>
    %8 = vector.shape_cast %7 : vector<128xf32> to vector<1x128xf32>
    %cst_4 = arith.constant 6.250000e-02 : f32
    %9 = vector.broadcast %cst_4 : f32 to vector<1x128xf32>
    %10 = arith.mulf %8, %9 : vector<1x128xf32>
    %11 = vector.broadcast %10 : vector<1x128xf32> to vector<16x128xf32>
    %12 = arith.subf %6, %11 : vector<16x128xf32>
    %13 = arith.mulf %12, %12 : vector<16x128xf32>
    %cst_5 = arith.constant dense<0.000000e+00> : vector<128xf32>
    %14 = vector.multi_reduction <add>, %13, %cst_5 [0] : vector<16x128xf32> to vector<128xf32>
    %15 = vector.shape_cast %14 : vector<128xf32> to vector<1x128xf32>
    %16 = tpu.concatenate %8, %15 in 0 : vector<1x128xf32>, vector<1x128xf32> -> vector<2x128xf32>
    %17 = vector.shape_cast %16 : vector<2x128xf32> to vector<1x2x128xf32>
    %c0_6 = arith.constant 0 : index
    %c0_7 = arith.constant 0 : index
    %c0_8 = arith.constant 0 : index
    %18 = vector.load %arg3[%c0_6, %c0_7, %c0_8] : memref<1x2x128xf32, #tpu.memory_space<vmem>>, vector<1x2x128xf32>
    tpu.vector_store %arg3[%c0_6, %c0_7, %c0_8], %17 {strides = array<i32>} : memref<1x2x128xf32, #tpu.memory_space<vmem>>, vector<1x2x128xf32>,
    return
  }
  func.func @transform_0(%arg0: i32) -> (i32, i32) {
    %c0_i32 = arith.constant 0 : i32
    %c0_i32_0 = arith.constant 0 : i32
    return %arg0, %c0_i32 : i32, i32
  }
  func.func @transform_1(%arg0: i32) -> (i32, i32) {
    %c0_i32 = arith.constant 0 : i32
    %c0_i32_0 = arith.constant 0 : i32
    %c0_i32_1 = arith.constant 0 : i32
    return %c0_i32, %c0_i32_0 : i32, i32
  }
  func.func @transform_2(%arg0: i32) -> (i32, i32, i32) {
    %c0_i32 = arith.constant 0 : i32
    %c0_i32_0 = arith.constant 0 : i32
    %c0_i32_1 = arith.constant 0 : i32
    return %arg0, %c0_i32, %c0_i32_0 : i32, i32, i32
  }
}

module attributes {stable_mosaic.version = 11 : i64} {
  func.func @_bias_act_affine_kernel(%arg0: i32, %arg1: memref<16x128xbf16, #tpu.memory_space<vmem>>, %arg2: memref<1x128xf32, #tpu.memory_space<vmem>>, %arg3: memref<1x128xf32, #tpu.memory_space<vmem>>, %arg4: memref<1x128xf32, #tpu.memory_space<vmem>>, %arg5: memref<16x128xbf16, #tpu.memory_space<vmem>>) attributes {dimension_semantics = [#tpu.dimension_semantics<parallel>], iteration_bounds = array<i64: 2>, scalar_prefetch = 0 : i64, scratch_operands = 0 : i64, tpu.core_type = #tpu.core_type<tc>, window_params = [{transform_indices = @transform_0, window_bounds = array<i64: 16, 128>}, {pipeline_mode = #tpu.pipeline_mode<synchronous>, transform_indices = @transform_1, window_bounds = array<i64: 1, 128>}, {pipeline_mode = #tpu.pipeline_mode<synchronous>, transform_indices = @transform_2, window_bounds = array<i64: 1, 128>}, {pipeline_mode = #tpu.pipeline_mode<synchronous>, transform_indices = @transform_3, window_bounds = array<i64: 1, 128>}, {transform_indices = @transform_4, window_bounds = array<i64: 16, 128>}]} {
    %c0 = arith.constant 0 : index
    %c0_0 = arith.constant 0 : index
    %0 = vector.load %arg1[%c0, %c0_0] : memref<16x128xbf16, #tpu.memory_space<vmem>>, vector<16x128xbf16>
    %1 = arith.extf %0 : vector<16x128xbf16> to vector<16x128xf32>
    %c0_1 = arith.constant 0 : index
    %c0_2 = arith.constant 0 : index
    %2 = vector.load %arg2[%c0_1, %c0_2] : memref<1x128xf32, #tpu.memory_space<vmem>>, vector<1x128xf32>
    %3 = vector.broadcast %2 : vector<1x128xf32> to vector<16x128xf32>
    %4 = arith.addf %1, %3 : vector<16x128xf32>
    %cst = arith.constant 0.000000e+00 : f32
    %5 = vector.broadcast %cst : f32 to vector<16x128xf32>
    %6 = arith.maximumf %4, %5 : vector<16x128xf32>
    %c0_3 = arith.constant 0 : index
    %c0_4 = arith.constant 0 : index
    %7 = vector.load %arg3[%c0_3, %c0_4] : memref<1x128xf32, #tpu.memory_space<vmem>>, vector<1x128xf32>
    %8 = vector.broadcast %7 : vector<1x128xf32> to vector<16x128xf32>
    %9 = arith.mulf %6, %8 : vector<16x128xf32>
    %c0_5 = arith.constant 0 : index
    %c0_6 = arith.constant 0 : index
    %10 = vector.load %arg4[%c0_5, %c0_6] : memref<1x128xf32, #tpu.memory_space<vmem>>, vector<1x128xf32>
    %11 = vector.broadcast %10 : vector<1x128xf32> to vector<16x128xf32>
    %12 = arith.addf %9, %11 : vector<16x128xf32>
    %13 = arith.truncf %12 : vector<16x128xf32> to vector<16x128xbf16>
    %c0_7 = arith.constant 0 : index
    %c0_8 = arith.constant 0 : index
    %14 = vector.load %arg5[%c0_7, %c0_8] : memref<16x128xbf16, #tpu.memory_space<vmem>>, vector<16x128xbf16>
    tpu.vector_store %arg5[%c0_7, %c0_8], %13 {strides = array<i32>} : memref<16x128xbf16, #tpu.memory_space<vmem>>, vector<16x128xbf16>,
    return
  }
  func.func @transform_0(%arg0: i32) -> (i32, i32) {
    %c0_i32 = arith.constant 0 : i32
    %c0_i32_0 = arith.constant 0 : i32
    return %arg0, %c0_i32 : i32, i32
  }
  func.func @transform_1(%arg0: i32) -> (i32, i32) {
    %c0_i32 = arith.constant 0 : i32
    %c0_i32_0 = arith.constant 0 : i32
    %c0_i32_1 = arith.constant 0 : i32
    return %c0_i32, %c0_i32_0 : i32, i32
  }
  func.func @transform_2(%arg0: i32) -> (i32, i32) {
    %c0_i32 = arith.constant 0 : i32
    %c0_i32_0 = arith.constant 0 : i32
    %c0_i32_1 = arith.constant 0 : i32
    return %c0_i32, %c0_i32_0 : i32, i32
  }
  func.func @transform_3(%arg0: i32) -> (i32, i32) {
    %c0_i32 = arith.constant 0 : i32
    %c0_i32_0 = arith.constant 0 : i32
    %c0_i32_1 = arith.constant 0 : i32
    return %c0_i32, %c0_i32_0 : i32, i32
  }
  func.func @transform_4(%arg0: i32) -> (i32, i32) {
    %c0_i32 = arith.constant 0 : i32
    %c0_i32_0 = arith.constant 0 : i32
    return %arg0, %c0_i32 : i32, i32
  }
}

module attributes {stable_mosaic.version = 11 : i64} {
  func.func @_matmul_kernel(%arg0: i32, %arg1: i32, %arg2: memref<256x8xbf16, #tpu.memory_space<vmem>>, %arg3: memref<8x128xbf16, #tpu.memory_space<vmem>>, %arg4: memref<256x128xbf16, #tpu.memory_space<vmem>>) attributes {dimension_semantics = [#tpu.dimension_semantics<parallel>, #tpu.dimension_semantics<parallel>], iteration_bounds = array<i64: 2, 1>, scalar_prefetch = 0 : i64, scratch_operands = 0 : i64, tpu.core_type = #tpu.core_type<tc>, window_params = [{transform_indices = @transform_0, window_bounds = array<i64: 256, 8>}, {transform_indices = @transform_1, window_bounds = array<i64: 8, 128>}, {transform_indices = @transform_2, window_bounds = array<i64: 256, 128>}]} {
    %c0 = arith.constant 0 : index
    %c0_0 = arith.constant 0 : index
    %0 = vector.load %arg2[%c0, %c0_0] : memref<256x8xbf16, #tpu.memory_space<vmem>>, vector<256x8xbf16>
    %c0_1 = arith.constant 0 : index
    %c0_2 = arith.constant 0 : index
    %1 = vector.load %arg3[%c0_1, %c0_2] : memref<8x128xbf16, #tpu.memory_space<vmem>>, vector<8x128xbf16>
    %cst = arith.constant dense<0.000000e+00> : vector<256x128xf32>
    %2 = tpu.matmul %0, %1, %cst {dimension_numbers = #tpu.dot_dimension_numbers<[1], [0], [0], [1], [0, 0, 1, 1], [], []>} : vector<256x8xbf16>, vector<8x128xbf16>, vector<256x128xf32> -> vector<256x128xf32>
    %3 = arith.truncf %2 : vector<256x128xf32> to vector<256x128xbf16>
    %c0_3 = arith.constant 0 : index
    %c0_4 = arith.constant 0 : index
    %4 = vector.load %arg4[%c0_3, %c0_4] : memref<256x128xbf16, #tpu.memory_space<vmem>>, vector<256x128xbf16>
    tpu.vector_store %arg4[%c0_3, %c0_4], %3 {strides = array<i32>} : memref<256x128xbf16, #tpu.memory_space<vmem>>, vector<256x128xbf16>,
    return
  }
  func.func @transform_0(%arg0: i32, %arg1: i32) -> (i32, i32) {
    %c0_i32 = arith.constant 0 : i32
    %c0_i32_0 = arith.constant 0 : i32
    return %arg0, %c0_i32 : i32, i32
  }
  func.func @transform_1(%arg0: i32, %arg1: i32) -> (i32, i32) {
    %c0_i32 = arith.constant 0 : i32
    %c0_i32_0 = arith.constant 0 : i32
    return %c0_i32, %arg1 : i32, i32
  }
  func.func @transform_2(%arg0: i32, %arg1: i32) -> (i32, i32) {
    %c0_i32 = arith.constant 0 : i32
    return %arg0, %arg1 : i32, i32
  }
}

module attributes {stable_mosaic.version = 11 : i64} {
  func.func @_bias_act_affine_kernel(%arg0: i32, %arg1: memref<16x384xbf16, #tpu.memory_space<vmem>>, %arg2: memref<1x384xf32, #tpu.memory_space<vmem>>, %arg3: memref<1x384xf32, #tpu.memory_space<vmem>>, %arg4: memref<1x384xf32, #tpu.memory_space<vmem>>, %arg5: memref<16x384xf32, #tpu.memory_space<vmem>>) attributes {dimension_semantics = [#tpu.dimension_semantics<parallel>], iteration_bounds = array<i64: 1>, scalar_prefetch = 0 : i64, scratch_operands = 0 : i64, tpu.core_type = #tpu.core_type<tc>, window_params = [{transform_indices = @transform_0, window_bounds = array<i64: 16, 384>}, {pipeline_mode = #tpu.pipeline_mode<synchronous>, transform_indices = @transform_1, window_bounds = array<i64: 1, 384>}, {pipeline_mode = #tpu.pipeline_mode<synchronous>, transform_indices = @transform_2, window_bounds = array<i64: 1, 384>}, {pipeline_mode = #tpu.pipeline_mode<synchronous>, transform_indices = @transform_3, window_bounds = array<i64: 1, 384>}, {transform_indices = @transform_4, window_bounds = array<i64: 16, 384>}]} {
    %c0 = arith.constant 0 : index
    %c0_0 = arith.constant 0 : index
    %0 = vector.load %arg1[%c0, %c0_0] : memref<16x384xbf16, #tpu.memory_space<vmem>>, vector<16x384xbf16>
    %1 = arith.extf %0 : vector<16x384xbf16> to vector<16x384xf32>
    %c0_1 = arith.constant 0 : index
    %c0_2 = arith.constant 0 : index
    %2 = vector.load %arg2[%c0_1, %c0_2] : memref<1x384xf32, #tpu.memory_space<vmem>>, vector<1x384xf32>
    %3 = vector.broadcast %2 : vector<1x384xf32> to vector<16x384xf32>
    %4 = arith.addf %1, %3 : vector<16x384xf32>
    %5 = arith.negf %4 : vector<16x384xf32>
    %6 = math.exp %5 : vector<16x384xf32>
    %cst = arith.constant 1.000000e+00 : f32
    %7 = vector.broadcast %cst : f32 to vector<16x384xf32>
    %8 = arith.addf %7, %6 : vector<16x384xf32>
    %9 = arith.divf %7, %8 : vector<16x384xf32>
    %c0_3 = arith.constant 0 : index
    %c0_4 = arith.constant 0 : index
    %10 = vector.load %arg3[%c0_3, %c0_4] : memref<1x384xf32, #tpu.memory_space<vmem>>, vector<1x384xf32>
    %11 = vector.broadcast %10 : vector<1x384xf32> to vector<16x384xf32>
    %12 = arith.mulf %9, %11 : vector<16x384xf32>
    %c0_5 = arith.constant 0 : index
    %c0_6 = arith.constant 0 : index
    %13 = vector.load %arg4[%c0_5, %c0_6] : memref<1x384xf32, #tpu.memory_space<vmem>>, vector<1x384xf32>
    %14 = vector.broadcast %13 : vector<1x384xf32> to vector<16x384xf32>
    %15 = arith.addf %12, %14 : vector<16x384xf32>
    %c0_7 = arith.constant 0 : index
    %c0_8 = arith.constant 0 : index
    %16 = vector.load %arg5[%c0_7, %c0_8] : memref<16x384xf32, #tpu.memory_space<vmem>>, vector<16x384xf32>
    tpu.vector_store %arg5[%c0_7, %c0_8], %15 {strides = array<i32>} : memref<16x384xf32, #tpu.memory_space<vmem>>, vector<16x384xf32>,
    return
  }
  func.func @transform_0(%arg0: i32) -> (i32, i32) {
    %c0_i32 = arith.constant 0 : i32
    %c0_i32_0 = arith.constant 0 : i32
    return %arg0, %c0_i32 : i32, i32
  }
  func.func @transform_1(%arg0: i32) -> (i32, i32) {
    %c0_i32 = arith.constant 0 : i32
    %c0_i32_0 = arith.constant 0 : i32
    %c0_i32_1 = arith.constant 0 : i32
    return %c0_i32, %c0_i32_0 : i32, i32
  }
  func.func @transform_2(%arg0: i32) -> (i32, i32) {
    %c0_i32 = arith.constant 0 : i32
    %c0_i32_0 = arith.constant 0 : i32
    %c0_i32_1 = arith.constant 0 : i32
    return %c0_i32, %c0_i32_0 : i32, i32
  }
  func.func @transform_3(%arg0: i32) -> (i32, i32) {
    %c0_i32 = arith.constant 0 : i32
    %c0_i32_0 = arith.constant 0 : i32
    %c0_i32_1 = arith.constant 0 : i32
    return %c0_i32, %c0_i32_0 : i32, i32
  }
  func.func @transform_4(%arg0: i32) -> (i32, i32) {
    %c0_i32 = arith.constant 0 : i32
    %c0_i32_0 = arith.constant 0 : i32
    return %arg0, %c0_i32 : i32, i32
  }
}

</mosaic_0001>

<llo_original>
// kernel: generator_forward.12
$region0: #{generator_forward.12}
  #allocation0 [shape = 'u32[]', space=smem, size = 0x4, offset = 0x4, fixed_abs, tag = 'smem constant byte address 0x4 - core index']
  #allocation1 [shape = 'u32[144,128]{1,0:T(1,128)}', space=vmem, size = 0x12000, scoped, tag = 'internal scratch']
  %s0 = inlined_call_operand.vmem [shape: bf16[2,16], index: 0, kind: input, shape index: {}]
  %s1 = inlined_call_operand.vmem [shape: bf16[16,256], index: 1, kind: input, shape index: {}]
  %s2 = inlined_call_operand.vmem [shape: f32[1,256], index: 2, kind: input, shape index: {}]
  %s3 = inlined_call_operand.vmem [shape: bf16[2,256], index: 3, kind: output, shape index: {}]
  %s4 = sld [smem:[#allocation0]]
  $region22: #{generator_forward.12} parent=0
    _
  %s6 = ssub.s32 1, %s4
  %s7 = scalar_select 0, %s6, %s4
  // Predicated region
  $region2: #{generator_forward.12} parent=0 // pred_check
    _
  $region3: #{generator_forward.12} parent=0 // pred_check_branch
    %9 = sbr.rel (0) target = $region5
  $region4: #{generator_forward.12} parent=0 // pred_region
    _
  $region5: #{generator_forward.12} parent=0 // pred_fallthru
    _
  // Predicated region
  $region6: #{generator_forward.12} parent=0 // pred_check
    _
  $region7: #{generator_forward.12} parent=0 // pred_check_branch
    %11 = sbr.rel (0) target = $region9
  $region8: #{generator_forward.12} parent=0 // pred_region
    _
  $region9: #{generator_forward.12} parent=0 // pred_fallthru
    _
  // Predicated region
  $region10: #{generator_forward.12} parent=0 // pred_check
    _
  $region11: #{generator_forward.12} parent=0 // pred_check_branch
    %13 = sbr.rel (0) target = $region13
  $region12: #{generator_forward.12} parent=0 // pred_region
    _
  $region13: #{generator_forward.12} parent=0 // pred_fallthru
    _
  %v15 = vld [vmem:[%s0] sm:$0x1]
  %v16 = vld [vmem:[%s1] sm:$0xff]
  %v17 = vld [vmem:[%s1 + $0x8] sm:$0xff]
  %v18 = vld [vmem:[%s2] sm:$0x3]
  %v20 = vlaneseq
  %v21 = vshrl.u32 %v20, 7
  %v22 = vsub.s32 0, %v21
  %v23 = vrot.slane %v18, %v22
  %v24 = vlaneseq
  %v25 = vshrl.u32 %v24, 7
  %v26 = vsub.s32 1, %v25
  %v27 = vrot.slane %v18, %v26
  %v32 = vunpack.c.l.b16 %v16
  %v33 = vunpack.c.h.b16 %v16
  %v34 = vunpack.c.l.b16 %v17
  %v35 = vunpack.c.h.b16 %v17
  %v36 = vpack.c.b16 %v34, %v32
  %v37 = vpack.c.b16 %v35, %v33
  %vm40 = vcmask 130048
  %v42 = vsel %vm40, %v15, 0
  %44 = vmatprep.subr.bf16.mxu0 0
  %45 = vmatpush1.bf16.msra.mxu0 0
  %46 = vmatprep.subr.bf16.mxu0 0
  %47 = vmatpush1.bf16.msra.mxu0 0
  %48 = vmatprep.subr.bf16.mxu0 0
  %49 = vmatpush1.bf16.msra.mxu0 0
  %50 = vmatprep.subr.bf16.mxu0 0
  %51 = vmatpush1.bf16.msra.mxu0 0
  %52 = vmatprep.subr.bf16.mxu0 0
  %53 = vmatpush1.bf16.msra.mxu0 0
  %54 = vmatprep.subr.bf16.mxu0 0
  %55 = vmatpush1.bf16.msra.mxu0 0
  %56 = vmatprep.subr.bf16.mxu0 0
  %57 = vmatpush1.bf16.msra.mxu0 0
  %58 = vmatprep.subr.bf16.mxu0 %v37
  %59 = vmatpush1.bf16.msra.mxu0 %v36
  %60 = vmatprep.subr.bf16.mxu0 0
  %61 = vmatpush2.bf16.msra.mxu0 0
  %62 = vmatprep.subr.bf16.mxu0 0
  %63 = vmatpush2.bf16.msra.mxu0 0
  %64 = vmatprep.subr.bf16.mxu0 0
  %65 = vmatpush2.bf16.msra.mxu0 0
  %66 = vmatprep.subr.bf16.mxu0 0
  %67 = vmatpush2.bf16.msra.mxu0 0
  %68 = vmatprep.subr.bf16.mxu0 0
  %69 = vmatpush2.bf16.msra.mxu0 0
  %70 = vmatprep.subr.bf16.mxu0 0
  %71 = vmatpush2.bf16.msra.mxu0 0
  %72 = vmatprep.subr.bf16.mxu0 0
  %73 = vmatpush2.bf16.msra.mxu0 0
  %74 = vmatprep.subr.bf16.mxu0 0
  %75 = vmatpush2.bf16.msra.mxu0 0
  %76 = vmatprep.mubr.bf16.mxu0 0
  %77 = vmatmul.mubr.bf16.gmra.mxu0 %v42
  %v78 = vpop.f32.mrf.mxu0
  %v79 = vadd.f32 %v23, %v78
  %v80 = vpop.f32.mrf.mxu0
  %v81 = vadd.f32 %v27, %v80
  %v82 = vpop.f32.mrf.mxu0
  %v83 = vpop.f32.mrf.mxu0
  %84 = vdwg.mxu0
  %v85 = vmax.f32 %v79, 0.0
  %v86 = vmax.f32 %v81, 0.0
  %v87 = vpack.c.bf16 %v85, %v85
  %v88 = vpack.c.bf16 %v86, %v86
  %v91 = vcombine.low %v87, %v88
  %v93 = vunpack.c.l.s4 1966171168
  %v94 = vunpack.c.0.s8 %v93
  %v95 = vlaneseq
  %v96 = vshrl.u32 %v95, 7
  %v97 = vsub.s32 %v94, %v96
  %v98 = vrot.slane %v91, %v97
  %v100 = vunpack.c.l.s4 1966171168
  %v101 = vunpack.c.0.s8 %v100
  %v102 = vlaneseq
  %v103 = vshrl.u32 %v102, 7
  %v104 = vsub.s32 %v101, %v103
  %v105 = vrot.slane %v98, %v104
  %107 = vst [vmem:[%s3] sm:$0x3] %v105
  // Predicated region
  $region14: #{generator_forward.12} parent=0 // pred_check
    _
  $region15: #{generator_forward.12} parent=0 // pred_check_branch
    %109 = sbr.rel (0) target = $region17
  $region16: #{generator_forward.12} parent=0 // pred_region
    _
  $region17: #{generator_forward.12} parent=0 // pred_fallthru
    _
  // Predicated region
  $region18: #{generator_forward.12} parent=0 // pred_check
    _
  $region19: #{generator_forward.12} parent=0 // pred_check_branch
    %111 = sbr.rel (0) target = $region21
  $region20: #{generator_forward.12} parent=0 // pred_region
    _
  $region21: #{generator_forward.12} parent=0 // pred_fallthru
    _

// kernel: generator_forward.13
$region0: #{generator_forward.13}
  #allocation0 [shape = 'u32[]', space=smem, size = 0x4, offset = 0x4, fixed_abs, tag = 'smem constant byte address 0x4 - core index']
  #allocation1 [shape = 'u32[144,128]{1,0:T(1,128)}', space=vmem, size = 0x12000, scoped, tag = 'internal scratch']
  %s0 = inlined_call_operand.vmem [shape: bf16[8,64], index: 0, kind: input, shape index: {}]
  %s1 = inlined_call_operand.hbm [shape: bf16[64,512], index: 1, kind: input, shape index: {}]
  %s2 = inlined_call_operand.vmem [shape: bf16[8,512], index: 2, kind: output, shape index: {}]
  %s3 = sld [smem:[#allocation0]]
  $region22: #{generator_forward.13} parent=0
    _
  %s5 = ssub.s32 1, %s3
  %s6 = scalar_select 0, %s5, %s3
  $region1: #{generator_forward.13} parent=0
    #allocation2 [shape = 'u8[65536]{0}', space=vmem, size = 0x10000, scoped, tag = 'input window, operand 1, single buffered']
    #allocation3 [shape = 's32[1]{0}', space=sflag, size = 0x4, scoped, tag = 'scoped memory for generator_forward.13']
    %7 = vsyncpa [#allocation3], 0
    // Predicated region
    $region2: #{generator_forward.13} parent=1 // pred_check
      _
    $region3: #{generator_forward.13} parent=1 // pred_check_branch
      %9 = sbr.rel (0) target = $region5
    $region4: #{generator_forward.13} parent=1 // pred_region
      _
    $region5: #{generator_forward.13} parent=1 // pred_fallthru
      _
    // Predicated region
    $region6: #{generator_forward.13} parent=1 // pred_check
      _
    $region7: #{generator_forward.13} parent=1 // pred_check_branch
      %11 = sbr.rel (0) target = $region9
    $region8: #{generator_forward.13} parent=1 // pred_region
      %s13 = ssub.s32 2048, 2048
      %14 = vsyncadd [#allocation3], %s13
      %s15 = sshll.u32 [#allocation2], 4
      %s16 = int_to_ptr.vmem [resolvable:$true] %s15
      %21 = dma.hbm_to_vmem [thread:$0]  %s1, 2048, %s16, [#allocation3], 256, 256, 16
    $region9: #{generator_forward.13} parent=1 // pred_fallthru
      _
    // Predicated region
    $region10: #{generator_forward.13} parent=1 // pred_check
      _
    $region11: #{generator_forward.13} parent=1 // pred_check_branch
      %23 = sbr.rel (0) target = $region13
    $region12: #{generator_forward.13} parent=1 // pred_region
      %24 = dma.done [#allocation3], 2048
    $region13: #{generator_forward.13} parent=1 // pred_fallthru
      _
    %v26 = vld [vmem:[%s0] sm:$0xf]
    %v27 = vld [vmem:[#allocation2] sm:$0xff]
    %v28 = vld [vmem:[#allocation2 + $0x8] sm:$0xff]
    %v29 = vld [vmem:[#allocation2 + $0x10] sm:$0xff]
    %v30 = vld [vmem:[#allocation2 + $0x18] sm:$0xff]
    %v31 = vld [vmem:[#allocation2 + $0x20] sm:$0xff]
    %v32 = vld [vmem:[#allocation2 + $0x28] sm:$0xff]
    %v33 = vld [vmem:[#allocation2 + $0x30] sm:$0xff]
    %v34 = vld [vmem:[#allocation2 + $0x38] sm:$0xff]
    %v35 = vld [vmem:[#allocation2 + $0x40] sm:$0xff]
    %v36 = vld [vmem:[#allocation2 + $0x48] sm:$0xff]
    %v37 = vld [vmem:[#allocation2 + $0x50] sm:$0xff]
    %v38 = vld [vmem:[#allocation2 + $0x58] sm:$0xff]
    %v39 = vld [vmem:[#allocation2 + $0x60] sm:$0xff]
    %v40 = vld [vmem:[#allocation2 + $0x68] sm:$0xff]
    %v41 = vld [vmem:[#allocation2 + $0x70] sm:$0xff]
    %v42 = vld [vmem:[#allocation2 + $0x78] sm:$0xff]
    %v59 = vunpack.c.l.b16 %v27
    %v60 = vunpack.c.h.b16 %v27
    %v61 = vunpack.c.l.b16 %v28
    %v62 = vunpack.c.h.b16 %v28
    %v63 = vunpack.c.l.b16 %v29
    %v64 = vunpack.c.h.b16 %v29
    %v65 = vunpack.c.l.b16 %v30
    %v66 = vunpack.c.h.b16 %v30
    %v67 = vunpack.c.l.b16 %v31
    %v68 = vunpack.c.h.b16 %v31
    %v69 = vunpack.c.l.b16 %v32
    %v70 = vunpack.c.h.b16 %v32
    %v71 = vunpack.c.l.b16 %v33
    %v72 = vunpack.c.h.b16 %v33
    %v73 = vunpack.c.l.b16 %v34
    %v74 = vunpack.c.h.b16 %v34
    %v75 = vunpack.c.l.b16 %v35
    %v76 = vunpack.c.h.b16 %v35
    %v77 = vunpack.c.l.b16 %v36
    %v78 = vunpack.c.h.b16 %v36
    %v79 = vunpack.c.l.b16 %v37
    %v80 = vunpack.c.h.b16 %v37
    %v81 = vunpack.c.l.b16 %v38
    %v82 = vunpack.c.h.b16 %v38
    %v83 = vunpack.c.l.b16 %v39
    %v84 = vunpack.c.h.b16 %v39
    %v85 = vunpack.c.l.b16 %v40
    %v86 = vunpack.c.h.b16 %v40
    %v87 = vunpack.c.l.b16 %v41
    %v88 = vunpack.c.h.b16 %v41
    %v89 = vunpack.c.l.b16 %v42
    %v90 = vunpack.c.h.b16 %v42
    %v91 = vpack.c.b16 %v63, %v59
    %v92 = vpack.c.b16 %v64, %v60
    %v93 = vpack.c.b16 %v65, %v61
    %v94 = vpack.c.b16 %v66, %v62
    %v95 = vpack.c.b16 %v71, %v67
    %v96 = vpack.c.b16 %v72, %v68
    %v97 = vpack.c.b16 %v73, %v69
    %v98 = vpack.c.b16 %v74, %v70
    %v99 = vpack.c.b16 %v79, %v75
    %v100 = vpack.c.b16 %v80, %v76
    %v101 = vpack.c.b16 %v81, %v77
    %v102 = vpack.c.b16 %v82, %v78
    %v103 = vpack.c.b16 %v87, %v83
    %v104 = vpack.c.b16 %v88, %v84
    %v105 = vpack.c.b16 %v89, %v85
    %v106 = vpack.c.b16 %v90, %v86
    %vm123 = vcmask 523264
    %v125 = vsel %vm123, %v26, 0
    %127 = vmatprep.subr.bf16.mxu0 0
    %128 = vmatpush1.bf16.msra.mxu0 0
    %129 = vmatprep.subr.bf16.mxu0 0
    %130 = vmatpush1.bf16.msra.mxu0 0
    %131 = vmatprep.subr.bf16.mxu0 0
    %132 = vmatpush1.bf16.msra.mxu0 0
    %133 = vmatprep.subr.bf16.mxu0 0
    %134 = vmatpush1.bf16.msra.mxu0 0
    %135 = vmatprep.subr.bf16.mxu0 %v104
    %136 = vmatpush1.bf16.msra.mxu0 %v103
    %137 = vmatprep.subr.bf16.mxu0 %v100
    %138 = vmatpush1.bf16.msra.mxu0 %v99
    %139 = vmatprep.subr.bf16.mxu0 %v96
    %140 = vmatpush1.bf16.msra.mxu0 %v95
    %141 = vmatprep.subr.bf16.mxu0 %v92
    %142 = vmatpush1.bf16.msra.mxu0 %v91
    %143 = vmatprep.subr.bf16.mxu0 0
    %144 = vmatpush2.bf16.msra.mxu0 0
    %145 = vmatprep.subr.bf16.mxu0 0
    %146 = vmatpush2.bf16.msra.mxu0 0
    %147 = vmatprep.subr.bf16.mxu0 0
    %148 = vmatpush2.bf16.msra.mxu0 0
    %149 = vmatprep.subr.bf16.mxu0 0
    %150 = vmatpush2.bf16.msra.mxu0 0
    %151 = vmatprep.subr.bf16.mxu0 0
    %152 = vmatpush2.bf16.msra.mxu0 0
    %153 = vmatprep.subr.bf16.mxu0 0
    %154 = vmatpush2.bf16.msra.mxu0 0
    %155 = vmatprep.subr.bf16.mxu0 0
    %156 = vmatpush2.bf16.msra.mxu0 0
    %157 = vmatprep.subr.bf16.mxu0 0
    %158 = vmatpush2.bf16.msra.mxu0 0
    %159 = vmatprep.mubr.bf16.mxu0 0
    %160 = vmatmul.mubr.bf16.gmra.mxu0 %v125
    %v161 = vpop.f32.mrf.mxu0
    %v162 = vadd.f32 0.0, %v161
    %v163 = vpop.f32.mrf.mxu0
    %v164 = vadd.f32 0.0, %v163
    %v165 = vpop.f32.mrf.mxu0
    %v166 = vpop.f32.mrf.mxu0
    %167 = vdwg.mxu0
    %168 = vmatprep.subr.bf16.mxu0 0
    %169 = vmatpush1.bf16.msra.mxu0 0
    %170 = vmatprep.subr.bf16.mxu0 0
    %171 = vmatpush1.bf16.msra.mxu0 0
    %172 = vmatprep.subr.bf16.mxu0 0
    %173 = vmatpush1.bf16.msra.mxu0 0
    %174 = vmatprep.subr.bf16.mxu0 0
    %175 = vmatpush1.bf16.msra.mxu0 0
    %176 = vmatprep.subr.bf16.mxu0 %v106
    %177 = vmatpush1.bf16.msra.mxu0 %v105
    %178 = vmatprep.subr.bf16.mxu0 %v102
    %179 = vmatpush1.bf16.msra.mxu0 %v101
    %180 = vmatprep.subr.bf16.mxu0 %v98
    %181 = vmatpush1.bf16.msra.mxu0 %v97
    %182 = vmatprep.subr.bf16.mxu0 %v94
    %183 = vmatpush1.bf16.msra.mxu0 %v93
    %184 = vmatprep.subr.bf16.mxu0 0
    %185 = vmatpush2.bf16.msra.mxu0 0
    %186 = vmatprep.subr.bf16.mxu0 0
    %187 = vmatpush2.bf16.msra.mxu0 0
    %188 = vmatprep.subr.bf16.mxu0 0
    %189 = vmatpush2.bf16.msra.mxu0 0
    %190 = vmatprep.subr.bf16.mxu0 0
    %191 = vmatpush2.bf16.msra.mxu0 0
    %192 = vmatprep.subr.bf16.mxu0 0
    %193 = vmatpush2.bf16.msra.mxu0 0
    %194 = vmatprep.subr.bf16.mxu0 0
    %195 = vmatpush2.bf16.msra.mxu0 0
    %196 = vmatprep.subr.bf16.mxu0 0
    %197 = vmatpush2.bf16.msra.mxu0 0
    %198 = vmatprep.subr.bf16.mxu0 0
    %199 = vmatpush2.bf16.msra.mxu0 0
    %200 = vmatprep.mubr.bf16.mxu0 0
    %201 = vmatmul.mubr.bf16.gmra.mxu0 %v125
    %v202 = vpop.f32.mrf.mxu0
    %v203 = vadd.f32 0.0, %v202
    %v204 = vpop.f32.mrf.mxu0
    %v205 = vadd.f32 0.0, %v204
    %v206 = vpop.f32.mrf.mxu0
    %v207 = vpop.f32.mrf.mxu0
    %208 = vdwg.mxu0
    %v209 = vpack.c.bf16 %v162, %v162
    %v210 = vpack.c.bf16 %v164, %v164
    %v211 = vpack.c.bf16 %v203, %v203
    %v212 = vpack.c.bf16 %v205, %v205
    %v217 = vunpack.c.l.b16 %v209
    %v218 = vunpack.c.l.b16 %v210
    %v219 = vunpack.c.l.b16 %v211
    %v220 = vunpack.c.l.b16 %v212
    %v221 = vpack.c.b16 %v218, %v217
    %v222 = vpack.c.b16 %v220, %v219
    %225 = vst [vmem:[%s2] sm:$0xff] %v221
    %226 = vst [vmem:[%s2 + $0x8] sm:$0xff] %v222
    // Predicated region
    $region14: #{generator_forward.13} parent=1 // pred_check
      _
    $region15: #{generator_forward.13} parent=1 // pred_check_branch
      %228 = sbr.rel (0) target = $region17
    $region16: #{generator_forward.13} parent=1 // pred_region
      _
    $region17: #{generator_forward.13} parent=1 // pred_fallthru
      _
    // Predicated region
    $region18: #{generator_forward.13} parent=1 // pred_check
      _
    $region19: #{generator_forward.13} parent=1 // pred_check_branch
      %230 = sbr.rel (0) target = $region21
    $region20: #{generator_forward.13} parent=1 // pred_region
      _
    $region21: #{generator_forward.13} parent=1 // pred_fallthru
      _
    %231 = vsyncpa [#allocation3], 1

// kernel: tile.37
$region0: #{tile.37}
  #allocation0 [shape = 's32[1]{0}', space=sflag, size = 0x4, scoped, tag = 'scoped memory for tile.37']
  %s0 = inlined_call_operand.vmem [shape: f32[32], index: 0, kind: input, shape index: {}]
  %s1 = inlined_call_operand.vmem [shape: f32[4,32], index: 1, kind: output, shape index: {}]
  // Predicated region
  $region2: #{tile.37} parent=0 // pred_check
    _
  $region3: #{tile.37} parent=0 // pred_check_branch
    %3 = sbr.rel (0) target = $region5
  $region4: #{tile.37} parent=0 // pred_region
    _
  $region5: #{tile.37} parent=0 // pred_fallthru
    _
  %v4 = vld [vmem:[%s0] ss:$0 sm:$0xff]
  %5 = vst [vmem:[%s1] sm:$0xf] %v4

// kernel: tile.38
$region0: #{tile.38}
  %s0 = inlined_call_operand.vmem [shape: f32[4,32], index: 0, kind: input, shape index: {}]
  %s1 = inlined_call_operand.vmem [shape: f32[1,128], index: 1, kind: output, shape index: {}]
  $region1: #{tile.38} parent=0
    #allocation0 [shape = 'u8[4096]{0}', space=vmem, size = 0x1000, scoped, tag = 'scoped mem for output reshape']
    #allocation1 [shape = 'u8[4096]{0}', space=vmem, size = 0x1000, scoped, tag = 'scoped mem for input reshape']
    %s3 = sshll.u32 1, 4
    %s4 = ssub.s32 %s3, 1
    %v5 = vld [vmem:[%s0] sm:%s4]
    %6 = vst [vmem:[#allocation1] sm:%s4] %v5
    %v7 = vld [vmem:[#allocation1] sm:$0x1]
    %vm8 = vcmask 261120
    %9 = vst.msk [vmem:[#allocation0] sm:$0x1] %vm8, %v7
    %s10 = scalar_lea.vmem [#allocation1], 3
    %v11 = vld [vmem:[%s10] sm:$0x1]
    %12 = vrot.lane.b32.xlu0 %v11, 96
    %v13 = vpop.permute.xlu0 %12
    %vm14 = vcmask 1048320
    %15 = vst.msk [vmem:[#allocation0] sm:$0x1] %vm14, %v13
    %s16 = scalar_lea.vmem [#allocation1], 2
    %v17 = vld [vmem:[%s16] sm:$0x1]
    %18 = vrot.lane.b32.xlu0 %v17, 64
    %v19 = vpop.permute.xlu0 %18
    %vm20 = vcmask 785920
    %21 = vst.msk [vmem:[#allocation0] sm:$0x1] %vm20, %v19
    %s22 = scalar_lea.vmem [#allocation1], 1
    %v23 = vld [vmem:[%s22] sm:$0x1]
    %24 = vrot.lane.b32.xlu0 %v23, 32
    %v25 = vpop.permute.xlu0 %24
    %vm26 = vcmask 523520
    %27 = vst.msk [vmem:[#allocation0] sm:$0x1] %vm26, %v25
    %s29 = sshll.u32 1, 1
    %s30 = ssub.s32 %s29, 1
    %v32 = vld [vmem:[#allocation0] sm:%s30]
    %s33 = sshll.u32 1, 1
    %s34 = ssub.s32 %s33, 1
    %35 = vst [vmem:[%s1] sm:%s34] %v32

// kernel: generator_forward.14
$region0: #{generator_forward.14}
  #allocation0 [shape = 'u32[]', space=smem, size = 0x4, offset = 0x4, fixed_abs, tag = 'smem constant byte address 0x4 - core index']
  #allocation1 [shape = 'u32[144,128]{1,0:T(1,128)}', space=vmem, size = 0x12000, scoped, tag = 'internal scratch']
  %s0 = inlined_call_operand.vmem [shape: bf16[8,128], index: 0, kind: input, shape index: {}]
  %s1 = inlined_call_operand.vmem [shape: f32[1,128], index: 1, kind: input, shape index: {}]
  %s2 = inlined_call_operand.vmem [shape: f32[1,2,128], index: 2, kind: output, shape index: {}]
  %s3 = sld [smem:[#allocation0]]
  $region18: #{generator_forward.14} parent=0
    _
  %s5 = ssub.s32 1, %s3
  %s6 = scalar_select 0, %s5, %s3
  // Predicated region
  $region2: #{generator_forward.14} parent=0 // pred_check
    _
  $region3: #{generator_forward.14} parent=0 // pred_check_branch
    %8 = sbr.rel (0) target = $region5
  $region4: #{generator_forward.14} parent=0 // pred_region
    _
  $region5: #{generator_forward.14} parent=0 // pred_fallthru
    _
  // Predicated region
  $region6: #{generator_forward.14} parent=0 // pred_check
    _
  $region7: #{generator_forward.14} parent=0 // pred_check_branch
    %10 = sbr.rel (0) target = $region9
  $region8: #{generator_forward.14} parent=0 // pred_region
    _
  $region9: #{generator_forward.14} parent=0 // pred_fallthru
    _
  %v11 = vld [vmem:[%s0] sm:$0xf]
  %v12 = vunpack.c.l.bf16 %v11
  %v13 = vld [vmem:[%s1] sm:$0x1]
  %v15 = vlaneseq
  %v16 = vshrl.u32 %v15, 7
  %v17 = vsub.s32 0, %v16
  %v18 = vrot.slane %v13, %v17
  %v20 = vadd.f32 %v12, %v18
  %v21 = vmax.f32 %v20, 0.0
  %v22 = vrot.slane %v21, 4
  %v23 = vadd.f32 %v21, %v22
  %v24 = vrot.slane %v23, 2
  %v25 = vadd.f32 %v23, %v24
  %v26 = vrot.slane %v25, 1
  %v27 = vadd.f32 %v25, %v26
  %v28 = vmul.f32 %v27, 0.125
  %v29 = vsub.f32 %v21, %v28
  %v30 = vmul.f32 %v29, %v29
  %v31 = vrot.slane %v30, 4
  %v32 = vadd.f32 %v30, %v31
  %v33 = vrot.slane %v32, 2
  %v34 = vadd.f32 %v32, %v33
  %v35 = vrot.slane %v34, 1
  %v36 = vadd.f32 %v34, %v35
  %vm37 = vcmask 1040384
  %v38 = vsel %vm37, %v27, %v36
  %39 = vst [vmem:[%s2] sm:$0x3] %v38
  // Predicated region
  $region10: #{generator_forward.14} parent=0 // pred_check
    _
  $region11: #{generator_forward.14} parent=0 // pred_check_branch
    %41 = sbr.rel (0) target = $region13
  $region12: #{generator_forward.14} parent=0 // pred_region
    _
  $region13: #{generator_forward.14} parent=0 // pred_fallthru
    _
  // Predicated region
  $region14: #{generator_forward.14} parent=0 // pred_check
    _
  $region15: #{generator_forward.14} parent=0 // pred_check_branch
    %43 = sbr.rel (0) target = $region17
  $region16: #{generator_forward.14} parent=0 // pred_region
    _
  $region17: #{generator_forward.14} parent=0 // pred_fallthru
    _

// kernel: generator_forward.15
$region0: #{generator_forward.15}
  #allocation0 [shape = 'u32[]', space=smem, size = 0x4, offset = 0x4, fixed_abs, tag = 'smem constant byte address 0x4 - core index']
  #allocation1 [shape = 'u32[144,128]{1,0:T(1,128)}', space=vmem, size = 0x12000, scoped, tag = 'internal scratch']
  %s0 = inlined_call_operand.vmem [shape: bf16[8,128], index: 0, kind: input, shape index: {}]
  %s1 = inlined_call_operand.vmem [shape: f32[1,128], index: 1, kind: input, shape index: {}]
  %s2 = inlined_call_operand.vmem [shape: f32[1,128], index: 2, kind: input, shape index: {}]
  %s3 = inlined_call_operand.vmem [shape: f32[1,128], index: 3, kind: input, shape index: {}]
  %s4 = inlined_call_operand.vmem [shape: bf16[8,128], index: 4, kind: output, shape index: {}]
  %s5 = sld [smem:[#allocation0]]
  $region26: #{generator_forward.15} parent=0
    _
  %s7 = ssub.s32 1, %s5
  %s8 = scalar_select 0, %s7, %s5
  // Predicated region
  $region2: #{generator_forward.15} parent=0 // pred_check
    _
  $region3: #{generator_forward.15} parent=0 // pred_check_branch
    %10 = sbr.rel (0) target = $region5
  $region4: #{generator_forward.15} parent=0 // pred_region
    _
  $region5: #{generator_forward.15} parent=0 // pred_fallthru
    _
  // Predicated region
  $region6: #{generator_forward.15} parent=0 // pred_check
    _
  $region7: #{generator_forward.15} parent=0 // pred_check_branch
    %12 = sbr.rel (0) target = $region9
  $region8: #{generator_forward.15} parent=0 // pred_region
    _
  $region9: #{generator_forward.15} parent=0 // pred_fallthru
    _
  // Predicated region
  $region10: #{generator_forward.15} parent=0 // pred_check
    _
  $region11: #{generator_forward.15} parent=0 // pred_check_branch
    %14 = sbr.rel (0) target = $region13
  $region12: #{generator_forward.15} parent=0 // pred_region
    _
  $region13: #{generator_forward.15} parent=0 // pred_fallthru
    _
  // Predicated region
  $region14: #{generator_forward.15} parent=0 // pred_check
    _
  $region15: #{generator_forward.15} parent=0 // pred_check_branch
    %16 = sbr.rel (0) target = $region17
  $region16: #{generator_forward.15} parent=0 // pred_region
    _
  $region17: #{generator_forward.15} parent=0 // pred_fallthru
    _
  %v17 = vld [vmem:[%s0] sm:$0xf]
  %v18 = vunpack.c.l.bf16 %v17
  %v19 = vld [vmem:[%s1] sm:$0x1]
  %v21 = vlaneseq
  %v22 = vshrl.u32 %v21, 7
  %v23 = vsub.s32 0, %v22
  %v24 = vrot.slane %v19, %v23
  %v26 = vadd.f32 %v18, %v24
  %v27 = vmax.f32 %v26, 0.0
  %v28 = vld [vmem:[%s2] sm:$0x1]
  %v30 = vlaneseq
  %v31 = vshrl.u32 %v30, 7
  %v32 = vsub.s32 0, %v31
  %v33 = vrot.slane %v28, %v32
  %v35 = vmul.f32 %v27, %v33
  %v36 = vld [vmem:[%s3] sm:$0x1]
  %v38 = vlaneseq
  %v39 = vshrl.u32 %v38, 7
  %v40 = vsub.s32 0, %v39
  %v41 = vrot.slane %v36, %v40
  %v43 = vadd.f32 %v35, %v41
  %v44 = vpack.c.bf16 %v43, %v43
  %45 = vst [vmem:[%s4] sm:$0xf] %v44
  // Predicated region
  $region18: #{generator_forward.15} parent=0 // pred_check
    _
  $region19: #{generator_forward.15} parent=0 // pred_check_branch
    %47 = sbr.rel (0) target = $region21
  $region20: #{generator_forward.15} parent=0 // pred_region
    _
  $region21: #{generator_forward.15} parent=0 // pred_fallthru
    _
  // Predicated region
  $region22: #{generator_forward.15} parent=0 // pred_check
    _
  $region23: #{generator_forward.15} parent=0 // pred_check_branch
    %49 = sbr.rel (0) target = $region25
  $region24: #{generator_forward.15} parent=0 // pred_region
    _
  $region25: #{generator_forward.15} parent=0 // pred_fallthru
    _

// kernel: generator_forward.16
$region0: #{generator_forward.16}
  #allocation0 [shape = 'u32[]', space=smem, size = 0x4, offset = 0x4, fixed_abs, tag = 'smem constant byte address 0x4 - core index']
  #allocation1 [shape = 'u32[144,128]{1,0:T(1,128)}', space=vmem, size = 0x12000, scoped, tag = 'internal scratch']
  %s0 = inlined_call_operand.vmem [shape: bf16[32,32], index: 0, kind: input, shape index: {}]
  %s1 = inlined_call_operand.vmem [shape: bf16[32,256], index: 1, kind: input, shape index: {}]
  %s2 = inlined_call_operand.vmem [shape: bf16[32,256], index: 2, kind: output, shape index: {}]
  %s3 = sld [smem:[#allocation0]]
  $region41: #{generator_forward.16} parent=0
    _
  %s5 = ssub.s32 1, %s3
  %s6 = scalar_select 0, %s5, %s3
  loop: start=0, step=1, limit=4
  $region2: #{generator_forward.16} parent=0 // loop_pre_header
    _
  $region3: #{generator_forward.16} parent=0 // loop_header
    %s8 = sphi 0, %s12
    %p9 = scmp.ge.s32.totalorder %s8, 4
    %s15 = sphi 0, %s27
    %s16 = sphi 0, %s23
    %s17 = sphi 0, %s15
    %s18 = sphi 0, %s16
    %s19 = sphi 0, %s17
    %s20 = sphi 0, %s18
    %s30 = sphi 0, %s32
    %s33 = sphi 0, %s30
    %s34 = sphi 0, %s33
    %s50 = sphi 0, %s34
    %s56 = sphi 0, %s58
    %s59 = sphi 0, %s56
    %s60 = sphi 0, %s59
    %s76 = sphi 0, %s60
    %s84 = sphi 0, %s86
    %s87 = sphi 0, %s84
    %s88 = sphi 0, %s87
    %s104 = sphi 0, %s88
  $region4: #{generator_forward.16} parent=0 // loop_header_branch
    %11 = sbr.rel (%p9) target = $region8
  $region5: #{generator_forward.16} parent=0 // loop_body
    %s13 = ssub.s32 %s8, 1
    %s14 = ssub.s32 %s8, 2
    %s21 = sadd.s32 1, %s16
    %p22 = scmp.ge.s32.totalorder %s21, 1
    %s23 = scalar_select %p22, 0, %s21
    %s24 = sadd.s32 1, %s15
    %s25 = scalar_select %p22, %s24, %s15
    %p26 = scmp.ge.s32.totalorder %s25, 2
    %s27 = scalar_select %p26, 0, %s25
    %s28 = ssub.s32 %s15, %s27
    %p29 = scmp.eq.s32.totalorder %s28, 0
    %s31 = sadd.s32 %s30, 1
    %s32 = scalar_select %p29, %s30, %s31
    %p35 = pneg %p29
    %p36 = scmp.eq.s32.totalorder %s8, 1
    %p37 = por %p35, %p36
    %p38 = scmp.ne.s32.totalorder %s30, %s33
    %p39 = scmp.eq.s32.totalorder %s8, 0
    %p40 = por %p38, %p39
    %p41 = scmp.ne.s32.totalorder %s30, %s33
    %p42 = scmp.eq.s32.totalorder %s13, 1
    %p43 = por %p41, %p42
    %p44 = scmp.ne.s32.totalorder %s33, %s34
    %p45 = scmp.eq.s32.totalorder %s13, 0
    %p46 = por %p44, %p45
    %p47 = scmp.ne.s32.totalorder %s33, %s34
    %p48 = scmp.eq.s32.totalorder %s14, 1
    %p49 = por %p47, %p48
    %p51 = scmp.ne.s32.totalorder %s34, %s50
    %p52 = scmp.eq.s32.totalorder %s14, 0
    %p53 = por %p51, %p52
    %s54 = ssub.s32 %s16, %s23
    %p55 = scmp.eq.s32.totalorder %s54, 0
    %s57 = sadd.s32 %s56, 1
    %s58 = scalar_select %p55, %s56, %s57
    %p61 = pneg %p55
    %p62 = scmp.eq.s32.totalorder %s8, 1
    %p63 = por %p61, %p62
    %p64 = scmp.ne.s32.totalorder %s56, %s59
    %p65 = scmp.eq.s32.totalorder %s8, 0
    %p66 = por %p64, %p65
    %p67 = scmp.ne.s32.totalorder %s56, %s59
    %p68 = scmp.eq.s32.totalorder %s13, 1
    %p69 = por %p67, %p68
    %p70 = scmp.ne.s32.totalorder %s59, %s60
    %p71 = scmp.eq.s32.totalorder %s13, 0
    %p72 = por %p70, %p71
    %p73 = scmp.ne.s32.totalorder %s59, %s60
    %p74 = scmp.eq.s32.totalorder %s14, 1
    %p75 = por %p73, %p74
    %p77 = scmp.ne.s32.totalorder %s60, %s76
    %p78 = scmp.eq.s32.totalorder %s14, 0
    %p79 = por %p77, %p78
    %s80 = ssub.s32 %s15, %s27
    %s81 = ssub.s32 %s16, %s23
    %s82 = sor.u32 %s80, %s81
    %p83 = scmp.eq.s32.totalorder %s82, 0
    %s85 = sadd.s32 %s84, 1
    %s86 = scalar_select %p83, %s84, %s85
    %p89 = pneg %p83
    %p90 = scmp.eq.s32.totalorder %s8, 1
    %p91 = por %p89, %p90
    %p92 = scmp.ne.s32.totalorder %s84, %s87
    %p93 = scmp.eq.s32.totalorder %s8, 0
    %p94 = por %p92, %p93
    %p95 = scmp.ne.s32.totalorder %s84, %s87
    %p96 = scmp.eq.s32.totalorder %s13, 1
    %p97 = por %p95, %p96
    %p98 = scmp.ne.s32.totalorder %s87, %s88
    %p99 = scmp.eq.s32.totalorder %s13, 0
    %p100 = por %p98, %p99
    %p101 = scmp.ne.s32.totalorder %s87, %s88
    %p102 = scmp.eq.s32.totalorder %s14, 1
    %p103 = por %p101, %p102
    %p105 = scmp.ne.s32.totalorder %s88, %s104
    %p106 = scmp.eq.s32.totalorder %s14, 0
    %p107 = por %p105, %p106
    %p108 = scmp.le.s32.totalorder 1, %s8
    %p109 = scmp.lt.s32.totalorder %s8, 3
    %p110 = pnand %p108, %p109
    %p111 = pneg %p110
    // Predicated region
    $region9: #{generator_forward.16} parent=5 // pred_check
      _
    $region10: #{generator_forward.16} parent=5 // pred_check_branch
      %113 = sbr.rel (%p110) target = $region12
    $region11: #{generator_forward.16} parent=5 // pred_region
      %s114 = ssub.s32 %s8, 1
      // Predicated region
      $region13: #{generator_forward.16} parent=11 // pred_check
        %p115 = pneg %p72
      $region14: #{generator_forward.16} parent=11 // pred_check_branch
        %117 = sbr.rel (%p115) target = $region16
      $region15: #{generator_forward.16} parent=11 // pred_region
        %s118 = smul.u32 2, %s18
        %p119 = scmp.lt.s32.totalorder %s118, 1
        %s120 = scalar_select %p119, %s118, 1
        %s121 = smul.addr %s120, 4
        %s122 = scalar_lea.vmem %s1, %s121
        %s123 = smul.u32 2, %s18
      $region16: #{generator_forward.16} parent=11 // pred_fallthru
        _
    $region12: #{generator_forward.16} parent=5 // pred_fallthru
      _
    %p124 = scmp.lt.s32.totalorder %s8, 2
    // Predicated region
    $region17: #{generator_forward.16} parent=5 // pred_check
      %p125 = pneg %p124
    $region18: #{generator_forward.16} parent=5 // pred_check_branch
      %127 = sbr.rel (%p125) target = $region20
    $region19: #{generator_forward.16} parent=5 // pred_region
      // Predicated region
      $region21: #{generator_forward.16} parent=19 // pred_check
        %p128 = pneg %p40
      $region22: #{generator_forward.16} parent=19 // pred_check_branch
        %130 = sbr.rel (%p128) target = $region24
      $region23: #{generator_forward.16} parent=19 // pred_region
        %s131 = smul.u32 2, %s15
        %p132 = scmp.lt.s32.totalorder %s131, 3
        %s133 = scalar_select %p132, %s131, 3
        %s134 = smul.addr %s133, 4
        %s135 = scalar_lea.vmem %s0, %s134
        %s136 = smul.u32 2, %s15
      $region24: #{generator_forward.16} parent=19 // pred_fallthru
        _
    $region20: #{generator_forward.16} parent=5 // pred_fallthru
      _
    %p137 = scmp.le.s32.totalorder 1, %s8
    %p138 = scmp.lt.s32.totalorder %s8, 3
    %p139 = pnand %p137, %p138
    %p140 = pneg %p139
    // Predicated region
    $region25: #{generator_forward.16} parent=5 // pred_check
      _
    $region26: #{generator_forward.16} parent=5 // pred_check_branch
      %142 = sbr.rel (%p139) target = $region28
    $region27: #{generator_forward.16} parent=5 // pred_region
      %s143 = ssub.s32 %s8, 1
      %s144 = smul.u32 2, %s17
      %p145 = scmp.lt.s32.totalorder %s144, 3
      %s146 = scalar_select %p145, %s144, 3
      %s147 = smul.addr %s146, 4
      %s148 = scalar_lea.vmem %s0, %s147
      %p149 = pneg %p46
      %p150 = pneg %p43
      %s151 = smul.u32 2, %s18
      %p152 = scmp.lt.s32.totalorder %s151, 1
      %s153 = scalar_select %p152, %s151, 1
      %s154 = smul.addr %s153, 4
      %s155 = scalar_lea.vmem %s1, %s154
      %p156 = pneg %p72
      %p157 = pneg %p69
      %p158 = pneg %p100
      %p159 = pneg %p97
      %s160 = smul.u32 2, %s17
      %s161 = smul.u32 2, %s18
      %p162 = scmp.lt.s32.totalorder %s160, 3
      %s163 = scalar_select %p162, %s160, 3
      %p164 = scmp.lt.s32.totalorder %s161, 1
      %s165 = scalar_select %p164, %s161, 1
      %s166 = smul.addr %s163, 2
      %s167 = sadd.s32 %s165, %s166
      %s168 = smul.addr %s167, 4
      %s169 = scalar_lea.vmem %s2, %s168
      %s170 = smul.u32 2, %s17
      %p171 = scmp.lt.s32.totalorder %s170, 3
      %s172 = scalar_select %p171, %s170, 3
      %s173 = smul.addr %s172, 4
      %s174 = scalar_lea.vmem %s0, %s173
      %s175 = smul.u32 2, %s17
      %s176 = smul.u32 2, %s18
      %p177 = scmp.lt.s32.totalorder %s176, 1
      %s178 = scalar_select %p177, %s176, 1
      %s179 = smul.addr %s178, 4
      %s180 = scalar_lea.vmem %s1, %s179
      %s181 = smul.u32 2, %s18
      %s182 = smul.u32 2, %s17
      %s183 = smul.u32 2, %s18
      %p184 = scmp.lt.s32.totalorder %s182, 3
      %s185 = scalar_select %p184, %s182, 3
      %p186 = scmp.lt.s32.totalorder %s183, 1
      %s187 = scalar_select %p186, %s183, 1
      %s188 = smul.addr %s185, 2
      %s189 = sadd.s32 %s187, %s188
      %s190 = smul.addr %s189, 4
      %s191 = scalar_lea.vmem %s2, %s190
      %s192 = smul.u32 2, %s17
      %s193 = smul.u32 2, %s18
      %v195 = vld [vmem:[%s174] sm:$0xf]
      %v196 = vld [vmem:[%s174 + $0x4] sm:$0xf]
      %v197 = vld [vmem:[%s180] sm:$0xff]
      %v198 = vld [vmem:[%s180 + $0x8] sm:$0xff]
      %v199 = vld [vmem:[%s180 + $0x10] sm:$0xff]
      %v200 = vld [vmem:[%s180 + $0x18] sm:$0xff]
      %v203 = vunpack.c.l.b16 %v195
      %v204 = vunpack.c.l.b16 %v196
      %v205 = vpack.c.b16 %v204, %v203
      %v210 = vunpack.c.l.b16 %v197
      %v211 = vunpack.c.h.b16 %v197
      %v212 = vunpack.c.l.b16 %v198
      %v213 = vunpack.c.h.b16 %v198
      %v214 = vunpack.c.l.b16 %v199
      %v215 = vunpack.c.h.b16 %v199
      %v216 = vunpack.c.l.b16 %v200
      %v217 = vunpack.c.h.b16 %v200
      %v218 = vpack.c.b16 %v212, %v210
      %v219 = vpack.c.b16 %v213, %v211
      %v220 = vpack.c.b16 %v216, %v214
      %v221 = vpack.c.b16 %v217, %v215
      %vm226 = vcmask 261120
      %v228 = vsel %vm226, %v205, 0
      %230 = vmatprep.subr.bf16.mxu0 0
      %231 = vmatpush1.bf16.msra.mxu0 0
      %232 = vmatprep.subr.bf16.mxu0 0
      %233 = vmatpush1.bf16.msra.mxu0 0
      %234 = vmatprep.subr.bf16.mxu0 0
      %235 = vmatpush1.bf16.msra.mxu0 0
      %236 = vmatprep.subr.bf16.mxu0 0
      %237 = vmatpush1.bf16.msra.mxu0 0
      %238 = vmatprep.subr.bf16.mxu0 0
      %239 = vmatpush1.bf16.msra.mxu0 0
      %240 = vmatprep.subr.bf16.mxu0 0
      %241 = vmatpush1.bf16.msra.mxu0 0
      %242 = vmatprep.subr.bf16.mxu0 %v221
      %243 = vmatpush1.bf16.msra.mxu0 %v220
      %244 = vmatprep.subr.bf16.mxu0 %v219
      %245 = vmatpush1.bf16.msra.mxu0 %v218
      %246 = vmatprep.subr.bf16.mxu0 0
      %247 = vmatpush2.bf16.msra.mxu0 0
      %248 = vmatprep.subr.bf16.mxu0 0
      %249 = vmatpush2.bf16.msra.mxu0 0
      %250 = vmatprep.subr.bf16.mxu0 0
      %251 = vmatpush2.bf16.msra.mxu0 0
      %252 = vmatprep.subr.bf16.mxu0 0
      %253 = vmatpush2.bf16.msra.mxu0 0
      %254 = vmatprep.subr.bf16.mxu0 0
      %255 = vmatpush2.bf16.msra.mxu0 0
      %256 = vmatprep.subr.bf16.mxu0 0
      %257 = vmatpush2.bf16.msra.mxu0 0
      %258 = vmatprep.subr.bf16.mxu0 0
      %259 = vmatpush2.bf16.msra.mxu0 0
      %260 = vmatprep.subr.bf16.mxu0 0
      %261 = vmatpush2.bf16.msra.mxu0 0
      %262 = vmatprep.mubr.bf16.mxu0 0
      %263 = vmatmul.mubr.bf16.gmra.mxu0 %v228
      %v264 = vpop.f32.mrf.mxu0
      %v265 = vadd.f32 0.0, %v264
      %v266 = vpop.f32.mrf.mxu0
      %v267 = vadd.f32 0.0, %v266
      %v268 = vpop.f32.mrf.mxu0
      %v269 = vadd.f32 0.0, %v268
      %v270 = vpop.f32.mrf.mxu0
      %v271 = vadd.f32 0.0, %v270
      %272 = vdwg.mxu0
      %v273 = vpack.c.bf16 %v269, %v265
      %v274 = vpack.c.bf16 %v271, %v267
      %v277 = vunpack.c.l.b16 %v273
      %v278 = vunpack.c.l.b16 %v274
      %v279 = vunpack.c.h.b16 %v273
      %v280 = vunpack.c.h.b16 %v274
      %v281 = vpack.c.b16 %v278, %v277
      %v282 = vpack.c.b16 %v280, %v279
      %285 = vst [vmem:[%s191] sm:$0xff] %v281
      %286 = vst [vmem:[%s191 + $0x8] sm:$0xff] %v282
      %s287 = smul.u32 2, %s17
      %s288 = smul.u32 2, %s18
      %p289 = scmp.lt.s32.totalorder %s287, 3
      %s290 = scalar_select %p289, %s287, 3
      %p291 = scmp.lt.s32.totalorder %s288, 1
      %s292 = scalar_select %p291, %s288, 1
      %s293 = smul.addr %s290, 2
      %s294 = sadd.s32 %s292, %s293
      %s295 = smul.addr %s294, 4
      %s296 = scalar_lea.vmem %s2, %s295
      // Predicated region
      $region29: #{generator_forward.16} parent=27 // pred_check
        %p297 = pneg %p97
      $region30: #{generator_forward.16} parent=27 // pred_check_branch
        %299 = sbr.rel (%p297) target = $region32
      $region31: #{generator_forward.16} parent=27 // pred_region
        %s300 = smul.u32 2, %s17
        %s301 = smul.u32 2, %s18
      $region32: #{generator_forward.16} parent=27 // pred_fallthru
        _
    $region28: #{generator_forward.16} parent=5 // pred_fallthru
      _
    %p302 = scmp.le.s32.totalorder 2, %s8
    // Predicated region
    $region33: #{generator_forward.16} parent=5 // pred_check
      %p303 = pneg %p302
    $region34: #{generator_forward.16} parent=5 // pred_check_branch
      %305 = sbr.rel (%p303) target = $region36
    $region35: #{generator_forward.16} parent=5 // pred_region
      %s306 = ssub.s32 %s8, 2
      // Predicated region
      $region37: #{generator_forward.16} parent=35 // pred_check
        %p307 = pneg %p103
      $region38: #{generator_forward.16} parent=35 // pred_check_branch
        %309 = sbr.rel (%p307) target = $region40
      $region39: #{generator_forward.16} parent=35 // pred_region
        %s310 = smul.u32 2, %s19
        %s311 = smul.u32 2, %s20
        %p312 = scmp.lt.s32.totalorder %s310, 3
        %s313 = scalar_select %p312, %s310, 3
        %p314 = scmp.lt.s32.totalorder %s311, 1
        %s315 = scalar_select %p314, %s311, 1
        %s316 = smul.addr %s313, 2
        %s317 = sadd.s32 %s315, %s316
        %s318 = smul.addr %s317, 4
        %s319 = scalar_lea.vmem %s2, %s318
      $region40: #{generator_forward.16} parent=35 // pred_fallthru
        _
    $region36: #{generator_forward.16} parent=5 // pred_fallthru
      _
  $region6: #{generator_forward.16} parent=0 // loop_footer
    %s12 = sadd.s32 1, %s8
  $region7: #{generator_forward.16} parent=0 // loop_footer_branch
    %7 = sbr.rel target = $region3
  $region8: #{generator_forward.16} parent=0 // loop_exit
    _

// kernel: tile.47
$region0: #{tile.47}
  #allocation0 [shape = 's32[1]{0}', space=sflag, size = 0x4, scoped, tag = 'scoped memory for tile.47']
  %s0 = inlined_call_operand.vmem [shape: f32[16], index: 0, kind: input, shape index: {}]
  %s1 = inlined_call_operand.vmem [shape: f32[8,16], index: 1, kind: output, shape index: {}]
  // Predicated region
  $region2: #{tile.47} parent=0 // pred_check
    _
  $region3: #{tile.47} parent=0 // pred_check_branch
    %3 = sbr.rel (0) target = $region5
  $region4: #{tile.47} parent=0 // pred_region
    _
  $region5: #{tile.47} parent=0 // pred_fallthru
    _
  %v4 = vld [vmem:[%s0] ss:$0 sm:$0xff]
  %5 = vst [vmem:[%s1] sm:$0xff] %v4

// kernel: tile.48
$region0: #{tile.48}
  %s0 = inlined_call_operand.vmem [shape: f32[8,16], index: 0, kind: input, shape index: {}]
  %s1 = inlined_call_operand.vmem [shape: f32[1,128], index: 1, kind: output, shape index: {}]
  $region1: #{tile.48} parent=0
    #allocation0 [shape = 'u8[4096]{0}', space=vmem, size = 0x1000, scoped, tag = 'scoped mem for output reshape']
    %v2 = vld [vmem:[%s0] sm:$0x1]
    %vm3 = vcmask 130048
    %4 = vst.msk [vmem:[#allocation0] sm:$0x1] %vm3, %v2
    %s5 = scalar_lea.vmem %s0, 7
    %v6 = vld [vmem:[%s5] sm:$0x1]
    %7 = vrot.lane.b32.xlu0 %v6, 112
    %v8 = vpop.permute.xlu0 %7
    %vm9 = vcmask 1048448
    %10 = vst.msk [vmem:[#allocation0] sm:$0x1] %vm9, %v8
    %s11 = scalar_lea.vmem %s0, 6
    %v12 = vld [vmem:[%s11] sm:$0x1]
    %13 = vrot.lane.b32.xlu0 %v12, 96
    %v14 = vpop.permute.xlu0 %13
    %vm15 = vcmask 917248
    %16 = vst.msk [vmem:[#allocation0] sm:$0x1] %vm15, %v14
    %s17 = scalar_lea.vmem %s0, 5
    %v18 = vld [vmem:[%s17] sm:$0x1]
    %19 = vrot.lane.b32.xlu0 %v18, 80
    %v20 = vpop.permute.xlu0 %19
    %vm21 = vcmask 786048
    %22 = vst.msk [vmem:[#allocation0] sm:$0x1] %vm21, %v20
    %s23 = scalar_lea.vmem %s0, 4
    %v24 = vld [vmem:[%s23] sm:$0x1]
    %25 = vrot.lane.b32.xlu0 %v24, 64
    %v26 = vpop.permute.xlu0 %25
    %vm27 = vcmask 654848
    %28 = vst.msk [vmem:[#allocation0] sm:$0x1] %vm27, %v26
    %s29 = scalar_lea.vmem %s0, 3
    %v30 = vld [vmem:[%s29] sm:$0x1]
    %31 = vrot.lane.b32.xlu0 %v30, 48
    %v32 = vpop.permute.xlu0 %31
    %vm33 = vcmask 523648
    %34 = vst.msk [vmem:[#allocation0] sm:$0x1] %vm33, %v32
    %s35 = scalar_lea.vmem %s0, 2
    %v36 = vld [vmem:[%s35] sm:$0x1]
    %37 = vrot.lane.b32.xlu0 %v36, 32
    %v38 = vpop.permute.xlu0 %37
    %vm39 = vcmask 392448
    %40 = vst.msk [vmem:[#allocation0] sm:$0x1] %vm39, %v38
    %s41 = scalar_lea.vmem %s0, 1
    %v42 = vld [vmem:[%s41] sm:$0x1]
    %43 = vrot.lane.b32.xlu0 %v42, 16
    %v44 = vpop.permute.xlu0 %43
    %vm45 = vcmask 261248
    %46 = vst.msk [vmem:[#allocation0] sm:$0x1] %vm45, %v44
    %s48 = sshll.u32 1, 1
    %s49 = ssub.s32 %s48, 1
    %v51 = vld [vmem:[#allocation0] sm:%s49]
    %s52 = sshll.u32 1, 1
    %s53 = ssub.s32 %s52, 1
    %54 = vst [vmem:[%s1] sm:%s53] %v51

// kernel: generator_forward.17
$region0: #{generator_forward.17}
  #allocation0 [shape = 'u32[]', space=smem, size = 0x4, offset = 0x4, fixed_abs, tag = 'smem constant byte address 0x4 - core index']
  #allocation1 [shape = 'u32[144,128]{1,0:T(1,128)}', space=vmem, size = 0x12000, scoped, tag = 'internal scratch']
  %s0 = inlined_call_operand.vmem [shape: bf16[16,128], index: 0, kind: input, shape index: {}]
  %s1 = inlined_call_operand.vmem [shape: f32[1,128], index: 1, kind: input, shape index: {}]
  %s2 = inlined_call_operand.vmem [shape: f32[1,2,128], index: 2, kind: output, shape index: {}]
  %s3 = sld [smem:[#allocation0]]
  $region18: #{generator_forward.17} parent=0
    _
  %s5 = ssub.s32 1, %s3
  %s6 = scalar_select 0, %s5, %s3
  // Predicated region
  $region2: #{generator_forward.17} parent=0 // pred_check
    _
  $region3: #{generator_forward.17} parent=0 // pred_check_branch
    %8 = sbr.rel (0) target = $region5
  $region4: #{generator_forward.17} parent=0 // pred_region
    _
  $region5: #{generator_forward.17} parent=0 // pred_fallthru
    _
  // Predicated region
  $region6: #{generator_forward.17} parent=0 // pred_check
    _
  $region7: #{generator_forward.17} parent=0 // pred_check_branch
    %10 = sbr.rel (0) target = $region9
  $region8: #{generator_forward.17} parent=0 // pred_region
    _
  $region9: #{generator_forward.17} parent=0 // pred_fallthru
    _
  %v11 = vld [vmem:[%s0] sm:$0xf]
  %v12 = vld [vmem:[%s0 + $0x4] sm:$0xf]
  %v13 = vunpack.c.l.bf16 %v11
  %v14 = vunpack.c.l.bf16 %v12
  %v15 = vld [vmem:[%s1] sm:$0x1]
  %v17 = vlaneseq
  %v18 = vshrl.u32 %v17, 7
  %v19 = vsub.s32 0, %v18
  %v20 = vrot.slane %v15, %v19
  %v22 = vadd.f32 %v13, %v20
  %v23 = vadd.f32 %v14, %v20
  %v24 = vmax.f32 %v22, 0.0
  %v25 = vmax.f32 %v23, 0.0
  %v26 = vadd.f32 %v24, %v25
  %v27 = vrot.slane %v26, 4
  %v28 = vadd.f32 %v26, %v27
  %v29 = vrot.slane %v28, 2
  %v30 = vadd.f32 %v28, %v29
  %v31 = vrot.slane %v30, 1
  %v32 = vadd.f32 %v30, %v31
  %v33 = vmul.f32 %v32, 0.0625
  %v34 = vsub.f32 %v24, %v33
  %v35 = vsub.f32 %v25, %v33
  %v36 = vmul.f32 %v34, %v34
  %v37 = vmul.f32 %v35, %v35
  %v38 = vadd.f32 %v36, %v37
  %v39 = vrot.slane %v38, 4
  %v40 = vadd.f32 %v38, %v39
  %v41 = vrot.slane %v40, 2
  %v42 = vadd.f32 %v40, %v41
  %v43 = vrot.slane %v42, 1
  %v44 = vadd.f32 %v42, %v43
  %vm45 = vcmask 1040384
  %v46 = vsel %vm45, %v32, %v44
  %47 = vst [vmem:[%s2] sm:$0x3] %v46
  // Predicated region
  $region10: #{generator_forward.17} parent=0 // pred_check
    _
  $region11: #{generator_forward.17} parent=0 // pred_check_branch
    %49 = sbr.rel (0) target = $region13
  $region12: #{generator_forward.17} parent=0 // pred_region
    _
  $region13: #{generator_forward.17} parent=0 // pred_fallthru
    _
  // Predicated region
  $region14: #{generator_forward.17} parent=0 // pred_check
    _
  $region15: #{generator_forward.17} parent=0 // pred_check_branch
    %51 = sbr.rel (0) target = $region17
  $region16: #{generator_forward.17} parent=0 // pred_region
    _
  $region17: #{generator_forward.17} parent=0 // pred_fallthru
    _

// kernel: generator_forward.18
$region0: #{generator_forward.18}
  #allocation0 [shape = 'u32[]', space=smem, size = 0x4, offset = 0x4, fixed_abs, tag = 'smem constant byte address 0x4 - core index']
  #allocation1 [shape = 'u32[144,128]{1,0:T(1,128)}', space=vmem, size = 0x12000, scoped, tag = 'internal scratch']
  %s0 = inlined_call_operand.vmem [shape: bf16[16,128], index: 0, kind: input, shape index: {}]
  %s1 = inlined_call_operand.vmem [shape: f32[1,128], index: 1, kind: input, shape index: {}]
  %s2 = inlined_call_operand.vmem [shape: f32[1,128], index: 2, kind: input, shape index: {}]
  %s3 = inlined_call_operand.vmem [shape: f32[1,128], index: 3, kind: input, shape index: {}]
  %s4 = inlined_call_operand.vmem [shape: bf16[16,128], index: 4, kind: output, shape index: {}]
  %s5 = sld [smem:[#allocation0]]
  $region26: #{generator_forward.18} parent=0
    _
  %s7 = ssub.s32 1, %s5
  %s8 = scalar_select 0, %s7, %s5
  // Predicated region
  $region2: #{generator_forward.18} parent=0 // pred_check
    _
  $region3: #{generator_forward.18} parent=0 // pred_check_branch
    %10 = sbr.rel (0) target = $region5
  $region4: #{generator_forward.18} parent=0 // pred_region
    _
  $region5: #{generator_forward.18} parent=0 // pred_fallthru
    _
  // Predicated region
  $region6: #{generator_forward.18} parent=0 // pred_check
    _
  $region7: #{generator_forward.18} parent=0 // pred_check_branch
    %12 = sbr.rel (0) target = $region9
  $region8: #{generator_forward.18} parent=0 // pred_region
    _
  $region9: #{generator_forward.18} parent=0 // pred_fallthru
    _
  // Predicated region
  $region10: #{generator_forward.18} parent=0 // pred_check
    _
  $region11: #{generator_forward.18} parent=0 // pred_check_branch
    %14 = sbr.rel (0) target = $region13
  $region12: #{generator_forward.18} parent=0 // pred_region
    _
  $region13: #{generator_forward.18} parent=0 // pred_fallthru
    _
  // Predicated region
  $region14: #{generator_forward.18} parent=0 // pred_check
    _
  $region15: #{generator_forward.18} parent=0 // pred_check_branch
    %16 = sbr.rel (0) target = $region17
  $region16: #{generator_forward.18} parent=0 // pred_region
    _
  $region17: #{generator_forward.18} parent=0 // pred_fallthru
    _
  %v17 = vld [vmem:[%s0] sm:$0xf]
  %v18 = vld [vmem:[%s0 + $0x4] sm:$0xf]
  %v19 = vunpack.c.l.bf16 %v17
  %v20 = vunpack.c.l.bf16 %v18
  %v21 = vld [vmem:[%s1] sm:$0x1]
  %v23 = vlaneseq
  %v24 = vshrl.u32 %v23, 7
  %v25 = vsub.s32 0, %v24
  %v26 = vrot.slane %v21, %v25
  %v28 = vadd.f32 %v19, %v26
  %v29 = vadd.f32 %v20, %v26
  %v30 = vmax.f32 %v28, 0.0
  %v31 = vmax.f32 %v29, 0.0
  %v32 = vld [vmem:[%s2] sm:$0x1]
  %v34 = vlaneseq
  %v35 = vshrl.u32 %v34, 7
  %v36 = vsub.s32 0, %v35
  %v37 = vrot.slane %v32, %v36
  %v39 = vmul.f32 %v30, %v37
  %v40 = vmul.f32 %v31, %v37
  %v41 = vld [vmem:[%s3] sm:$0x1]
  %v43 = vlaneseq
  %v44 = vshrl.u32 %v43, 7
  %v45 = vsub.s32 0, %v44
  %v46 = vrot.slane %v41, %v45
  %v48 = vadd.f32 %v39, %v46
  %v49 = vadd.f32 %v40, %v46
  %v50 = vpack.c.bf16 %v49, %v48
  %v52 = vunpack.c.l.b16 %v50
  %v53 = vunpack.c.h.b16 %v50
  %v54 = vpack.c.b16 %v52, %v52
  %v55 = vpack.c.b16 %v53, %v53
  %58 = vst [vmem:[%s4] sm:$0xf] %v54
  %59 = vst [vmem:[%s4 + $0x4] sm:$0xf] %v55
  // Predicated region
  $region18: #{generator_forward.18} parent=0 // pred_check
    _
  $region19: #{generator_forward.18} parent=0 // pred_check_branch
    %61 = sbr.rel (0) target = $region21
  $region20: #{generator_forward.18} parent=0 // pred_region
    _
  $region21: #{generator_forward.18} parent=0 // pred_fallthru
    _
  // Predicated region
  $region22: #{generator_forward.18} parent=0 // pred_check
    _
  $region23: #{generator_forward.18} parent=0 // pred_check_branch
    %63 = sbr.rel (0) target = $region25
  $region24: #{generator_forward.18} parent=0 // pred_region
    _
  $region25: #{generator_forward.18} parent=0 // pred_fallthru
    _

// kernel: generator_forward.19
$region0: #{generator_forward.19}
  #allocation0 [shape = 'u32[]', space=smem, size = 0x4, offset = 0x4, fixed_abs, tag = 'smem constant byte address 0x4 - core index']
  #allocation1 [shape = 'u32[144,128]{1,0:T(1,128)}', space=vmem, size = 0x12000, scoped, tag = 'internal scratch']
  %s0 = inlined_call_operand.vmem [shape: bf16[128,16], index: 0, kind: input, shape index: {}]
  %s1 = inlined_call_operand.vmem [shape: bf16[16,128], index: 1, kind: input, shape index: {}]
  %s2 = inlined_call_operand.vmem [shape: bf16[128,128], index: 2, kind: output, shape index: {}]
  %s3 = sld [smem:[#allocation0]]
  $region41: #{generator_forward.19} parent=0
    _
  %s5 = ssub.s32 1, %s3
  %s6 = scalar_select 0, %s5, %s3
  loop: start=0, step=1, limit=4
  $region2: #{generator_forward.19} parent=0 // loop_pre_header
    _
  $region3: #{generator_forward.19} parent=0 // loop_header
    %s8 = sphi 0, %s12
    %p9 = scmp.ge.s32.totalorder %s8, 4
    %s15 = sphi 0, %s27
    %s16 = sphi 0, %s23
    %s17 = sphi 0, %s15
    %s18 = sphi 0, %s16
    %s19 = sphi 0, %s17
    %s20 = sphi 0, %s18
    %s30 = sphi 0, %s32
    %s33 = sphi 0, %s30
    %s34 = sphi 0, %s33
    %s50 = sphi 0, %s34
    %s56 = sphi 0, %s58
    %s59 = sphi 0, %s56
    %s60 = sphi 0, %s59
    %s76 = sphi 0, %s60
    %s84 = sphi 0, %s86
    %s87 = sphi 0, %s84
    %s88 = sphi 0, %s87
    %s104 = sphi 0, %s88
  $region4: #{generator_forward.19} parent=0 // loop_header_branch
    %11 = sbr.rel (%p9) target = $region8
  $region5: #{generator_forward.19} parent=0 // loop_body
    %s13 = ssub.s32 %s8, 1
    %s14 = ssub.s32 %s8, 2
    %s21 = sadd.s32 1, %s16
    %p22 = scmp.ge.s32.totalorder %s21, 1
    %s23 = scalar_select %p22, 0, %s21
    %s24 = sadd.s32 1, %s15
    %s25 = scalar_select %p22, %s24, %s15
    %p26 = scmp.ge.s32.totalorder %s25, 2
    %s27 = scalar_select %p26, 0, %s25
    %s28 = ssub.s32 %s15, %s27
    %p29 = scmp.eq.s32.totalorder %s28, 0
    %s31 = sadd.s32 %s30, 1
    %s32 = scalar_select %p29, %s30, %s31
    %p35 = pneg %p29
    %p36 = scmp.eq.s32.totalorder %s8, 1
    %p37 = por %p35, %p36
    %p38 = scmp.ne.s32.totalorder %s30, %s33
    %p39 = scmp.eq.s32.totalorder %s8, 0
    %p40 = por %p38, %p39
    %p41 = scmp.ne.s32.totalorder %s30, %s33
    %p42 = scmp.eq.s32.totalorder %s13, 1
    %p43 = por %p41, %p42
    %p44 = scmp.ne.s32.totalorder %s33, %s34
    %p45 = scmp.eq.s32.totalorder %s13, 0
    %p46 = por %p44, %p45
    %p47 = scmp.ne.s32.totalorder %s33, %s34
    %p48 = scmp.eq.s32.totalorder %s14, 1
    %p49 = por %p47, %p48
    %p51 = scmp.ne.s32.totalorder %s34, %s50
    %p52 = scmp.eq.s32.totalorder %s14, 0
    %p53 = por %p51, %p52
    %s54 = ssub.s32 %s16, %s23
    %p55 = scmp.eq.s32.totalorder %s54, 0
    %s57 = sadd.s32 %s56, 1
    %s58 = scalar_select %p55, %s56, %s57
    %p61 = pneg %p55
    %p62 = scmp.eq.s32.totalorder %s8, 1
    %p63 = por %p61, %p62
    %p64 = scmp.ne.s32.totalorder %s56, %s59
    %p65 = scmp.eq.s32.totalorder %s8, 0
    %p66 = por %p64, %p65
    %p67 = scmp.ne.s32.totalorder %s56, %s59
    %p68 = scmp.eq.s32.totalorder %s13, 1
    %p69 = por %p67, %p68
    %p70 = scmp.ne.s32.totalorder %s59, %s60
    %p71 = scmp.eq.s32.totalorder %s13, 0
    %p72 = por %p70, %p71
    %p73 = scmp.ne.s32.totalorder %s59, %s60
    %p74 = scmp.eq.s32.totalorder %s14, 1
    %p75 = por %p73, %p74
    %p77 = scmp.ne.s32.totalorder %s60, %s76
    %p78 = scmp.eq.s32.totalorder %s14, 0
    %p79 = por %p77, %p78
    %s80 = ssub.s32 %s15, %s27
    %s81 = ssub.s32 %s16, %s23
    %s82 = sor.u32 %s80, %s81
    %p83 = scmp.eq.s32.totalorder %s82, 0
    %s85 = sadd.s32 %s84, 1
    %s86 = scalar_select %p83, %s84, %s85
    %p89 = pneg %p83
    %p90 = scmp.eq.s32.totalorder %s8, 1
    %p91 = por %p89, %p90
    %p92 = scmp.ne.s32.totalorder %s84, %s87
    %p93 = scmp.eq.s32.totalorder %s8, 0
    %p94 = por %p92, %p93
    %p95 = scmp.ne.s32.totalorder %s84, %s87
    %p96 = scmp.eq.s32.totalorder %s13, 1
    %p97 = por %p95, %p96
    %p98 = scmp.ne.s32.totalorder %s87, %s88
    %p99 = scmp.eq.s32.totalorder %s13, 0
    %p100 = por %p98, %p99
    %p101 = scmp.ne.s32.totalorder %s87, %s88
    %p102 = scmp.eq.s32.totalorder %s14, 1
    %p103 = por %p101, %p102
    %p105 = scmp.ne.s32.totalorder %s88, %s104
    %p106 = scmp.eq.s32.totalorder %s14, 0
    %p107 = por %p105, %p106
    %p108 = scmp.le.s32.totalorder 1, %s8
    %p109 = scmp.lt.s32.totalorder %s8, 3
    %p110 = pnand %p108, %p109
    %p111 = pneg %p110
    // Predicated region
    $region9: #{generator_forward.19} parent=5 // pred_check
      _
    $region10: #{generator_forward.19} parent=5 // pred_check_branch
      %113 = sbr.rel (%p110) target = $region12
    $region11: #{generator_forward.19} parent=5 // pred_region
      %s114 = ssub.s32 %s8, 1
      // Predicated region
      $region13: #{generator_forward.19} parent=11 // pred_check
        %p115 = pneg %p72
      $region14: #{generator_forward.19} parent=11 // pred_check_branch
        %117 = sbr.rel (%p115) target = $region16
      $region15: #{generator_forward.19} parent=11 // pred_region
        %p118 = scmp.lt.s32.totalorder %s18, 0
        %s119 = scalar_select %p118, %s18, 0
        %s120 = smul.addr %s119, 4
        %s121 = scalar_lea.vmem %s1, %s120
      $region16: #{generator_forward.19} parent=11 // pred_fallthru
        _
    $region12: #{generator_forward.19} parent=5 // pred_fallthru
      _
    %p122 = scmp.lt.s32.totalorder %s8, 2
    // Predicated region
    $region17: #{generator_forward.19} parent=5 // pred_check
      %p123 = pneg %p122
    $region18: #{generator_forward.19} parent=5 // pred_check_branch
      %125 = sbr.rel (%p123) target = $region20
    $region19: #{generator_forward.19} parent=5 // pred_region
      // Predicated region
      $region21: #{generator_forward.19} parent=19 // pred_check
        %p126 = pneg %p40
      $region22: #{generator_forward.19} parent=19 // pred_check_branch
        %128 = sbr.rel (%p126) target = $region24
      $region23: #{generator_forward.19} parent=19 // pred_region
        %s129 = smul.u32 8, %s15
        %p130 = scmp.lt.s32.totalorder %s129, 15
        %s131 = scalar_select %p130, %s129, 15
        %s132 = smul.addr %s131, 4
        %s133 = scalar_lea.vmem %s0, %s132
        %s134 = smul.u32 8, %s15
      $region24: #{generator_forward.19} parent=19 // pred_fallthru
        _
    $region20: #{generator_forward.19} parent=5 // pred_fallthru
      _
    %p135 = scmp.le.s32.totalorder 1, %s8
    %p136 = scmp.lt.s32.totalorder %s8, 3
    %p137 = pnand %p135, %p136
    %p138 = pneg %p137
    // Predicated region
    $region25: #{generator_forward.19} parent=5 // pred_check
      _
    $region26: #{generator_forward.19} parent=5 // pred_check_branch
      %140 = sbr.rel (%p137) target = $region28
    $region27: #{generator_forward.19} parent=5 // pred_region
      %s141 = ssub.s32 %s8, 1
      %s142 = smul.u32 8, %s17
      %p143 = scmp.lt.s32.totalorder %s142, 15
      %s144 = scalar_select %p143, %s142, 15
      %s145 = smul.addr %s144, 4
      %s146 = scalar_lea.vmem %s0, %s145
      %p147 = pneg %p46
      %p148 = pneg %p43
      %p149 = scmp.lt.s32.totalorder %s18, 0
      %s150 = scalar_select %p149, %s18, 0
      %s151 = smul.addr %s150, 4
      %s152 = scalar_lea.vmem %s1, %s151
      %p153 = pneg %p72
      %p154 = pneg %p69
      %p155 = pneg %p100
      %p156 = pneg %p97
      %s157 = smul.u32 8, %s17
      %p158 = scmp.lt.s32.totalorder %s157, 15
      %s159 = scalar_select %p158, %s157, 15
      %p160 = scmp.lt.s32.totalorder %s18, 0
      %s161 = scalar_select %p160, %s18, 0
      %s162 = sadd.s32 %s161, %s159
      %s163 = smul.addr %s162, 4
      %s164 = scalar_lea.vmem %s2, %s163
      %s165 = smul.u32 8, %s17
      %p166 = scmp.lt.s32.totalorder %s165, 15
      %s167 = scalar_select %p166, %s165, 15
      %s168 = smul.addr %s167, 4
      %s169 = scalar_lea.vmem %s0, %s168
      %s170 = smul.u32 8, %s17
      %p171 = scmp.lt.s32.totalorder %s18, 0
      %s172 = scalar_select %p171, %s18, 0
      %s173 = smul.addr %s172, 4
      %s174 = scalar_lea.vmem %s1, %s173
      %s175 = smul.u32 8, %s17
      %p176 = scmp.lt.s32.totalorder %s175, 15
      %s177 = scalar_select %p176, %s175, 15
      %p178 = scmp.lt.s32.totalorder %s18, 0
      %s179 = scalar_select %p178, %s18, 0
      %s180 = sadd.s32 %s179, %s177
      %s181 = smul.addr %s180, 4
      %s182 = scalar_lea.vmem %s2, %s181
      %s183 = smul.u32 8, %s17
      %v185 = vld [vmem:[%s169] sm:$0xf]
      %v186 = vld [vmem:[%s169 + $0x4] sm:$0xf]
      %v187 = vld [vmem:[%s169 + $0x8] sm:$0xf]
      %v188 = vld [vmem:[%s169 + $0xc] sm:$0xf]
      %v189 = vld [vmem:[%s169 + $0x10] sm:$0xf]
      %v190 = vld [vmem:[%s169 + $0x14] sm:$0xf]
      %v191 = vld [vmem:[%s169 + $0x18] sm:$0xf]
      %v192 = vld [vmem:[%s169 + $0x1c] sm:$0xf]
      %v193 = vld [vmem:[%s174] sm:$0xf]
      %v194 = vld [vmem:[%s174 + $0x4] sm:$0xf]
      %v203 = vunpack.c.l.b16 %v185
      %v204 = vunpack.c.l.b16 %v186
      %v205 = vunpack.c.l.b16 %v187
      %v206 = vunpack.c.l.b16 %v188
      %v207 = vunpack.c.l.b16 %v189
      %v208 = vunpack.c.l.b16 %v190
      %v209 = vunpack.c.l.b16 %v191
      %v210 = vunpack.c.l.b16 %v192
      %v211 = vpack.c.b16 %v204, %v203
      %v212 = vpack.c.b16 %v206, %v205
      %v213 = vpack.c.b16 %v208, %v207
      %v214 = vpack.c.b16 %v210, %v209
      %v217 = vunpack.c.l.b16 %v193
      %v218 = vunpack.c.l.b16 %v194
      %v219 = vpack.c.b16 %v218, %v217
      %vm221 = vcmask 130048
      %v223 = vsel %vm221, %v211, 0
      %v226 = vsel %vm221, %v212, 0
      %v229 = vsel %vm221, %v213, 0
      %v232 = vsel %vm221, %v214, 0
      %234 = vmatprep.subr.bf16.mxu0 0
      %235 = vmatpush1.bf16.msra.mxu0 0
      %236 = vmatprep.subr.bf16.mxu0 0
      %237 = vmatpush1.bf16.msra.mxu0 0
      %238 = vmatprep.subr.bf16.mxu0 0
      %239 = vmatpush1.bf16.msra.mxu0 0
      %240 = vmatprep.subr.bf16.mxu0 0
      %241 = vmatpush1.bf16.msra.mxu0 0
      %242 = vmatprep.subr.bf16.mxu0 0
      %243 = vmatpush1.bf16.msra.mxu0 0
      %244 = vmatprep.subr.bf16.mxu0 0
      %245 = vmatpush1.bf16.msra.mxu0 0
      %246 = vmatprep.subr.bf16.mxu0 0
      %247 = vmatpush1.bf16.msra.mxu0 0
      %248 = vmatprep.subr.bf16.mxu0 0
      %249 = vmatpush1.bf16.msra.mxu0 %v219
      %250 = vmatprep.subr.bf16.mxu0 0
      %251 = vmatpush2.bf16.msra.mxu0 0
      %252 = vmatprep.subr.bf16.mxu0 0
      %253 = vmatpush2.bf16.msra.mxu0 0
      %254 = vmatprep.subr.bf16.mxu0 0
      %255 = vmatpush2.bf16.msra.mxu0 0
      %256 = vmatprep.subr.bf16.mxu0 0
      %257 = vmatpush2.bf16.msra.mxu0 0
      %258 = vmatprep.subr.bf16.mxu0 0
      %259 = vmatpush2.bf16.msra.mxu0 0
      %260 = vmatprep.subr.bf16.mxu0 0
      %261 = vmatpush2.bf16.msra.mxu0 0
      %262 = vmatprep.subr.bf16.mxu0 0
      %263 = vmatpush2.bf16.msra.mxu0 0
      %264 = vmatprep.subr.bf16.mxu0 0
      %265 = vmatpush2.bf16.msra.mxu0 0
      %266 = vmatprep.mubr.bf16.mxu0 0
      %267 = vmatmul.mubr.bf16.gmra.mxu0 %v223
      %v268 = vpop.f32.mrf.mxu0
      %v269 = vadd.f32 0.0, %v268
      %v270 = vpop.f32.mrf.mxu0
      %v271 = vpop.f32.mrf.mxu0
      %v272 = vadd.f32 0.0, %v271
      %v273 = vpop.f32.mrf.mxu0
      %274 = vmatprep.mubr.bf16.mxu0 0
      %275 = vmatmul.mubr.bf16.gmra.mxu0 %v226
      %v276 = vpop.f32.mrf.mxu0
      %v277 = vadd.f32 0.0, %v276
      %v278 = vpop.f32.mrf.mxu0
      %v279 = vpop.f32.mrf.mxu0
      %v280 = vadd.f32 0.0, %v279
      %v281 = vpop.f32.mrf.mxu0
      %282 = vmatprep.mubr.bf16.mxu0 0
      %283 = vmatmul.mubr.bf16.gmra.mxu0 %v229
      %v284 = vpop.f32.mrf.mxu0
      %v285 = vadd.f32 0.0, %v284
      %v286 = vpop.f32.mrf.mxu0
      %v287 = vpop.f32.mrf.mxu0
      %v288 = vadd.f32 0.0, %v287
      %v289 = vpop.f32.mrf.mxu0
      %290 = vmatprep.mubr.bf16.mxu0 0
      %291 = vmatmul.mubr.bf16.gmra.mxu0 %v232
      %v292 = vpop.f32.mrf.mxu0
      %v293 = vadd.f32 0.0, %v292
      %v294 = vpop.f32.mrf.mxu0
      %v295 = vpop.f32.mrf.mxu0
      %v296 = vadd.f32 0.0, %v295
      %v297 = vpop.f32.mrf.mxu0
      %298 = vdwg.mxu0
      %v299 = vpack.c.bf16 %v272, %v269
      %v300 = vpack.c.bf16 %v280, %v277
      %v301 = vpack.c.bf16 %v288, %v285
      %v302 = vpack.c.bf16 %v296, %v293
      %v307 = vunpack.c.l.b16 %v299
      %v308 = vunpack.c.h.b16 %v299
      %v309 = vunpack.c.l.b16 %v300
      %v310 = vunpack.c.h.b16 %v300
      %v311 = vunpack.c.l.b16 %v301
      %v312 = vunpack.c.h.b16 %v301
      %v313 = vunpack.c.l.b16 %v302
      %v314 = vunpack.c.h.b16 %v302
      %v315 = vpack.c.b16 %v307, %v307
      %v316 = vpack.c.b16 %v308, %v308
      %v317 = vpack.c.b16 %v309, %v309
      %v318 = vpack.c.b16 %v310, %v310
      %v319 = vpack.c.b16 %v311, %v311
      %v320 = vpack.c.b16 %v312, %v312
      %v321 = vpack.c.b16 %v313, %v313
      %v322 = vpack.c.b16 %v314, %v314
      %331 = vst [vmem:[%s182] sm:$0xf] %v315
      %332 = vst [vmem:[%s182 + $0x4] sm:$0xf] %v316
      %333 = vst [vmem:[%s182 + $0x8] sm:$0xf] %v317
      %334 = vst [vmem:[%s182 + $0xc] sm:$0xf] %v318
      %335 = vst [vmem:[%s182 + $0x10] sm:$0xf] %v319
      %336 = vst [vmem:[%s182 + $0x14] sm:$0xf] %v320
      %337 = vst [vmem:[%s182 + $0x18] sm:$0xf] %v321
      %338 = vst [vmem:[%s182 + $0x1c] sm:$0xf] %v322
      %s339 = smul.u32 8, %s17
      %p340 = scmp.lt.s32.totalorder %s339, 15
      %s341 = scalar_select %p340, %s339, 15
      %p342 = scmp.lt.s32.totalorder %s18, 0
      %s343 = scalar_select %p342, %s18, 0
      %s344 = sadd.s32 %s343, %s341
      %s345 = smul.addr %s344, 4
      %s346 = scalar_lea.vmem %s2, %s345
      // Predicated region
      $region29: #{generator_forward.19} parent=27 // pred_check
        %p347 = pneg %p97
      $region30: #{generator_forward.19} parent=27 // pred_check_branch
        %349 = sbr.rel (%p347) target = $region32
      $region31: #{generator_forward.19} parent=27 // pred_region
        %s350 = smul.u32 8, %s17
      $region32: #{generator_forward.19} parent=27 // pred_fallthru
        _
    $region28: #{generator_forward.19} parent=5 // pred_fallthru
      _
    %p351 = scmp.le.s32.totalorder 2, %s8
    // Predicated region
    $region33: #{generator_forward.19} parent=5 // pred_check
      %p352 = pneg %p351
    $region34: #{generator_forward.19} parent=5 // pred_check_branch
      %354 = sbr.rel (%p352) target = $region36
    $region35: #{generator_forward.19} parent=5 // pred_region
      %s355 = ssub.s32 %s8, 2
      // Predicated region
      $region37: #{generator_forward.19} parent=35 // pred_check
        %p356 = pneg %p103
      $region38: #{generator_forward.19} parent=35 // pred_check_branch
        %358 = sbr.rel (%p356) target = $region40
      $region39: #{generator_forward.19} parent=35 // pred_region
        %s359 = smul.u32 8, %s19
        %p360 = scmp.lt.s32.totalorder %s359, 15
        %s361 = scalar_select %p360, %s359, 15
        %p362 = scmp.lt.s32.totalorder %s20, 0
        %s363 = scalar_select %p362, %s20, 0
        %s364 = sadd.s32 %s363, %s361
        %s365 = smul.addr %s364, 4
        %s366 = scalar_lea.vmem %s2, %s365
      $region40: #{generator_forward.19} parent=35 // pred_fallthru
        _
    $region36: #{generator_forward.19} parent=5 // pred_fallthru
      _
  $region6: #{generator_forward.19} parent=0 // loop_footer
    %s12 = sadd.s32 1, %s8
  $region7: #{generator_forward.19} parent=0 // loop_footer_branch
    %7 = sbr.rel target = $region3
  $region8: #{generator_forward.19} parent=0 // loop_exit
    _

// kernel: generator_forward.20
$region0: #{generator_forward.20}
  #allocation0 [shape = 'u32[]', space=smem, size = 0x4, offset = 0x4, fixed_abs, tag = 'smem constant byte address 0x4 - core index']
  #allocation1 [shape = 'u32[144,128]{1,0:T(1,128)}', space=vmem, size = 0x12000, scoped, tag = 'internal scratch']
  %s0 = inlined_call_operand.vmem [shape: bf16[32,128], index: 0, kind: input, shape index: {}]
  %s1 = inlined_call_operand.vmem [shape: f32[1,128], index: 1, kind: input, shape index: {}]
  %s2 = inlined_call_operand.vmem [shape: f32[2,2,128], index: 2, kind: output, shape index: {}]
  %s3 = sld [smem:[#allocation0]]
  $region41: #{generator_forward.20} parent=0
    _
  %s5 = ssub.s32 1, %s3
  %s6 = scalar_select 0, %s5, %s3
  loop: start=0, step=1, limit=4
  $region2: #{generator_forward.20} parent=0 // loop_pre_header
    _
  $region3: #{generator_forward.20} parent=0 // loop_header
    %s8 = sphi 0, %s12
    %p9 = scmp.ge.s32.totalorder %s8, 4
    %s18 = sphi 0, %s20
    %s21 = sphi 0, %s18
    %s22 = sphi 0, %s21
    %s38 = sphi 0, %s22
    %s42 = sphi 0, %s42
    %s44 = sphi 0, %s42
    %s45 = sphi 0, %s44
    %s59 = sphi 0, %s45
    %s65 = sphi 0, %s67
    %s68 = sphi 0, %s65
    %s69 = sphi 0, %s68
    %s85 = sphi 0, %s69
  $region4: #{generator_forward.20} parent=0 // loop_header_branch
    %11 = sbr.rel (%p9) target = $region8
  $region5: #{generator_forward.20} parent=0 // loop_body
    %s13 = ssub.s32 %s8, 1
    %s14 = ssub.s32 %s8, 2
    %s15 = sadd.s32 %s8, 1
    %s16 = ssub.s32 %s8, %s15
    %p17 = scmp.eq.s32.totalorder %s16, 0
    %s19 = sadd.s32 %s18, 1
    %s20 = scalar_select %p17, %s18, %s19
    %p23 = pneg %p17
    %p24 = scmp.eq.s32.totalorder %s8, 1
    %p25 = por %p23, %p24
    %p26 = scmp.ne.s32.totalorder %s18, %s21
    %p27 = scmp.eq.s32.totalorder %s8, 0
    %p28 = por %p26, %p27
    %p29 = scmp.ne.s32.totalorder %s18, %s21
    %p30 = scmp.eq.s32.totalorder %s13, 1
    %p31 = por %p29, %p30
    %p32 = scmp.ne.s32.totalorder %s21, %s22
    %p33 = scmp.eq.s32.totalorder %s13, 0
    %p34 = por %p32, %p33
    %p35 = scmp.ne.s32.totalorder %s21, %s22
    %p36 = scmp.eq.s32.totalorder %s14, 1
    %p37 = por %p35, %p36
    %p39 = scmp.ne.s32.totalorder %s22, %s38
    %p40 = scmp.eq.s32.totalorder %s14, 0
    %p41 = por %p39, %p40
    %s43 = sadd.s32 %s42, 1
    %p46 = scmp.eq.s32.totalorder %s8, 1
    %p47 = scmp.ne.s32.totalorder %s42, %s44
    %p48 = scmp.eq.s32.totalorder %s8, 0
    %p49 = por %p47, %p48
    %p50 = scmp.ne.s32.totalorder %s42, %s44
    %p51 = scmp.eq.s32.totalorder %s13, 1
    %p52 = por %p50, %p51
    %p53 = scmp.ne.s32.totalorder %s44, %s45
    %p54 = scmp.eq.s32.totalorder %s13, 0
    %p55 = por %p53, %p54
    %p56 = scmp.ne.s32.totalorder %s44, %s45
    %p57 = scmp.eq.s32.totalorder %s14, 1
    %p58 = por %p56, %p57
    %p60 = scmp.ne.s32.totalorder %s45, %s59
    %p61 = scmp.eq.s32.totalorder %s14, 0
    %p62 = por %p60, %p61
    %s63 = ssub.s32 %s8, %s15
    %p64 = scmp.eq.s32.totalorder %s63, 0
    %s66 = sadd.s32 %s65, 1
    %s67 = scalar_select %p64, %s65, %s66
    %p70 = pneg %p64
    %p71 = scmp.eq.s32.totalorder %s8, 1
    %p72 = por %p70, %p71
    %p73 = scmp.ne.s32.totalorder %s65, %s68
    %p74 = scmp.eq.s32.totalorder %s8, 0
    %p75 = por %p73, %p74
    %p76 = scmp.ne.s32.totalorder %s65, %s68
    %p77 = scmp.eq.s32.totalorder %s13, 1
    %p78 = por %p76, %p77
    %p79 = scmp.ne.s32.totalorder %s68, %s69
    %p80 = scmp.eq.s32.totalorder %s13, 0
    %p81 = por %p79, %p80
    %p82 = scmp.ne.s32.totalorder %s68, %s69
    %p83 = scmp.eq.s32.totalorder %s14, 1
    %p84 = por %p82, %p83
    %p86 = scmp.ne.s32.totalorder %s69, %s85
    %p87 = scmp.eq.s32.totalorder %s14, 0
    %p88 = por %p86, %p87
    %p89 = scmp.le.s32.totalorder 1, %s8
    %p90 = scmp.lt.s32.totalorder %s8, 3
    %p91 = pnand %p89, %p90
    %p92 = pneg %p91
    // Predicated region
    $region9: #{generator_forward.20} parent=5 // pred_check
      _
    $region10: #{generator_forward.20} parent=5 // pred_check_branch
      %94 = sbr.rel (%p91) target = $region12
    $region11: #{generator_forward.20} parent=5 // pred_region
      %s95 = ssub.s32 %s8, 1
      // Predicated region
      $region13: #{generator_forward.20} parent=11 // pred_check
        %p96 = pneg %p55
      $region14: #{generator_forward.20} parent=11 // pred_check_branch
        %98 = sbr.rel (%p96) target = $region16
      $region15: #{generator_forward.20} parent=11 // pred_region
        _
      $region16: #{generator_forward.20} parent=11 // pred_fallthru
        _
    $region12: #{generator_forward.20} parent=5 // pred_fallthru
      _
    %p99 = scmp.lt.s32.totalorder %s8, 2
    // Predicated region
    $region17: #{generator_forward.20} parent=5 // pred_check
      %p100 = pneg %p99
    $region18: #{generator_forward.20} parent=5 // pred_check_branch
      %102 = sbr.rel (%p100) target = $region20
    $region19: #{generator_forward.20} parent=5 // pred_region
      // Predicated region
      $region21: #{generator_forward.20} parent=19 // pred_check
        %p103 = pneg %p28
      $region22: #{generator_forward.20} parent=19 // pred_check_branch
        %105 = sbr.rel (%p103) target = $region24
      $region23: #{generator_forward.20} parent=19 // pred_region
        %s106 = smul.u32 2, %s8
        %p107 = scmp.lt.s32.totalorder %s106, 3
        %s108 = scalar_select %p107, %s106, 3
        %s109 = smul.addr %s108, 4
        %s110 = scalar_lea.vmem %s0, %s109
        %s111 = smul.u32 2, %s8
      $region24: #{generator_forward.20} parent=19 // pred_fallthru
        _
    $region20: #{generator_forward.20} parent=5 // pred_fallthru
      _
    %p112 = scmp.le.s32.totalorder 1, %s8
    %p113 = scmp.lt.s32.totalorder %s8, 3
    %p114 = pnand %p112, %p113
    %p115 = pneg %p114
    // Predicated region
    $region25: #{generator_forward.20} parent=5 // pred_check
      _
    $region26: #{generator_forward.20} parent=5 // pred_check_branch
      %117 = sbr.rel (%p114) target = $region28
    $region27: #{generator_forward.20} parent=5 // pred_region
      %s118 = ssub.s32 %s8, 1
      %s119 = smul.u32 2, %s13
      %p120 = scmp.lt.s32.totalorder %s119, 3
      %s121 = scalar_select %p120, %s119, 3
      %s122 = smul.addr %s121, 4
      %s123 = scalar_lea.vmem %s0, %s122
      %p124 = pneg %p34
      %p125 = pneg %p31
      %p126 = pneg %p55
      %p127 = pneg %p52
      %p128 = pneg %p81
      %p129 = pneg %p78
      %p130 = scmp.lt.s32.totalorder %s13, 1
      %s131 = scalar_select %p130, %s13, 1
      %s132 = smul.addr %s131, 2
      %s133 = scalar_lea.vmem %s2, %s132
      %s134 = smul.u32 2, %s13
      %p135 = scmp.lt.s32.totalorder %s134, 3
      %s136 = scalar_select %p135, %s134, 3
      %s137 = smul.addr %s136, 4
      %s138 = scalar_lea.vmem %s0, %s137
      %s139 = smul.u32 2, %s13
      %p140 = scmp.lt.s32.totalorder %s13, 1
      %s141 = scalar_select %p140, %s13, 1
      %s142 = smul.addr %s141, 2
      %s143 = scalar_lea.vmem %s2, %s142
      %v144 = vld [vmem:[%s138] sm:$0xf]
      %v145 = vld [vmem:[%s138 + $0x4] sm:$0xf]
      %v146 = vunpack.c.l.bf16 %v144
      %v147 = vunpack.c.l.bf16 %v145
      %v148 = vld [vmem:[%s1] sm:$0x1]
      %v150 = vlaneseq
      %v151 = vshrl.u32 %v150, 7
      %v152 = vsub.s32 0, %v151
      %v153 = vrot.slane %v148, %v152
      %v155 = vadd.f32 %v146, %v153
      %v156 = vadd.f32 %v147, %v153
      %v157 = vmax.f32 %v155, 0.0
      %v158 = vmax.f32 %v156, 0.0
      %v159 = vadd.f32 %v157, %v158
      %v160 = vrot.slane %v159, 4
      %v161 = vadd.f32 %v159, %v160
      %v162 = vrot.slane %v161, 2
      %v163 = vadd.f32 %v161, %v162
      %v164 = vrot.slane %v163, 1
      %v165 = vadd.f32 %v163, %v164
      %v166 = vmul.f32 %v165, 0.0625
      %v167 = vsub.f32 %v157, %v166
      %v168 = vsub.f32 %v158, %v166
      %v169 = vmul.f32 %v167, %v167
      %v170 = vmul.f32 %v168, %v168
      %v171 = vadd.f32 %v169, %v170
      %v172 = vrot.slane %v171, 4
      %v173 = vadd.f32 %v171, %v172
      %v174 = vrot.slane %v173, 2
      %v175 = vadd.f32 %v173, %v174
      %v176 = vrot.slane %v175, 1
      %v177 = vadd.f32 %v175, %v176
      %vm178 = vcmask 1040384
      %v179 = vsel %vm178, %v165, %v177
      %180 = vst [vmem:[%s143] sm:$0x3] %v179
      %p181 = scmp.lt.s32.totalorder %s13, 1
      %s182 = scalar_select %p181, %s13, 1
      %s183 = smul.addr %s182, 2
      %s184 = scalar_lea.vmem %s2, %s183
      // Predicated region
      $region29: #{generator_forward.20} parent=27 // pred_check
        %p185 = pneg %p78
      $region30: #{generator_forward.20} parent=27 // pred_check_branch
        %187 = sbr.rel (%p185) target = $region32
      $region31: #{generator_forward.20} parent=27 // pred_region
        _
      $region32: #{generator_forward.20} parent=27 // pred_fallthru
        _
    $region28: #{generator_forward.20} parent=5 // pred_fallthru
      _
    %p188 = scmp.le.s32.totalorder 2, %s8
    // Predicated region
    $region33: #{generator_forward.20} parent=5 // pred_check
      %p189 = pneg %p188
    $region34: #{generator_forward.20} parent=5 // pred_check_branch
      %191 = sbr.rel (%p189) target = $region36
    $region35: #{generator_forward.20} parent=5 // pred_region
      %s192 = ssub.s32 %s8, 2
      // Predicated region
      $region37: #{generator_forward.20} parent=35 // pred_check
        %p193 = pneg %p84
      $region38: #{generator_forward.20} parent=35 // pred_check_branch
        %195 = sbr.rel (%p193) target = $region40
      $region39: #{generator_forward.20} parent=35 // pred_region
        %p196 = scmp.lt.s32.totalorder %s14, 1
        %s197 = scalar_select %p196, %s14, 1
        %s198 = smul.addr %s197, 2
        %s199 = scalar_lea.vmem %s2, %s198
      $region40: #{generator_forward.20} parent=35 // pred_fallthru
        _
    $region36: #{generator_forward.20} parent=5 // pred_fallthru
      _
  $region6: #{generator_forward.20} parent=0 // loop_footer
    %s12 = sadd.s32 1, %s8
  $region7: #{generator_forward.20} parent=0 // loop_footer_branch
    %7 = sbr.rel target = $region3
  $region8: #{generator_forward.20} parent=0 // loop_exit
    _

// kernel: tile.57
$region0: #{tile.57}
  #allocation0 [shape = 's32[1]{0}', space=sflag, size = 0x4, scoped, tag = 'scoped memory for tile.57']
  %s0 = inlined_call_operand.vmem [shape: f32[8], index: 0, kind: input, shape index: {}]
  %s1 = inlined_call_operand.vmem [shape: f32[16,8], index: 1, kind: output, shape index: {}]
  // Predicated region
  $region2: #{tile.57} parent=0 // pred_check
    _
  $region3: #{tile.57} parent=0 // pred_check_branch
    %3 = sbr.rel (0) target = $region5
  $region4: #{tile.57} parent=0 // pred_region
    _
  $region5: #{tile.57} parent=0 // pred_fallthru
    _
  %v4 = vld [vmem:[%s0] ss:$0 sm:$0xff]
  %5 = vst [vmem:[%s1] sm:$0xff] %v4
  %s6 = scalar_lea.vmem %s1, 8
  %7 = vst [vmem:[%s6] sm:$0xff] %v4

// kernel: tile.58
$region0: #{tile.58}
  %s0 = inlined_call_operand.vmem [shape: f32[16,8], index: 0, kind: input, shape index: {}]
  %s1 = inlined_call_operand.vmem [shape: f32[1,128], index: 1, kind: output, shape index: {}]
  $region1: #{tile.58} parent=0
    #allocation0 [shape = 'u8[4096]{0}', space=vmem, size = 0x1000, scoped, tag = 'scoped mem for output reshape']
    %v2 = vld [vmem:[%s0] sm:$0x1]
    %vm3 = vcmask 64512
    %4 = vst.msk [vmem:[#allocation0] sm:$0x1] %vm3, %v2
    %s5 = scalar_lea.vmem %s0, 15
    %v6 = vld [vmem:[%s5] sm:$0x1]
    %7 = vrot.lane.b32.xlu0 %v6, 120
    %v8 = vpop.permute.xlu0 %7
    %vm9 = vcmask 1048512
    %10 = vst.msk [vmem:[#allocation0] sm:$0x1] %vm9, %v8
    %s11 = scalar_lea.vmem %s0, 14
    %v12 = vld [vmem:[%s11] sm:$0x1]
    %13 = vrot.lane.b32.xlu0 %v12, 112
    %v14 = vpop.permute.xlu0 %13
    %vm15 = vcmask 982912
    %16 = vst.msk [vmem:[#allocation0] sm:$0x1] %vm15, %v14
    %s17 = scalar_lea.vmem %s0, 13
    %v18 = vld [vmem:[%s17] sm:$0x1]
    %19 = vrot.lane.b32.xlu0 %v18, 104
    %v20 = vpop.permute.xlu0 %19
    %vm21 = vcmask 917312
    %22 = vst.msk [vmem:[#allocation0] sm:$0x1] %vm21, %v20
    %s23 = scalar_lea.vmem %s0, 12
    %v24 = vld [vmem:[%s23] sm:$0x1]
    %25 = vrot.lane.b32.xlu0 %v24, 96
    %v26 = vpop.permute.xlu0 %25
    %vm27 = vcmask 851712
    %28 = vst.msk [vmem:[#allocation0] sm:$0x1] %vm27, %v26
    %s29 = scalar_lea.vmem %s0, 11
    %v30 = vld [vmem:[%s29] sm:$0x1]
    %31 = vrot.lane.b32.xlu0 %v30, 88
    %v32 = vpop.permute.xlu0 %31
    %vm33 = vcmask 786112
    %34 = vst.msk [vmem:[#allocation0] sm:$0x1] %vm33, %v32
    %s35 = scalar_lea.vmem %s0, 10
    %v36 = vld [vmem:[%s35] sm:$0x1]
    %37 = vrot.lane.b32.xlu0 %v36, 80
    %v38 = vpop.permute.xlu0 %37
    %vm39 = vcmask 720512
    %40 = vst.msk [vmem:[#allocation0] sm:$0x1] %vm39, %v38
    %s41 = scalar_lea.vmem %s0, 9
    %v42 = vld [vmem:[%s41] sm:$0x1]
    %43 = vrot.lane.b32.xlu0 %v42, 72
    %v44 = vpop.permute.xlu0 %43
    %vm45 = vcmask 654912
    %46 = vst.msk [vmem:[#allocation0] sm:$0x1] %vm45, %v44
    %s47 = scalar_lea.vmem %s0, 8
    %v48 = vld [vmem:[%s47] sm:$0x1]
    %49 = vrot.lane.b32.xlu0 %v48, 64
    %v50 = vpop.permute.xlu0 %49
    %vm51 = vcmask 589312
    %52 = vst.msk [vmem:[#allocation0] sm:$0x1] %vm51, %v50
    %s53 = scalar_lea.vmem %s0, 7
    %v54 = vld [vmem:[%s53] sm:$0x1]
    %55 = vrot.lane.b32.xlu0 %v54, 56
    %v56 = vpop.permute.xlu0 %55
    %vm57 = vcmask 523712
    %58 = vst.msk [vmem:[#allocation0] sm:$0x1] %vm57, %v56
    %s59 = scalar_lea.vmem %s0, 6
    %v60 = vld [vmem:[%s59] sm:$0x1]
    %61 = vrot.lane.b32.xlu0 %v60, 48
    %v62 = vpop.permute.xlu0 %61
    %vm63 = vcmask 458112
    %64 = vst.msk [vmem:[#allocation0] sm:$0x1] %vm63, %v62
    %s65 = scalar_lea.vmem %s0, 5
    %v66 = vld [vmem:[%s65] sm:$0x1]
    %67 = vrot.lane.b32.xlu0 %v66, 40
    %v68 = vpop.permute.xlu0 %67
    %vm69 = vcmask 392512
    %70 = vst.msk [vmem:[#allocation0] sm:$0x1] %vm69, %v68
    %s71 = scalar_lea.vmem %s0, 4
    %v72 = vld [vmem:[%s71] sm:$0x1]
    %73 = vrot.lane.b32.xlu0 %v72, 32
    %v74 = vpop.permute.xlu0 %73
    %vm75 = vcmask 326912
    %76 = vst.msk [vmem:[#allocation0] sm:$0x1] %vm75, %v74
    %s77 = scalar_lea.vmem %s0, 3
    %v78 = vld [vmem:[%s77] sm:$0x1]
    %79 = vrot.lane.b32.xlu0 %v78, 24
    %v80 = vpop.permute.xlu0 %79
    %vm81 = vcmask 261312
    %82 = vst.msk [vmem:[#allocation0] sm:$0x1] %vm81, %v80
    %s83 = scalar_lea.vmem %s0, 2
    %v84 = vld [vmem:[%s83] sm:$0x1]
    %85 = vrot.lane.b32.xlu0 %v84, 16
    %v86 = vpop.permute.xlu0 %85
    %vm87 = vcmask 195712
    %88 = vst.msk [vmem:[#allocation0] sm:$0x1] %vm87, %v86
    %s89 = scalar_lea.vmem %s0, 1
    %v90 = vld [vmem:[%s89] sm:$0x1]
    %91 = vrot.lane.b32.xlu0 %v90, 8
    %v92 = vpop.permute.xlu0 %91
    %vm93 = vcmask 130112
    %94 = vst.msk [vmem:[#allocation0] sm:$0x1] %vm93, %v92
    %s96 = sshll.u32 1, 1
    %s97 = ssub.s32 %s96, 1
    %v99 = vld [vmem:[#allocation0] sm:%s97]
    %s100 = sshll.u32 1, 1
    %s101 = ssub.s32 %s100, 1
    %102 = vst [vmem:[%s1] sm:%s101] %v99

// kernel: generator_forward.21
$region0: #{generator_forward.21}
  #allocation0 [shape = 'u32[]', space=smem, size = 0x4, offset = 0x4, fixed_abs, tag = 'smem constant byte address 0x4 - core index']
  #allocation1 [shape = 'u32[144,128]{1,0:T(1,128)}', space=vmem, size = 0x12000, scoped, tag = 'internal scratch']
  %s0 = inlined_call_operand.vmem [shape: bf16[32,128], index: 0, kind: input, shape index: {}]
  %s1 = inlined_call_operand.vmem [shape: f32[1,128], index: 1, kind: input, shape index: {}]
  %s2 = inlined_call_operand.vmem [shape: f32[1,128], index: 2, kind: input, shape index: {}]
  %s3 = inlined_call_operand.vmem [shape: f32[1,128], index: 3, kind: input, shape index: {}]
  %s4 = inlined_call_operand.vmem [shape: bf16[32,128], index: 4, kind: output, shape index: {}]
  %s5 = sld [smem:[#allocation0]]
  $region49: #{generator_forward.21} parent=0
    _
  %s7 = ssub.s32 1, %s5
  %s8 = scalar_select 0, %s7, %s5
  loop: start=0, step=1, limit=4
  $region2: #{generator_forward.21} parent=0 // loop_pre_header
    _
  $region3: #{generator_forward.21} parent=0 // loop_header
    %s10 = sphi 0, %s14
    %p11 = scmp.ge.s32.totalorder %s10, 4
    %s20 = sphi 0, %s22
    %s23 = sphi 0, %s20
    %s24 = sphi 0, %s23
    %s40 = sphi 0, %s24
    %s44 = sphi 0, %s44
    %s46 = sphi 0, %s44
    %s47 = sphi 0, %s46
    %s61 = sphi 0, %s47
    %s65 = sphi 0, %s65
    %s67 = sphi 0, %s65
    %s68 = sphi 0, %s67
    %s82 = sphi 0, %s68
    %s86 = sphi 0, %s86
    %s88 = sphi 0, %s86
    %s89 = sphi 0, %s88
    %s103 = sphi 0, %s89
    %s109 = sphi 0, %s111
    %s112 = sphi 0, %s109
    %s113 = sphi 0, %s112
    %s129 = sphi 0, %s113
  $region4: #{generator_forward.21} parent=0 // loop_header_branch
    %13 = sbr.rel (%p11) target = $region8
  $region5: #{generator_forward.21} parent=0 // loop_body
    %s15 = ssub.s32 %s10, 1
    %s16 = ssub.s32 %s10, 2
    %s17 = sadd.s32 %s10, 1
    %s18 = ssub.s32 %s10, %s17
    %p19 = scmp.eq.s32.totalorder %s18, 0
    %s21 = sadd.s32 %s20, 1
    %s22 = scalar_select %p19, %s20, %s21
    %p25 = pneg %p19
    %p26 = scmp.eq.s32.totalorder %s10, 1
    %p27 = por %p25, %p26
    %p28 = scmp.ne.s32.totalorder %s20, %s23
    %p29 = scmp.eq.s32.totalorder %s10, 0
    %p30 = por %p28, %p29
    %p31 = scmp.ne.s32.totalorder %s20, %s23
    %p32 = scmp.eq.s32.totalorder %s15, 1
    %p33 = por %p31, %p32
    %p34 = scmp.ne.s32.totalorder %s23, %s24
    %p35 = scmp.eq.s32.totalorder %s15, 0
    %p36 = por %p34, %p35
    %p37 = scmp.ne.s32.totalorder %s23, %s24
    %p38 = scmp.eq.s32.totalorder %s16, 1
    %p39 = por %p37, %p38
    %p41 = scmp.ne.s32.totalorder %s24, %s40
    %p42 = scmp.eq.s32.totalorder %s16, 0
    %p43 = por %p41, %p42
    %s45 = sadd.s32 %s44, 1
    %p48 = scmp.eq.s32.totalorder %s10, 1
    %p49 = scmp.ne.s32.totalorder %s44, %s46
    %p50 = scmp.eq.s32.totalorder %s10, 0
    %p51 = por %p49, %p50
    %p52 = scmp.ne.s32.totalorder %s44, %s46
    %p53 = scmp.eq.s32.totalorder %s15, 1
    %p54 = por %p52, %p53
    %p55 = scmp.ne.s32.totalorder %s46, %s47
    %p56 = scmp.eq.s32.totalorder %s15, 0
    %p57 = por %p55, %p56
    %p58 = scmp.ne.s32.totalorder %s46, %s47
    %p59 = scmp.eq.s32.totalorder %s16, 1
    %p60 = por %p58, %p59
    %p62 = scmp.ne.s32.totalorder %s47, %s61
    %p63 = scmp.eq.s32.totalorder %s16, 0
    %p64 = por %p62, %p63
    %s66 = sadd.s32 %s65, 1
    %p69 = scmp.eq.s32.totalorder %s10, 1
    %p70 = scmp.ne.s32.totalorder %s65, %s67
    %p71 = scmp.eq.s32.totalorder %s10, 0
    %p72 = por %p70, %p71
    %p73 = scmp.ne.s32.totalorder %s65, %s67
    %p74 = scmp.eq.s32.totalorder %s15, 1
    %p75 = por %p73, %p74
    %p76 = scmp.ne.s32.totalorder %s67, %s68
    %p77 = scmp.eq.s32.totalorder %s15, 0
    %p78 = por %p76, %p77
    %p79 = scmp.ne.s32.totalorder %s67, %s68
    %p80 = scmp.eq.s32.totalorder %s16, 1
    %p81 = por %p79, %p80
    %p83 = scmp.ne.s32.totalorder %s68, %s82
    %p84 = scmp.eq.s32.totalorder %s16, 0
    %p85 = por %p83, %p84
    %s87 = sadd.s32 %s86, 1
    %p90 = scmp.eq.s32.totalorder %s10, 1
    %p91 = scmp.ne.s32.totalorder %s86, %s88
    %p92 = scmp.eq.s32.totalorder %s10, 0
    %p93 = por %p91, %p92
    %p94 = scmp.ne.s32.totalorder %s86, %s88
    %p95 = scmp.eq.s32.totalorder %s15, 1
    %p96 = por %p94, %p95
    %p97 = scmp.ne.s32.totalorder %s88, %s89
    %p98 = scmp.eq.s32.totalorder %s15, 0
    %p99 = por %p97, %p98
    %p100 = scmp.ne.s32.totalorder %s88, %s89
    %p101 = scmp.eq.s32.totalorder %s16, 1
    %p102 = por %p100, %p101
    %p104 = scmp.ne.s32.totalorder %s89, %s103
    %p105 = scmp.eq.s32.totalorder %s16, 0
    %p106 = por %p104, %p105
    %s107 = ssub.s32 %s10, %s17
    %p108 = scmp.eq.s32.totalorder %s107, 0
    %s110 = sadd.s32 %s109, 1
    %s111 = scalar_select %p108, %s109, %s110
    %p114 = pneg %p108
    %p115 = scmp.eq.s32.totalorder %s10, 1
    %p116 = por %p114, %p115
    %p117 = scmp.ne.s32.totalorder %s109, %s112
    %p118 = scmp.eq.s32.totalorder %s10, 0
    %p119 = por %p117, %p118
    %p120 = scmp.ne.s32.totalorder %s109, %s112
    %p121 = scmp.eq.s32.totalorder %s15, 1
    %p122 = por %p120, %p121
    %p123 = scmp.ne.s32.totalorder %s112, %s113
    %p124 = scmp.eq.s32.totalorder %s15, 0
    %p125 = por %p123, %p124
    %p126 = scmp.ne.s32.totalorder %s112, %s113
    %p127 = scmp.eq.s32.totalorder %s16, 1
    %p128 = por %p126, %p127
    %p130 = scmp.ne.s32.totalorder %s113, %s129
    %p131 = scmp.eq.s32.totalorder %s16, 0
    %p132 = por %p130, %p131
    %p133 = scmp.le.s32.totalorder 1, %s10
    %p134 = scmp.lt.s32.totalorder %s10, 3
    %p135 = pnand %p133, %p134
    %p136 = pneg %p135
    // Predicated region
    $region9: #{generator_forward.21} parent=5 // pred_check
      _
    $region10: #{generator_forward.21} parent=5 // pred_check_branch
      %138 = sbr.rel (%p135) target = $region12
    $region11: #{generator_forward.21} parent=5 // pred_region
      %s139 = ssub.s32 %s10, 1
      // Predicated region
      $region13: #{generator_forward.21} parent=11 // pred_check
        %p140 = pneg %p57
      $region14: #{generator_forward.21} parent=11 // pred_check_branch
        %142 = sbr.rel (%p140) target = $region16
      $region15: #{generator_forward.21} parent=11 // pred_region
        _
      $region16: #{generator_forward.21} parent=11 // pred_fallthru
        _
      // Predicated region
      $region17: #{generator_forward.21} parent=11 // pred_check
        %p143 = pneg %p78
      $region18: #{generator_forward.21} parent=11 // pred_check_branch
        %145 = sbr.rel (%p143) target = $region20
      $region19: #{generator_forward.21} parent=11 // pred_region
        _
      $region20: #{generator_forward.21} parent=11 // pred_fallthru
        _
      // Predicated region
      $region21: #{generator_forward.21} parent=11 // pred_check
        %p146 = pneg %p99
      $region22: #{generator_forward.21} parent=11 // pred_check_branch
        %148 = sbr.rel (%p146) target = $region24
      $region23: #{generator_forward.21} parent=11 // pred_region
        _
      $region24: #{generator_forward.21} parent=11 // pred_fallthru
        _
    $region12: #{generator_forward.21} parent=5 // pred_fallthru
      _
    %p149 = scmp.lt.s32.totalorder %s10, 2
    // Predicated region
    $region25: #{generator_forward.21} parent=5 // pred_check
      %p150 = pneg %p149
    $region26: #{generator_forward.21} parent=5 // pred_check_branch
      %152 = sbr.rel (%p150) target = $region28
    $region27: #{generator_forward.21} parent=5 // pred_region
      // Predicated region
      $region29: #{generator_forward.21} parent=27 // pred_check
        %p153 = pneg %p30
      $region30: #{generator_forward.21} parent=27 // pred_check_branch
        %155 = sbr.rel (%p153) target = $region32
      $region31: #{generator_forward.21} parent=27 // pred_region
        %s156 = smul.u32 2, %s10
        %p157 = scmp.lt.s32.totalorder %s156, 3
        %s158 = scalar_select %p157, %s156, 3
        %s159 = smul.addr %s158, 4
        %s160 = scalar_lea.vmem %s0, %s159
        %s161 = smul.u32 2, %s10
      $region32: #{generator_forward.21} parent=27 // pred_fallthru
        _
    $region28: #{generator_forward.21} parent=5 // pred_fallthru
      _
    %p162 = scmp.le.s32.totalorder 1, %s10
    %p163 = scmp.lt.s32.totalorder %s10, 3
    %p164 = pnand %p162, %p163
    %p165 = pneg %p164
    // Predicated region
    $region33: #{generator_forward.21} parent=5 // pred_check
      _
    $region34: #{generator_forward.21} parent=5 // pred_check_branch
      %167 = sbr.rel (%p164) target = $region36
    $region35: #{generator_forward.21} parent=5 // pred_region
      %s168 = ssub.s32 %s10, 1
      %s169 = smul.u32 2, %s15
      %p170 = scmp.lt.s32.totalorder %s169, 3
      %s171 = scalar_select %p170, %s169, 3
      %s172 = smul.addr %s171, 4
      %s173 = scalar_lea.vmem %s0, %s172
      %p174 = pneg %p36
      %p175 = pneg %p33
      %p176 = pneg %p57
      %p177 = pneg %p54
      %p178 = pneg %p78
      %p179 = pneg %p75
      %p180 = pneg %p99
      %p181 = pneg %p96
      %p182 = pneg %p125
      %p183 = pneg %p122
      %s184 = smul.u32 2, %s15
      %p185 = scmp.lt.s32.totalorder %s184, 3
      %s186 = scalar_select %p185, %s184, 3
      %s187 = smul.addr %s186, 4
      %s188 = scalar_lea.vmem %s4, %s187
      %s189 = smul.u32 2, %s15
      %p190 = scmp.lt.s32.totalorder %s189, 3
      %s191 = scalar_select %p190, %s189, 3
      %s192 = smul.addr %s191, 4
      %s193 = scalar_lea.vmem %s0, %s192
      %s194 = smul.u32 2, %s15
      %s195 = smul.u32 2, %s15
      %p196 = scmp.lt.s32.totalorder %s195, 3
      %s197 = scalar_select %p196, %s195, 3
      %s198 = smul.addr %s197, 4
      %s199 = scalar_lea.vmem %s4, %s198
      %s200 = smul.u32 2, %s15
      %v201 = vld [vmem:[%s193] sm:$0xf]
      %v202 = vld [vmem:[%s193 + $0x4] sm:$0xf]
      %v203 = vunpack.c.l.bf16 %v201
      %v204 = vunpack.c.l.bf16 %v202
      %v205 = vld [vmem:[%s1] sm:$0x1]
      %v207 = vlaneseq
      %v208 = vshrl.u32 %v207, 7
      %v209 = vsub.s32 0, %v208
      %v210 = vrot.slane %v205, %v209
      %v212 = vadd.f32 %v203, %v210
      %v213 = vadd.f32 %v204, %v210
      %v214 = vmax.f32 %v212, 0.0
      %v215 = vmax.f32 %v213, 0.0
      %v216 = vld [vmem:[%s2] sm:$0x1]
      %v218 = vlaneseq
      %v219 = vshrl.u32 %v218, 7
      %v220 = vsub.s32 0, %v219
      %v221 = vrot.slane %v216, %v220
      %v223 = vmul.f32 %v214, %v221
      %v224 = vmul.f32 %v215, %v221
      %v225 = vld [vmem:[%s3] sm:$0x1]
      %v227 = vlaneseq
      %v228 = vshrl.u32 %v227, 7
      %v229 = vsub.s32 0, %v228
      %v230 = vrot.slane %v225, %v229
      %v232 = vadd.f32 %v223, %v230
      %v233 = vadd.f32 %v224, %v230
      %v234 = vpack.c.bf16 %v233, %v232
      %v236 = vunpack.c.l.b16 %v234
      %v237 = vunpack.c.h.b16 %v234
      %v238 = vpack.c.b16 %v236, %v236
      %v239 = vpack.c.b16 %v237, %v237
      %242 = vst [vmem:[%s199] sm:$0xf] %v238
      %243 = vst [vmem:[%s199 + $0x4] sm:$0xf] %v239
      %s244 = smul.u32 2, %s15
      %p245 = scmp.lt.s32.totalorder %s244, 3
      %s246 = scalar_select %p245, %s244, 3
      %s247 = smul.addr %s246, 4
      %s248 = scalar_lea.vmem %s4, %s247
      // Predicated region
      $region37: #{generator_forward.21} parent=35 // pred_check
        %p249 = pneg %p122
      $region38: #{generator_forward.21} parent=35 // pred_check_branch
        %251 = sbr.rel (%p249) target = $region40
      $region39: #{generator_forward.21} parent=35 // pred_region
        %s252 = smul.u32 2, %s15
      $region40: #{generator_forward.21} parent=35 // pred_fallthru
        _
    $region36: #{generator_forward.21} parent=5 // pred_fallthru
      _
    %p253 = scmp.le.s32.totalorder 2, %s10
    // Predicated region
    $region41: #{generator_forward.21} parent=5 // pred_check
      %p254 = pneg %p253
    $region42: #{generator_forward.21} parent=5 // pred_check_branch
      %256 = sbr.rel (%p254) target = $region44
    $region43: #{generator_forward.21} parent=5 // pred_region
      %s257 = ssub.s32 %s10, 2
      // Predicated region
      $region45: #{generator_forward.21} parent=43 // pred_check
        %p258 = pneg %p128
      $region46: #{generator_forward.21} parent=43 // pred_check_branch
        %260 = sbr.rel (%p258) target = $region48
      $region47: #{generator_forward.21} parent=43 // pred_region
        %s261 = smul.u32 2, %s16
        %p262 = scmp.lt.s32.totalorder %s261, 3
        %s263 = scalar_select %p262, %s261, 3
        %s264 = smul.addr %s263, 4
        %s265 = scalar_lea.vmem %s4, %s264
      $region48: #{generator_forward.21} parent=43 // pred_fallthru
        _
    $region44: #{generator_forward.21} parent=5 // pred_fallthru
      _
  $region6: #{generator_forward.21} parent=0 // loop_footer
    %s14 = sadd.s32 1, %s10
  $region7: #{generator_forward.21} parent=0 // loop_footer_branch
    %9 = sbr.rel target = $region3
  $region8: #{generator_forward.21} parent=0 // loop_exit
    _

// kernel: generator_forward.22
$region0: #{generator_forward.22}
  #allocation0 [shape = 'u32[]', space=smem, size = 0x4, offset = 0x4, fixed_abs, tag = 'smem constant byte address 0x4 - core index']
  #allocation1 [shape = 'u32[144,128]{1,0:T(1,128)}', space=vmem, size = 0x12000, scoped, tag = 'internal scratch']
  %s0 = inlined_call_operand.vmem [shape: bf16[512,8], index: 0, kind: input, shape index: {}]
  %s1 = inlined_call_operand.vmem [shape: bf16[8,128], index: 1, kind: input, shape index: {}]
  %s2 = inlined_call_operand.vmem [shape: bf16[512,128], index: 2, kind: output, shape index: {}]
  %s3 = sld [smem:[#allocation0]]
  $region41: #{generator_forward.22} parent=0
    _
  %s5 = ssub.s32 1, %s3
  %s6 = scalar_select 0, %s5, %s3
  loop: start=0, step=1, limit=4
  $region2: #{generator_forward.22} parent=0 // loop_pre_header
    _
  $region3: #{generator_forward.22} parent=0 // loop_header
    %s8 = sphi 0, %s12
    %p9 = scmp.ge.s32.totalorder %s8, 4
    %s15 = sphi 0, %s27
    %s16 = sphi 0, %s23
    %s17 = sphi 0, %s15
    %s18 = sphi 0, %s16
    %s19 = sphi 0, %s17
    %s20 = sphi 0, %s18
    %s30 = sphi 0, %s32
    %s33 = sphi 0, %s30
    %s34 = sphi 0, %s33
    %s50 = sphi 0, %s34
    %s56 = sphi 0, %s58
    %s59 = sphi 0, %s56
    %s60 = sphi 0, %s59
    %s76 = sphi 0, %s60
    %s84 = sphi 0, %s86
    %s87 = sphi 0, %s84
    %s88 = sphi 0, %s87
    %s104 = sphi 0, %s88
  $region4: #{generator_forward.22} parent=0 // loop_header_branch
    %11 = sbr.rel (%p9) target = $region8
  $region5: #{generator_forward.22} parent=0 // loop_body
    %s13 = ssub.s32 %s8, 1
    %s14 = ssub.s32 %s8, 2
    %s21 = sadd.s32 1, %s16
    %p22 = scmp.ge.s32.totalorder %s21, 1
    %s23 = scalar_select %p22, 0, %s21
    %s24 = sadd.s32 1, %s15
    %s25 = scalar_select %p22, %s24, %s15
    %p26 = scmp.ge.s32.totalorder %s25, 2
    %s27 = scalar_select %p26, 0, %s25
    %s28 = ssub.s32 %s15, %s27
    %p29 = scmp.eq.s32.totalorder %s28, 0
    %s31 = sadd.s32 %s30, 1
    %s32 = scalar_select %p29, %s30, %s31
    %p35 = pneg %p29
    %p36 = scmp.eq.s32.totalorder %s8, 1
    %p37 = por %p35, %p36
    %p38 = scmp.ne.s32.totalorder %s30, %s33
    %p39 = scmp.eq.s32.totalorder %s8, 0
    %p40 = por %p38, %p39
    %p41 = scmp.ne.s32.totalorder %s30, %s33
    %p42 = scmp.eq.s32.totalorder %s13, 1
    %p43 = por %p41, %p42
    %p44 = scmp.ne.s32.totalorder %s33, %s34
    %p45 = scmp.eq.s32.totalorder %s13, 0
    %p46 = por %p44, %p45
    %p47 = scmp.ne.s32.totalorder %s33, %s34
    %p48 = scmp.eq.s32.totalorder %s14, 1
    %p49 = por %p47, %p48
    %p51 = scmp.ne.s32.totalorder %s34, %s50
    %p52 = scmp.eq.s32.totalorder %s14, 0
    %p53 = por %p51, %p52
    %s54 = ssub.s32 %s16, %s23
    %p55 = scmp.eq.s32.totalorder %s54, 0
    %s57 = sadd.s32 %s56, 1
    %s58 = scalar_select %p55, %s56, %s57
    %p61 = pneg %p55
    %p62 = scmp.eq.s32.totalorder %s8, 1
    %p63 = por %p61, %p62
    %p64 = scmp.ne.s32.totalorder %s56, %s59
    %p65 = scmp.eq.s32.totalorder %s8, 0
    %p66 = por %p64, %p65
    %p67 = scmp.ne.s32.totalorder %s56, %s59
    %p68 = scmp.eq.s32.totalorder %s13, 1
    %p69 = por %p67, %p68
    %p70 = scmp.ne.s32.totalorder %s59, %s60
    %p71 = scmp.eq.s32.totalorder %s13, 0
    %p72 = por %p70, %p71
    %p73 = scmp.ne.s32.totalorder %s59, %s60
    %p74 = scmp.eq.s32.totalorder %s14, 1
    %p75 = por %p73, %p74
    %p77 = scmp.ne.s32.totalorder %s60, %s76
    %p78 = scmp.eq.s32.totalorder %s14, 0
    %p79 = por %p77, %p78
    %s80 = ssub.s32 %s15, %s27
    %s81 = ssub.s32 %s16, %s23
    %s82 = sor.u32 %s80, %s81
    %p83 = scmp.eq.s32.totalorder %s82, 0
    %s85 = sadd.s32 %s84, 1
    %s86 = scalar_select %p83, %s84, %s85
    %p89 = pneg %p83
    %p90 = scmp.eq.s32.totalorder %s8, 1
    %p91 = por %p89, %p90
    %p92 = scmp.ne.s32.totalorder %s84, %s87
    %p93 = scmp.eq.s32.totalorder %s8, 0
    %p94 = por %p92, %p93
    %p95 = scmp.ne.s32.totalorder %s84, %s87
    %p96 = scmp.eq.s32.totalorder %s13, 1
    %p97 = por %p95, %p96
    %p98 = scmp.ne.s32.totalorder %s87, %s88
    %p99 = scmp.eq.s32.totalorder %s13, 0
    %p100 = por %p98, %p99
    %p101 = scmp.ne.s32.totalorder %s87, %s88
    %p102 = scmp.eq.s32.totalorder %s14, 1
    %p103 = por %p101, %p102
    %p105 = scmp.ne.s32.totalorder %s88, %s104
    %p106 = scmp.eq.s32.totalorder %s14, 0
    %p107 = por %p105, %p106
    %p108 = scmp.le.s32.totalorder 1, %s8
    %p109 = scmp.lt.s32.totalorder %s8, 3
    %p110 = pnand %p108, %p109
    %p111 = pneg %p110
    // Predicated region
    $region9: #{generator_forward.22} parent=5 // pred_check
      _
    $region10: #{generator_forward.22} parent=5 // pred_check_branch
      %113 = sbr.rel (%p110) target = $region12
    $region11: #{generator_forward.22} parent=5 // pred_region
      %s114 = ssub.s32 %s8, 1
      // Predicated region
      $region13: #{generator_forward.22} parent=11 // pred_check
        %p115 = pneg %p72
      $region14: #{generator_forward.22} parent=11 // pred_check_branch
        %117 = sbr.rel (%p115) target = $region16
      $region15: #{generator_forward.22} parent=11 // pred_region
        %p118 = scmp.lt.s32.totalorder %s18, 0
        %s119 = scalar_select %p118, %s18, 0
        %s120 = smul.addr %s119, 4
        %s121 = scalar_lea.vmem %s1, %s120
      $region16: #{generator_forward.22} parent=11 // pred_fallthru
        _
    $region12: #{generator_forward.22} parent=5 // pred_fallthru
      _
    %p122 = scmp.lt.s32.totalorder %s8, 2
    // Predicated region
    $region17: #{generator_forward.22} parent=5 // pred_check
      %p123 = pneg %p122
    $region18: #{generator_forward.22} parent=5 // pred_check_branch
      %125 = sbr.rel (%p123) target = $region20
    $region19: #{generator_forward.22} parent=5 // pred_region
      // Predicated region
      $region21: #{generator_forward.22} parent=19 // pred_check
        %p126 = pneg %p40
      $region22: #{generator_forward.22} parent=19 // pred_check_branch
        %128 = sbr.rel (%p126) target = $region24
      $region23: #{generator_forward.22} parent=19 // pred_region
        %s129 = smul.u32 32, %s15
        %p130 = scmp.lt.s32.totalorder %s129, 63
        %s131 = scalar_select %p130, %s129, 63
        %s132 = smul.addr %s131, 4
        %s133 = scalar_lea.vmem %s0, %s132
        %s134 = smul.u32 32, %s15
      $region24: #{generator_forward.22} parent=19 // pred_fallthru
        _
    $region20: #{generator_forward.22} parent=5 // pred_fallthru
      _
    %p135 = scmp.le.s32.totalorder 1, %s8
    %p136 = scmp.lt.s32.totalorder %s8, 3
    %p137 = pnand %p135, %p136
    %p138 = pneg %p137
    // Predicated region
    $region25: #{generator_forward.22} parent=5 // pred_check
      _
    $region26: #{generator_forward.22} parent=5 // pred_check_branch
      %140 = sbr.rel (%p137) target = $region28
    $region27: #{generator_forward.22} parent=5 // pred_region
      %s141 = ssub.s32 %s8, 1
      %s142 = smul.u32 32, %s17
      %p143 = scmp.lt.s32.totalorder %s142, 63
      %s144 = scalar_select %p143, %s142, 63
      %s145 = smul.addr %s144, 4
      %s146 = scalar_lea.vmem %s0, %s145
      %p147 = pneg %p46
      %p148 = pneg %p43
      %p149 = scmp.lt.s32.totalorder %s18, 0
      %s150 = scalar_select %p149, %s18, 0
      %s151 = smul.addr %s150, 4
      %s152 = scalar_lea.vmem %s1, %s151
      %p153 = pneg %p72
      %p154 = pneg %p69
      %p155 = pneg %p100
      %p156 = pneg %p97
      %s157 = smul.u32 32, %s17
      %p158 = scmp.lt.s32.totalorder %s157, 63
      %s159 = scalar_select %p158, %s157, 63
      %p160 = scmp.lt.s32.totalorder %s18, 0
      %s161 = scalar_select %p160, %s18, 0
      %s162 = sadd.s32 %s161, %s159
      %s163 = smul.addr %s162, 4
      %s164 = scalar_lea.vmem %s2, %s163
      %s165 = smul.u32 32, %s17
      %p166 = scmp.lt.s32.totalorder %s165, 63
      %s167 = scalar_select %p166, %s165, 63
      %s168 = smul.addr %s167, 4
      %s169 = scalar_lea.vmem %s0, %s168
      %s170 = smul.u32 32, %s17
      %p171 = scmp.lt.s32.totalorder %s18, 0
      %s172 = scalar_select %p171, %s18, 0
      %s173 = smul.addr %s172, 4
      %s174 = scalar_lea.vmem %s1, %s173
      %s175 = smul.u32 32, %s17
      %p176 = scmp.lt.s32.totalorder %s175, 63
      %s177 = scalar_select %p176, %s175, 63
      %p178 = scmp.lt.s32.totalorder %s18, 0
      %s179 = scalar_select %p178, %s18, 0
      %s180 = sadd.s32 %s179, %s177
      %s181 = smul.addr %s180, 4
      %s182 = scalar_lea.vmem %s2, %s181
      %s183 = smul.u32 32, %s17
      %v185 = vld [vmem:[%s169] sm:$0xf]
      %v186 = vld [vmem:[%s169 + $0x4] sm:$0xf]
      %v187 = vld [vmem:[%s169 + $0x8] sm:$0xf]
      %v188 = vld [vmem:[%s169 + $0xc] sm:$0xf]
      %v189 = vld [vmem:[%s169 + $0x10] sm:$0xf]
      %v190 = vld [vmem:[%s169 + $0x14] sm:$0xf]
      %v191 = vld [vmem:[%s169 + $0x18] sm:$0xf]
      %v192 = vld [vmem:[%s169 + $0x1c] sm:$0xf]
      %v193 = vld [vmem:[%s169 + $0x20] sm:$0xf]
      %v194 = vld [vmem:[%s169 + $0x24] sm:$0xf]
      %v195 = vld [vmem:[%s169 + $0x28] sm:$0xf]
      %v196 = vld [vmem:[%s169 + $0x2c] sm:$0xf]
      %v197 = vld [vmem:[%s169 + $0x30] sm:$0xf]
      %v198 = vld [vmem:[%s169 + $0x34] sm:$0xf]
      %v199 = vld [vmem:[%s169 + $0x38] sm:$0xf]
      %v200 = vld [vmem:[%s169 + $0x3c] sm:$0xf]
      %v201 = vld [vmem:[%s169 + $0x40] sm:$0xf]
      %v202 = vld [vmem:[%s169 + $0x44] sm:$0xf]
      %v203 = vld [vmem:[%s169 + $0x48] sm:$0xf]
      %v204 = vld [vmem:[%s169 + $0x4c] sm:$0xf]
      %v205 = vld [vmem:[%s169 + $0x50] sm:$0xf]
      %v206 = vld [vmem:[%s169 + $0x54] sm:$0xf]
      %v207 = vld [vmem:[%s169 + $0x58] sm:$0xf]
      %v208 = vld [vmem:[%s169 + $0x5c] sm:$0xf]
      %v209 = vld [vmem:[%s169 + $0x60] sm:$0xf]
      %v210 = vld [vmem:[%s169 + $0x64] sm:$0xf]
      %v211 = vld [vmem:[%s169 + $0x68] sm:$0xf]
      %v212 = vld [vmem:[%s169 + $0x6c] sm:$0xf]
      %v213 = vld [vmem:[%s169 + $0x70] sm:$0xf]
      %v214 = vld [vmem:[%s169 + $0x74] sm:$0xf]
      %v215 = vld [vmem:[%s169 + $0x78] sm:$0xf]
      %v216 = vld [vmem:[%s169 + $0x7c] sm:$0xf]
      %v217 = vld [vmem:[%s174] sm:$0xf]
      %v250 = vunpack.c.l.b16 %v185
      %v251 = vunpack.c.l.b16 %v186
      %v252 = vunpack.c.l.b16 %v187
      %v253 = vunpack.c.l.b16 %v188
      %v254 = vunpack.c.l.b16 %v189
      %v255 = vunpack.c.l.b16 %v190
      %v256 = vunpack.c.l.b16 %v191
      %v257 = vunpack.c.l.b16 %v192
      %v258 = vunpack.c.l.b16 %v193
      %v259 = vunpack.c.l.b16 %v194
      %v260 = vunpack.c.l.b16 %v195
      %v261 = vunpack.c.l.b16 %v196
      %v262 = vunpack.c.l.b16 %v197
      %v263 = vunpack.c.l.b16 %v198
      %v264 = vunpack.c.l.b16 %v199
      %v265 = vunpack.c.l.b16 %v200
      %v266 = vunpack.c.l.b16 %v201
      %v267 = vunpack.c.l.b16 %v202
      %v268 = vunpack.c.l.b16 %v203
      %v269 = vunpack.c.l.b16 %v204
      %v270 = vunpack.c.l.b16 %v205
      %v271 = vunpack.c.l.b16 %v206
      %v272 = vunpack.c.l.b16 %v207
      %v273 = vunpack.c.l.b16 %v208
      %v274 = vunpack.c.l.b16 %v209
      %v275 = vunpack.c.l.b16 %v210
      %v276 = vunpack.c.l.b16 %v211
      %v277 = vunpack.c.l.b16 %v212
      %v278 = vunpack.c.l.b16 %v213
      %v279 = vunpack.c.l.b16 %v214
      %v280 = vunpack.c.l.b16 %v215
      %v281 = vunpack.c.l.b16 %v216
      %v282 = vpack.c.b16 %v251, %v250
      %v283 = vpack.c.b16 %v253, %v252
      %v284 = vpack.c.b16 %v255, %v254
      %v285 = vpack.c.b16 %v257, %v256
      %v286 = vpack.c.b16 %v259, %v258
      %v287 = vpack.c.b16 %v261, %v260
      %v288 = vpack.c.b16 %v263, %v262
      %v289 = vpack.c.b16 %v265, %v264
      %v290 = vpack.c.b16 %v267, %v266
      %v291 = vpack.c.b16 %v269, %v268
      %v292 = vpack.c.b16 %v271, %v270
      %v293 = vpack.c.b16 %v273, %v272
      %v294 = vpack.c.b16 %v275, %v274
      %v295 = vpack.c.b16 %v277, %v276
      %v296 = vpack.c.b16 %v279, %v278
      %v297 = vpack.c.b16 %v281, %v280
      %vm298 = vcmask 64512
      %v300 = vsel %vm298, %v282, 0
      %v303 = vsel %vm298, %v283, 0
      %v306 = vsel %vm298, %v284, 0
      %v309 = vsel %vm298, %v285, 0
      %v312 = vsel %vm298, %v286, 0
      %v315 = vsel %vm298, %v287, 0
      %v318 = vsel %vm298, %v288, 0
      %v321 = vsel %vm298, %v289, 0
      %v324 = vsel %vm298, %v290, 0
      %v327 = vsel %vm298, %v291, 0
      %v330 = vsel %vm298, %v292, 0
      %v333 = vsel %vm298, %v293, 0
      %v336 = vsel %vm298, %v294, 0
      %v339 = vsel %vm298, %v295, 0
      %v342 = vsel %vm298, %v296, 0
      %v345 = vsel %vm298, %v297, 0
      %vm347 = vcmask 1043456
      %v349 = vsel %vm347, %v217, 0
      %351 = vmatprep.subr.bf16.mxu0 0
      %352 = vmatpush1.bf16.msra.mxu0 0
      %353 = vmatprep.subr.bf16.mxu0 0
      %354 = vmatpush1.bf16.msra.mxu0 0
      %355 = vmatprep.subr.bf16.mxu0 0
      %356 = vmatpush1.bf16.msra.mxu0 0
      %357 = vmatprep.subr.bf16.mxu0 0
      %358 = vmatpush1.bf16.msra.mxu0 0
      %359 = vmatprep.subr.bf16.mxu0 0
      %360 = vmatpush1.bf16.msra.mxu0 0
      %361 = vmatprep.subr.bf16.mxu0 0
      %362 = vmatpush1.bf16.msra.mxu0 0
      %363 = vmatprep.subr.bf16.mxu0 0
      %364 = vmatpush1.bf16.msra.mxu0 0
      %365 = vmatprep.subr.bf16.mxu0 0
      %366 = vmatpush1.bf16.msra.mxu0 %v349
      %367 = vmatprep.subr.bf16.mxu0 0
      %368 = vmatpush2.bf16.msra.mxu0 0
      %369 = vmatprep.subr.bf16.mxu0 0
      %370 = vmatpush2.bf16.msra.mxu0 0
      %371 = vmatprep.subr.bf16.mxu0 0
      %372 = vmatpush2.bf16.msra.mxu0 0
      %373 = vmatprep.subr.bf16.mxu0 0
      %374 = vmatpush2.bf16.msra.mxu0 0
      %375 = vmatprep.subr.bf16.mxu0 0
      %376 = vmatpush2.bf16.msra.mxu0 0
      %377 = vmatprep.subr.bf16.mxu0 0
      %378 = vmatpush2.bf16.msra.mxu0 0
      %379 = vmatprep.subr.bf16.mxu0 0
      %380 = vmatpush2.bf16.msra.mxu0 0
      %381 = vmatprep.subr.bf16.mxu0 0
      %382 = vmatpush2.bf16.msra.mxu0 0
      %383 = vmatprep.mubr.bf16.mxu0 0
      %384 = vmatmul.mubr.bf16.gmra.mxu0 %v300
      %v385 = vpop.f32.mrf.mxu0
      %v386 = vadd.f32 0.0, %v385
      %v387 = vpop.f32.mrf.mxu0
      %v388 = vpop.f32.mrf.mxu0
      %v389 = vadd.f32 0.0, %v388
      %v390 = vpop.f32.mrf.mxu0
      %391 = vmatprep.mubr.bf16.mxu0 0
      %392 = vmatmul.mubr.bf16.gmra.mxu0 %v303
      %v393 = vpop.f32.mrf.mxu0
      %v394 = vadd.f32 0.0, %v393
      %v395 = vpop.f32.mrf.mxu0
      %v396 = vpop.f32.mrf.mxu0
      %v397 = vadd.f32 0.0, %v396
      %v398 = vpop.f32.mrf.mxu0
      %399 = vmatprep.mubr.bf16.mxu0 0
      %400 = vmatmul.mubr.bf16.gmra.mxu0 %v306
      %v401 = vpop.f32.mrf.mxu0
      %v402 = vadd.f32 0.0, %v401
      %v403 = vpop.f32.mrf.mxu0
      %v404 = vpop.f32.mrf.mxu0
      %v405 = vadd.f32 0.0, %v404
      %v406 = vpop.f32.mrf.mxu0
      %407 = vmatprep.mubr.bf16.mxu0 0
      %408 = vmatmul.mubr.bf16.gmra.mxu0 %v309
      %v409 = vpop.f32.mrf.mxu0
      %v410 = vadd.f32 0.0, %v409
      %v411 = vpop.f32.mrf.mxu0
      %v412 = vpop.f32.mrf.mxu0
      %v413 = vadd.f32 0.0, %v412
      %v414 = vpop.f32.mrf.mxu0
      %415 = vmatprep.mubr.bf16.mxu0 0
      %416 = vmatmul.mubr.bf16.gmra.mxu0 %v312
      %v417 = vpop.f32.mrf.mxu0
      %v418 = vadd.f32 0.0, %v417
      %v419 = vpop.f32.mrf.mxu0
      %v420 = vpop.f32.mrf.mxu0
      %v421 = vadd.f32 0.0, %v420
      %v422 = vpop.f32.mrf.mxu0
      %423 = vmatprep.mubr.bf16.mxu0 0
      %424 = vmatmul.mubr.bf16.gmra.mxu0 %v315
      %v425 = vpop.f32.mrf.mxu0
      %v426 = vadd.f32 0.0, %v425
      %v427 = vpop.f32.mrf.mxu0
      %v428 = vpop.f32.mrf.mxu0
      %v429 = vadd.f32 0.0, %v428
      %v430 = vpop.f32.mrf.mxu0
      %431 = vmatprep.mubr.bf16.mxu0 0
      %432 = vmatmul.mubr.bf16.gmra.mxu0 %v318
      %v433 = vpop.f32.mrf.mxu0
      %v434 = vadd.f32 0.0, %v433
      %v435 = vpop.f32.mrf.mxu0
      %v436 = vpop.f32.mrf.mxu0
      %v437 = vadd.f32 0.0, %v436
      %v438 = vpop.f32.mrf.mxu0
      %439 = vmatprep.mubr.bf16.mxu0 0
      %440 = vmatmul.mubr.bf16.gmra.mxu0 %v321
      %v441 = vpop.f32.mrf.mxu0
      %v442 = vadd.f32 0.0, %v441
      %v443 = vpop.f32.mrf.mxu0
      %v444 = vpop.f32.mrf.mxu0
      %v445 = vadd.f32 0.0, %v444
      %v446 = vpop.f32.mrf.mxu0
      %447 = vmatprep.mubr.bf16.mxu0 0
      %448 = vmatmul.mubr.bf16.gmra.mxu0 %v324
      %v449 = vpop.f32.mrf.mxu0
      %v450 = vadd.f32 0.0, %v449
      %v451 = vpop.f32.mrf.mxu0
      %v452 = vpop.f32.mrf.mxu0
      %v453 = vadd.f32 0.0, %v452
      %v454 = vpop.f32.mrf.mxu0
      %455 = vmatprep.mubr.bf16.mxu0 0
      %456 = vmatmul.mubr.bf16.gmra.mxu0 %v327
      %v457 = vpop.f32.mrf.mxu0
      %v458 = vadd.f32 0.0, %v457
      %v459 = vpop.f32.mrf.mxu0
      %v460 = vpop.f32.mrf.mxu0
      %v461 = vadd.f32 0.0, %v460
      %v462 = vpop.f32.mrf.mxu0
      %463 = vmatprep.mubr.bf16.mxu0 0
      %464 = vmatmul.mubr.bf16.gmra.mxu0 %v330
      %v465 = vpop.f32.mrf.mxu0
      %v466 = vadd.f32 0.0, %v465
      %v467 = vpop.f32.mrf.mxu0
      %v468 = vpop.f32.mrf.mxu0
      %v469 = vadd.f32 0.0, %v468
      %v470 = vpop.f32.mrf.mxu0
      %471 = vmatprep.mubr.bf16.mxu0 0
      %472 = vmatmul.mubr.bf16.gmra.mxu0 %v333
      %v473 = vpop.f32.mrf.mxu0
      %v474 = vadd.f32 0.0, %v473
      %v475 = vpop.f32.mrf.mxu0
      %v476 = vpop.f32.mrf.mxu0
      %v477 = vadd.f32 0.0, %v476
      %v478 = vpop.f32.mrf.mxu0
      %479 = vmatprep.mubr.bf16.mxu0 0
      %480 = vmatmul.mubr.bf16.gmra.mxu0 %v336
      %v481 = vpop.f32.mrf.mxu0
      %v482 = vadd.f32 0.0, %v481
      %v483 = vpop.f32.mrf.mxu0
      %v484 = vpop.f32.mrf.mxu0
      %v485 = vadd.f32 0.0, %v484
      %v486 = vpop.f32.mrf.mxu0
      %487 = vmatprep.mubr.bf16.mxu0 0
      %488 = vmatmul.mubr.bf16.gmra.mxu0 %v339
      %v489 = vpop.f32.mrf.mxu0
      %v490 = vadd.f32 0.0, %v489
      %v491 = vpop.f32.mrf.mxu0
      %v492 = vpop.f32.mrf.mxu0
      %v493 = vadd.f32 0.0, %v492
      %v494 = vpop.f32.mrf.mxu0
      %495 = vmatprep.mubr.bf16.mxu0 0
      %496 = vmatmul.mubr.bf16.gmra.mxu0 %v342
      %v497 = vpop.f32.mrf.mxu0
      %v498 = vadd.f32 0.0, %v497
      %v499 = vpop.f32.mrf.mxu0
      %v500 = vpop.f32.mrf.mxu0
      %v501 = vadd.f32 0.0, %v500
      %v502 = vpop.f32.mrf.mxu0
      %503 = vmatprep.mubr.bf16.mxu0 0
      %504 = vmatmul.mubr.bf16.gmra.mxu0 %v345
      %v505 = vpop.f32.mrf.mxu0
      %v506 = vadd.f32 0.0, %v505
      %v507 = vpop.f32.mrf.mxu0
      %v508 = vpop.f32.mrf.mxu0
      %v509 = vadd.f32 0.0, %v508
      %v510 = vpop.f32.mrf.mxu0
      %511 = vdwg.mxu0
      %v512 = vpack.c.bf16 %v389, %v386
      %v513 = vpack.c.bf16 %v397, %v394
      %v514 = vpack.c.bf16 %v405, %v402
      %v515 = vpack.c.bf16 %v413, %v410
      %v516 = vpack.c.bf16 %v421, %v418
      %v517 = vpack.c.bf16 %v429, %v426
      %v518 = vpack.c.bf16 %v437, %v434
      %v519 = vpack.c.bf16 %v445, %v442
      %v520 = vpack.c.bf16 %v453, %v450
      %v521 = vpack.c.bf16 %v461, %v458
      %v522 = vpack.c.bf16 %v469, %v466
      %v523 = vpack.c.bf16 %v477, %v474
      %v524 = vpack.c.bf16 %v485, %v482
      %v525 = vpack.c.bf16 %v493, %v490
      %v526 = vpack.c.bf16 %v501, %v498
      %v527 = vpack.c.bf16 %v509, %v506
      %v544 = vunpack.c.l.b16 %v512
      %v545 = vunpack.c.h.b16 %v512
      %v546 = vunpack.c.l.b16 %v513
      %v547 = vunpack.c.h.b16 %v513
      %v548 = vunpack.c.l.b16 %v514
      %v549 = vunpack.c.h.b16 %v514
      %v550 = vunpack.c.l.b16 %v515
      %v551 = vunpack.c.h.b16 %v515
      %v552 = vunpack.c.l.b16 %v516
      %v553 = vunpack.c.h.b16 %v516
      %v554 = vunpack.c.l.b16 %v517
      %v555 = vunpack.c.h.b16 %v517
      %v556 = vunpack.c.l.b16 %v518
      %v557 = vunpack.c.h.b16 %v518
      %v558 = vunpack.c.l.b16 %v519
      %v559 = vunpack.c.h.b16 %v519
      %v560 = vunpack.c.l.b16 %v520
      %v561 = vunpack.c.h.b16 %v520
      %v562 = vunpack.c.l.b16 %v521
      %v563 = vunpack.c.h.b16 %v521
      %v564 = vunpack.c.l.b16 %v522
      %v565 = vunpack.c.h.b16 %v522
      %v566 = vunpack.c.l.b16 %v523
      %v567 = vunpack.c.h.b16 %v523
      %v568 = vunpack.c.l.b16 %v524
      %v569 = vunpack.c.h.b16 %v524
      %v570 = vunpack.c.l.b16 %v525
      %v571 = vunpack.c.h.b16 %v525
      %v572 = vunpack.c.l.b16 %v526
      %v573 = vunpack.c.h.b16 %v526
      %v574 = vunpack.c.l.b16 %v527
      %v575 = vunpack.c.h.b16 %v527
      %v576 = vpack.c.b16 %v544, %v544
      %v577 = vpack.c.b16 %v545, %v545
      %v578 = vpack.c.b16 %v546, %v546
      %v579 = vpack.c.b16 %v547, %v547
      %v580 = vpack.c.b16 %v548, %v548
      %v581 = vpack.c.b16 %v549, %v549
      %v582 = vpack.c.b16 %v550, %v550
      %v583 = vpack.c.b16 %v551, %v551
      %v584 = vpack.c.b16 %v552, %v552
      %v585 = vpack.c.b16 %v553, %v553
      %v586 = vpack.c.b16 %v554, %v554
      %v587 = vpack.c.b16 %v555, %v555
      %v588 = vpack.c.b16 %v556, %v556
      %v589 = vpack.c.b16 %v557, %v557
      %v590 = vpack.c.b16 %v558, %v558
      %v591 = vpack.c.b16 %v559, %v559
      %v592 = vpack.c.b16 %v560, %v560
      %v593 = vpack.c.b16 %v561, %v561
      %v594 = vpack.c.b16 %v562, %v562
      %v595 = vpack.c.b16 %v563, %v563
      %v596 = vpack.c.b16 %v564, %v564
      %v597 = vpack.c.b16 %v565, %v565
      %v598 = vpack.c.b16 %v566, %v566
      %v599 = vpack.c.b16 %v567, %v567
      %v600 = vpack.c.b16 %v568, %v568
      %v601 = vpack.c.b16 %v569, %v569
      %v602 = vpack.c.b16 %v570, %v570
      %v603 = vpack.c.b16 %v571, %v571
      %v604 = vpack.c.b16 %v572, %v572
      %v605 = vpack.c.b16 %v573, %v573
      %v606 = vpack.c.b16 %v574, %v574
      %v607 = vpack.c.b16 %v575, %v575
      %640 = vst [vmem:[%s182] sm:$0xf] %v576
      %641 = vst [vmem:[%s182 + $0x4] sm:$0xf] %v577
      %642 = vst [vmem:[%s182 + $0x8] sm:$0xf] %v578
      %643 = vst [vmem:[%s182 + $0xc] sm:$0xf] %v579
      %644 = vst [vmem:[%s182 + $0x10] sm:$0xf] %v580
      %645 = vst [vmem:[%s182 + $0x14] sm:$0xf] %v581
      %646 = vst [vmem:[%s182 + $0x18] sm:$0xf] %v582
      %647 = vst [vmem:[%s182 + $0x1c] sm:$0xf] %v583
      %648 = vst [vmem:[%s182 + $0x20] sm:$0xf] %v584
      %649 = vst [vmem:[%s182 + $0x24] sm:$0xf] %v585
      %650 = vst [vmem:[%s182 + $0x28] sm:$0xf] %v586
      %651 = vst [vmem:[%s182 + $0x2c] sm:$0xf] %v587
      %652 = vst [vmem:[%s182 + $0x30] sm:$0xf] %v588
      %653 = vst [vmem:[%s182 + $0x34] sm:$0xf] %v589
      %654 = vst [vmem:[%s182 + $0x38] sm:$0xf] %v590
      %655 = vst [vmem:[%s182 + $0x3c] sm:$0xf] %v591
      %656 = vst [vmem:[%s182 + $0x40] sm:$0xf] %v592
      %657 = vst [vmem:[%s182 + $0x44] sm:$0xf] %v593
      %658 = vst [vmem:[%s182 + $0x48] sm:$0xf] %v594
      %659 = vst [vmem:[%s182 + $0x4c] sm:$0xf] %v595
      %660 = vst [vmem:[%s182 + $0x50] sm:$0xf] %v596
      %661 = vst [vmem:[%s182 + $0x54] sm:$0xf] %v597
      %662 = vst [vmem:[%s182 + $0x58] sm:$0xf] %v598
      %663 = vst [vmem:[%s182 + $0x5c] sm:$0xf] %v599
      %664 = vst [vmem:[%s182 + $0x60] sm:$0xf] %v600
      %665 = vst [vmem:[%s182 + $0x64] sm:$0xf] %v601
      %666 = vst [vmem:[%s182 + $0x68] sm:$0xf] %v602
      %667 = vst [vmem:[%s182 + $0x6c] sm:$0xf] %v603
      %668 = vst [vmem:[%s182 + $0x70] sm:$0xf] %v604
      %669 = vst [vmem:[%s182 + $0x74] sm:$0xf] %v605
      %670 = vst [vmem:[%s182 + $0x78] sm:$0xf] %v606
      %671 = vst [vmem:[%s182 + $0x7c] sm:$0xf] %v607
      %s672 = smul.u32 32, %s17
      %p673 = scmp.lt.s32.totalorder %s672, 63
      %s674 = scalar_select %p673, %s672, 63
      %p675 = scmp.lt.s32.totalorder %s18, 0
      %s676 = scalar_select %p675, %s18, 0
      %s677 = sadd.s32 %s676, %s674
      %s678 = smul.addr %s677, 4
      %s679 = scalar_lea.vmem %s2, %s678
      // Predicated region
      $region29: #{generator_forward.22} parent=27 // pred_check
        %p680 = pneg %p97
      $region30: #{generator_forward.22} parent=27 // pred_check_branch
        %682 = sbr.rel (%p680) target = $region32
      $region31: #{generator_forward.22} parent=27 // pred_region
        %s683 = smul.u32 32, %s17
      $region32: #{generator_forward.22} parent=27 // pred_fallthru
        _
    $region28: #{generator_forward.22} parent=5 // pred_fallthru
      _
    %p684 = scmp.le.s32.totalorder 2, %s8
    // Predicated region
    $region33: #{generator_forward.22} parent=5 // pred_check
      %p685 = pneg %p684
    $region34: #{generator_forward.22} parent=5 // pred_check_branch
      %687 = sbr.rel (%p685) target = $region36
    $region35: #{generator_forward.22} parent=5 // pred_region
      %s688 = ssub.s32 %s8, 2
      // Predicated region
      $region37: #{generator_forward.22} parent=35 // pred_check
        %p689 = pneg %p103
      $region38: #{generator_forward.22} parent=35 // pred_check_branch
        %691 = sbr.rel (%p689) target = $region40
      $region39: #{generator_forward.22} parent=35 // pred_region
        %s692 = smul.u32 32, %s19
        %p693 = scmp.lt.s32.totalorder %s692, 63
        %s694 = scalar_select %p693, %s692, 63
        %p695 = scmp.lt.s32.totalorder %s20, 0
        %s696 = scalar_select %p695, %s20, 0
        %s697 = sadd.s32 %s696, %s694
        %s698 = smul.addr %s697, 4
        %s699 = scalar_lea.vmem %s2, %s698
      $region40: #{generator_forward.22} parent=35 // pred_fallthru
        _
    $region36: #{generator_forward.22} parent=5 // pred_fallthru
      _
  $region6: #{generator_forward.22} parent=0 // loop_footer
    %s12 = sadd.s32 1, %s8
  $region7: #{generator_forward.22} parent=0 // loop_footer_branch
    %7 = sbr.rel target = $region3
  $region8: #{generator_forward.22} parent=0 // loop_exit
    _

// kernel: tile.32
$region0: #{tile.32}
  #allocation0 [shape = 's32[1]{0}', space=sflag, size = 0x4, scoped, tag = 'scoped memory for tile.32']
  %s0 = inlined_call_operand.<no memory space> [shape: f32[], index: 0, kind: input, shape index: {}]
  %s1 = inlined_call_operand.vmem [shape: f32[1,384], index: 1, kind: output, shape index: {}]
  %v2 = vstv %s0
  %3 = vst [vmem:[%s1] sm:$0x1] %v2
  %s4 = scalar_lea.vmem %s1, 1
  %5 = vst [vmem:[%s4] sm:$0x1] %v2
  %s6 = scalar_lea.vmem %s1, 2
  %7 = vst [vmem:[%s6] sm:$0x1] %v2

// kernel: generator_forward.23
$region0: #{generator_forward.23}
  #allocation0 [shape = 'u32[]', space=smem, size = 0x4, offset = 0x4, fixed_abs, tag = 'smem constant byte address 0x4 - core index']
  #allocation1 [shape = 'u32[144,128]{1,0:T(1,128)}', space=vmem, size = 0x12000, scoped, tag = 'internal scratch']
  %s0 = inlined_call_operand.vmem [shape: bf16[16,384], index: 0, kind: input, shape index: {}]
  %s1 = inlined_call_operand.vmem [shape: f32[1,384], index: 1, kind: input, shape index: {}]
  %s2 = inlined_call_operand.vmem [shape: f32[1,384], index: 2, kind: input, shape index: {}]
  %s3 = inlined_call_operand.vmem [shape: f32[1,384], index: 3, kind: input, shape index: {}]
  %s4 = inlined_call_operand.vmem [shape: f32[16,384], index: 4, kind: output, shape index: {}]
  %s5 = sld [smem:[#allocation0]]
  $region26: #{generator_forward.23} parent=0
    _
  %s7 = ssub.s32 1, %s5
  %s8 = scalar_select 0, %s7, %s5
  // Predicated region
  $region2: #{generator_forward.23} parent=0 // pred_check
    _
  $region3: #{generator_forward.23} parent=0 // pred_check_branch
    %10 = sbr.rel (0) target = $region5
  $region4: #{generator_forward.23} parent=0 // pred_region
    _
  $region5: #{generator_forward.23} parent=0 // pred_fallthru
    _
  // Predicated region
  $region6: #{generator_forward.23} parent=0 // pred_check
    _
  $region7: #{generator_forward.23} parent=0 // pred_check_branch
    %12 = sbr.rel (0) target = $region9
  $region8: #{generator_forward.23} parent=0 // pred_region
    _
  $region9: #{generator_forward.23} parent=0 // pred_fallthru
    _
  // Predicated region
  $region10: #{generator_forward.23} parent=0 // pred_check
    _
  $region11: #{generator_forward.23} parent=0 // pred_check_branch
    %14 = sbr.rel (0) target = $region13
  $region12: #{generator_forward.23} parent=0 // pred_region
    _
  $region13: #{generator_forward.23} parent=0 // pred_fallthru
    _
  // Predicated region
  $region14: #{generator_forward.23} parent=0 // pred_check
    _
  $region15: #{generator_forward.23} parent=0 // pred_check_branch
    %16 = sbr.rel (0) target = $region17
  $region16: #{generator_forward.23} parent=0 // pred_region
    _
  $region17: #{generator_forward.23} parent=0 // pred_fallthru
    _
  %v17 = vld [vmem:[%s0] sm:$0xff]
  %v18 = vld [vmem:[%s0 + $0x8] sm:$0xf]
  %v19 = vld [vmem:[%s0 + $0xc] sm:$0xff]
  %v20 = vld [vmem:[%s0 + $0x14] sm:$0xf]
  %v21 = vunpack.c.l.bf16 %v17
  %v22 = vunpack.c.h.bf16 %v17
  %v23 = vunpack.c.l.bf16 %v18
  %v24 = vunpack.c.l.bf16 %v19
  %v25 = vunpack.c.h.bf16 %v19
  %v26 = vunpack.c.l.bf16 %v20
  %v27 = vld [vmem:[%s1] sm:$0x7]
  %v29 = vlaneseq
  %v30 = vshrl.u32 %v29, 7
  %v31 = vsub.s32 0, %v30
  %v32 = vrot.slane %v27, %v31
  %v33 = vlaneseq
  %v34 = vshrl.u32 %v33, 7
  %v35 = vsub.s32 1, %v34
  %v36 = vrot.slane %v27, %v35
  %v37 = vlaneseq
  %v38 = vshrl.u32 %v37, 7
  %v39 = vsub.s32 2, %v38
  %v40 = vrot.slane %v27, %v39
  %v44 = vadd.f32 %v21, %v32
  %v45 = vadd.f32 %v22, %v36
  %v46 = vadd.f32 %v23, %v40
  %v47 = vadd.f32 %v24, %v32
  %v48 = vadd.f32 %v25, %v36
  %v49 = vadd.f32 %v26, %v40
  %v50 = vxor.u32 %v44, 2147483648
  %v51 = vxor.u32 %v45, 2147483648
  %v52 = vxor.u32 %v46, 2147483648
  %v53 = vxor.u32 %v47, 2147483648
  %v54 = vxor.u32 %v48, 2147483648
  %v55 = vxor.u32 %v49, 2147483648
  %v56 = vmul.f32 %v50, 1.442695
  %v57 = vpow.pop %v56
  %v58 = vmul.f32 %v51, 1.442695
  %v59 = vpow.pop %v58
  %v60 = vmul.f32 %v52, 1.442695
  %v61 = vpow.pop %v60
  %v62 = vmul.f32 %v53, 1.442695
  %v63 = vpow.pop %v62
  %v64 = vmul.f32 %v54, 1.442695
  %v65 = vpow.pop %v64
  %v66 = vmul.f32 %v55, 1.442695
  %v67 = vpow.pop %v66
  %v68 = vadd.f32 %v57, 1.0
  %v69 = vadd.f32 %v59, 1.0
  %v70 = vadd.f32 %v61, 1.0
  %v71 = vadd.f32 %v63, 1.0
  %v72 = vadd.f32 %v65, 1.0
  %v73 = vadd.f32 %v67, 1.0
  %v74 = vrcp.pop %v68
  %v75 = vmul.f32 1.0, %v74
  %v76 = vrcp.pop %v69
  %v77 = vmul.f32 1.0, %v76
  %v78 = vrcp.pop %v70
  %v79 = vmul.f32 1.0, %v78
  %v80 = vrcp.pop %v71
  %v81 = vmul.f32 1.0, %v80
  %v82 = vrcp.pop %v72
  %v83 = vmul.f32 1.0, %v82
  %v84 = vrcp.pop %v73
  %v85 = vmul.f32 1.0, %v84
  %v86 = vld [vmem:[%s2] sm:$0x7]
  %v88 = vlaneseq
  %v89 = vshrl.u32 %v88, 7
  %v90 = vsub.s32 0, %v89
  %v91 = vrot.slane %v86, %v90
  %v92 = vlaneseq
  %v93 = vshrl.u32 %v92, 7
  %v94 = vsub.s32 1, %v93
  %v95 = vrot.slane %v86, %v94
  %v96 = vlaneseq
  %v97 = vshrl.u32 %v96, 7
  %v98 = vsub.s32 2, %v97
  %v99 = vrot.slane %v86, %v98
  %v103 = vmul.f32 %v75, %v91
  %v104 = vmul.f32 %v77, %v95
  %v105 = vmul.f32 %v79, %v99
  %v106 = vmul.f32 %v81, %v91
  %v107 = vmul.f32 %v83, %v95
  %v108 = vmul.f32 %v85, %v99
  %v109 = vld [vmem:[%s3] sm:$0x7]
  %v111 = vlaneseq
  %v112 = vshrl.u32 %v111, 7
  %v113 = vsub.s32 0, %v112
  %v114 = vrot.slane %v109, %v113
  %v115 = vlaneseq
  %v116 = vshrl.u32 %v115, 7
  %v117 = vsub.s32 1, %v116
  %v118 = vrot.slane %v109, %v117
  %v119 = vlaneseq
  %v120 = vshrl.u32 %v119, 7
  %v121 = vsub.s32 2, %v120
  %v122 = vrot.slane %v109, %v121
  %v126 = vadd.f32 %v103, %v114
  %v127 = vadd.f32 %v104, %v118
  %v128 = vadd.f32 %v105, %v122
  %v129 = vadd.f32 %v106, %v114
  %v130 = vadd.f32 %v107, %v118
  %v131 = vadd.f32 %v108, %v122
  %132 = vst [vmem:[%s4] sm:$0xff] %v126
  %133 = vst [vmem:[%s4 + $0x8] sm:$0xff] %v127
  %134 = vst [vmem:[%s4 + $0x10] sm:$0xff] %v128
  %135 = vst [vmem:[%s4 + $0x18] sm:$0xff] %v129
  %136 = vst [vmem:[%s4 + $0x20] sm:$0xff] %v130
  %137 = vst [vmem:[%s4 + $0x28] sm:$0xff] %v131
  // Predicated region
  $region18: #{generator_forward.23} parent=0 // pred_check
    _
  $region19: #{generator_forward.23} parent=0 // pred_check_branch
    %139 = sbr.rel (0) target = $region21
  $region20: #{generator_forward.23} parent=0 // pred_region
    _
  $region21: #{generator_forward.23} parent=0 // pred_fallthru
    _
  // Predicated region
  $region22: #{generator_forward.23} parent=0 // pred_check
    _
  $region23: #{generator_forward.23} parent=0 // pred_check_branch
    %141 = sbr.rel (0) target = $region25
  $region24: #{generator_forward.23} parent=0 // pred_region
    _
  $region25: #{generator_forward.23} parent=0 // pred_fallthru
    _

</llo_original>
